<compile_context>
chip_gen: v6e
topology: v6e:2x2x1
jax: 0.10.0
libtpu: 0.0.40
codegen_flags: <defaults>
</compile_context>

<pallas_src>
import math
from functools import partial

import jax
import jax.numpy as jnp
from jax.experimental import pallas as pl
from jax.experimental.pallas import tpu as pltpu


def _layer_norm(x, gamma, beta, eps=1e-5):
    mean = jnp.mean(x, axis=-1, keepdims=True)
    var = jnp.mean(jnp.square(x - mean), axis=-1, keepdims=True)
    return (x - mean) * jax.lax.rsqrt(var + eps) * gamma + beta


def encoder_layer_kernel(
    x_ref,
    wqkv_ref, bqkv_ref, wo_ref, bo_ref,
    g1_ref, beta1_ref, w1_ref, bf1_ref, w2_ref, bf2_ref, g2_ref, beta2_ref,
    gf_ref, betaf_ref,
    out_ref,
    x_scratch,
    *, num_heads, seq, embed):
    """One (batch-block, layer) grid step of the post-LN transformer encoder."""
    head_dim = embed // num_heads
    scale = 1.0 / math.sqrt(head_dim)
    l = pl.program_id(1)

    # ------- carry init: load this batch item's tokens into the VMEM carry -------
    @pl.when(l == 0)
    def _():
        x_scratch[...] = x_ref[0]                          # (S, E) f32

    x = x_scratch[...]                                     # (S, E) f32
    x_bf = x.astype(jnp.bfloat16)

    # ------------------- fused QKV projection (one MXU pass) -------------------
    qkv = jnp.dot(x_bf, wqkv_ref[0],
                  preferred_element_type=jnp.float32) + bqkv_ref[0]   # (S, 3E)
    q = qkv[:, :embed]
    k = qkv[:, embed:2 * embed]
    v = qkv[:, 2 * embed:]

    # ------------------- batched multi-head attention (H, S, Dh) ----------------
    q3 = jnp.stack([q[:, h * head_dim:(h + 1) * head_dim]
                    for h in range(num_heads)], axis=0)               # (H, S, Dh)
    k3 = jnp.stack([k[:, h * head_dim:(h + 1) * head_dim]
                    for h in range(num_heads)], axis=0)
    v3 = jnp.stack([v[:, h * head_dim:(h + 1) * head_dim]
                    for h in range(num_heads)], axis=0)

    s = jnp.einsum('hqd,hkd->hqk', q3, k3,
                   preferred_element_type=jnp.float32) * scale        # (H, S, S)
    s = s - jnp.max(s, axis=-1, keepdims=True)
    p = jnp.exp(s)
    p = p * pl.reciprocal(jnp.sum(p, axis=-1, keepdims=True), approx=True)
    ctx = jnp.einsum('hqk,hkd->hqd', p, v3,
                     preferred_element_type=jnp.float32)              # (H, S, Dh)

    # merge heads back onto lanes and apply ONE fused output projection
    attn = jnp.concatenate([ctx[h] for h in range(num_heads)], axis=-1)  # (S, E)
    attn = jnp.dot(attn.astype(jnp.bfloat16), wo_ref[0],
                   preferred_element_type=jnp.float32) + bo_ref[0]       # (S, E)

    # residual + post-LayerNorm (torch default norm_first=False)
    x = _layer_norm(x + attn, g1_ref[0], beta1_ref[0])

    # ------------------- feed-forward: Linear -> ReLU -> Linear -----------------
    h1 = jnp.maximum(
        jnp.dot(x.astype(jnp.bfloat16), w1_ref[0],
                preferred_element_type=jnp.float32) + bf1_ref[0], 0.0)   # (S, dff)
    ff = jnp.dot(h1.astype(jnp.bfloat16), w2_ref[0],
                 preferred_element_type=jnp.float32) + bf2_ref[0]        # (S, E)

    x = _layer_norm(x + ff, g2_ref[0], beta2_ref[0])

    # carry to next layer
    x_scratch[...] = x

    # ------- finalize: nn.Transformer's final encoder LayerNorm + store --------
    @pl.when(l == pl.num_programs(1) - 1)
    def _():
        out_ref[0, :, :] = _layer_norm(x, gf_ref[...], betaf_ref[...])


_LAYER_PARAMS = ("wqkvT", "bqkv", "woT", "bo",
                 "g1", "beta1", "w1T", "bf1", "w2T", "bf2", "g2", "beta2")
_SHARED_PARAMS = ("gf", "betaf")
_PARAM_ORDER = _LAYER_PARAMS + _SHARED_PARAMS


def _per_layer_spec(shape):
    rest = len(shape) - 1
    return pl.BlockSpec((1,) + tuple(shape[1:]),
                        lambda b, l, _r=rest: (l,) + (0,) * _r)


def _shared_spec(shape):
    nd = len(shape)
    return pl.BlockSpec(shape, lambda b, l, _nd=nd: (0,) * _nd)


def transformer_feature_extraction_forward(x_nchw, params, *, num_heads, in_features):
    """JAX wrapper matching Transformer_Feature_Extraction_Network.forward."""
    N, E, one, S = x_nchw.shape
    assert one == 1, "expects H == 1 (squeeze(2) in the torch forward)"
    L = params["wqkvT"].shape[0]

    # torch: squeeze(2).permute(2,0,1) -> (S, N, E). Batch-major (N, S, E) is
    # mathematically identical (attention never mixes batch items; LN/FFN are
    # per-token), and matches the final permute(1,0,2) layout directly.
    x_tok = jnp.transpose(jnp.squeeze(x_nchw, axis=2), (0, 2, 1)).astype(jnp.float32)

    flat = [params[k] for k in _PARAM_ORDER]
    kernel = partial(encoder_layer_kernel,
                     num_heads=num_heads, seq=S, embed=E)

    in_specs = (
        [pl.BlockSpec((1, S, E), lambda b, l: (b, 0, 0))]
        + [_per_layer_spec(params[k].shape) for k in _LAYER_PARAMS]
        + [_shared_spec(params[k].shape) for k in _SHARED_PARAMS]
    )
    out_specs = pl.BlockSpec((1, S, E), lambda b, l: (b, 0, 0))

    out = pl.pallas_call(
        kernel,
        out_shape=jax.ShapeDtypeStruct((N, S, E), jnp.float32),
        grid=(N, L),
        in_specs=in_specs,
        out_specs=out_specs,
        scratch_shapes=[pltpu.VMEM((S, E), jnp.float32)],
        compiler_params=pltpu.CompilerParams(
            dimension_semantics=("parallel", "arbitrary"),
            vmem_limit_bytes=32 << 20),
    )(x_tok, *flat)

    # torch: permute(1,0,2).contiguous().view(-1, in_features)
    return out.reshape(-1, in_features)


def init_params(key, *, num_layers, embed, dff):
    """Deterministic synthetic parameters.

    Weight matrices are stored pre-transposed (kernel computes x @ W) and in
    bfloat16 (MXU-native); biases / LayerNorm parameters stay float32 and are
    shaped (L, 1, dim) so each per-layer block's last-two dims match the full
    array dims."""
    def xavier(k, shape, dtype=jnp.bfloat16):
        fan_in, fan_out = shape[-2], shape[-1]
        bound = math.sqrt(6.0 / (fan_in + fan_out))
        return jax.random.uniform(k, shape, jnp.float32, -bound, bound).astype(dtype)

    ks = jax.random.split(key, 4)
    L, E, F = num_layers, embed, dff
    return {
        "wqkvT": xavier(ks[0], (L, E, 3 * E)),
        "bqkv": jnp.zeros((L, 1, 3 * E), jnp.float32),
        "woT": xavier(ks[1], (L, E, E)),
        "bo": jnp.zeros((L, 1, E), jnp.float32),
        "g1": jnp.ones((L, 1, E), jnp.float32),
        "beta1": jnp.zeros((L, 1, E), jnp.float32),
        "w1T": xavier(ks[2], (L, E, F)),
        "bf1": jnp.zeros((L, 1, F), jnp.float32),
        "w2T": xavier(ks[3], (L, F, E)),
        "bf2": jnp.zeros((L, 1, E), jnp.float32),
        "g2": jnp.ones((L, 1, E), jnp.float32),
        "beta2": jnp.zeros((L, 1, E), jnp.float32),
        "gf": jnp.ones((1, E), jnp.float32),
        "betaf": jnp.zeros((1, E), jnp.float32),
    }


if __name__ == "__main__":
    EMBED, HEADS, LAYERS = 32, 4, 2          # embed_size, heads, num_layers
    BATCH, SEQ = 2, 8
    DFF = 2048                               # nn.Transformer default dim_feedforward
    IN_FEATURES = SEQ * EMBED                # in_features_size for view(-1, in_features)

    key = jax.random.PRNGKey(0)
    pkey, xkey = jax.random.split(key)
    params = init_params(pkey, num_layers=LAYERS, embed=EMBED, dff=DFF)

    # PyTorch NCHW input: (batch, embed, 1, seq)
    x = jax.random.normal(xkey, (BATCH, EMBED, 1, SEQ), jnp.float32)

    out = transformer_feature_extraction_forward(
        x, params, num_heads=HEADS, in_features=IN_FEATURES)
    out = jax.block_until_ready(out)

    assert out.shape == (BATCH * SEQ * EMBED // IN_FEATURES, IN_FEATURES), out.shape
    assert bool(jnp.all(jnp.isfinite(out)))
    print("KERNEL_OK")
</pallas_src>

<mosaic_0001>
module attributes {stable_mosaic.version = 11 : i64} {
  func.func @encoder_layer_kernel(%arg0: i32, %arg1: i32, %arg2: memref<1x8x32xf32, #tpu.memory_space<vmem>>, %arg3: memref<1x32x96xbf16, #tpu.memory_space<vmem>>, %arg4: memref<1x1x96xf32, #tpu.memory_space<vmem>>, %arg5: memref<1x32x32xbf16, #tpu.memory_space<vmem>>, %arg6: memref<1x1x32xf32, #tpu.memory_space<vmem>>, %arg7: memref<1x1x32xf32, #tpu.memory_space<vmem>>, %arg8: memref<1x1x32xf32, #tpu.memory_space<vmem>>, %arg9: memref<1x32x2048xbf16, #tpu.memory_space<vmem>>, %arg10: memref<1x1x2048xf32, #tpu.memory_space<vmem>>, %arg11: memref<1x2048x32xbf16, #tpu.memory_space<vmem>>, %arg12: memref<1x1x32xf32, #tpu.memory_space<vmem>>, %arg13: memref<1x1x32xf32, #tpu.memory_space<vmem>>, %arg14: memref<1x1x32xf32, #tpu.memory_space<vmem>>, %arg15: memref<1x32xf32, #tpu.memory_space<vmem>>, %arg16: memref<1x32xf32, #tpu.memory_space<vmem>>, %arg17: memref<1x8x32xf32, #tpu.memory_space<vmem>>, %arg18: memref<8x32xf32, #tpu.memory_space<vmem>>) attributes {dimension_semantics = [#tpu.dimension_semantics<parallel>, #tpu.dimension_semantics<arbitrary>], iteration_bounds = array<i64: 2, 2>, scalar_prefetch = 0 : i64, scratch_operands = 1 : i64, tpu.core_type = #tpu.core_type<tc>, window_params = [{transform_indices = @transform_0, window_bounds = array<i64: 1, 8, 32>}, {transform_indices = @transform_1, window_bounds = array<i64: 1, 32, 96>}, {transform_indices = @transform_2, window_bounds = array<i64: 1, 1, 96>}, {transform_indices = @transform_3, window_bounds = array<i64: 1, 32, 32>}, {transform_indices = @transform_4, window_bounds = array<i64: 1, 1, 32>}, {transform_indices = @transform_5, window_bounds = array<i64: 1, 1, 32>}, {transform_indices = @transform_6, window_bounds = array<i64: 1, 1, 32>}, {transform_indices = @transform_7, window_bounds = array<i64: 1, 32, 2048>}, {transform_indices = @transform_8, window_bounds = array<i64: 1, 1, 2048>}, {transform_indices = @transform_9, window_bounds = array<i64: 1, 2048, 32>}, {transform_indices = @transform_10, window_bounds = array<i64: 1, 1, 32>}, {transform_indices = @transform_11, window_bounds = array<i64: 1, 1, 32>}, {transform_indices = @transform_12, window_bounds = array<i64: 1, 1, 32>}, {pipeline_mode = #tpu.pipeline_mode<synchronous>, transform_indices = @transform_13, window_bounds = array<i64: 1, 32>}, {pipeline_mode = #tpu.pipeline_mode<synchronous>, transform_indices = @transform_14, window_bounds = array<i64: 1, 32>}, {transform_indices = @transform_15, window_bounds = array<i64: 1, 8, 32>}]} {
    %c0_i32 = arith.constant 0 : i32
    %0 = arith.cmpi eq, %arg1, %c0_i32 : i32
    %1 = arith.extui %0 : i1 to i32
    %c0_i32_0 = arith.constant 0 : i32
    %2 = arith.cmpi ne, %1, %c0_i32_0 : i32
    scf.if %2 {
      %c0_60 = arith.constant 0 : index
      %c0_61 = arith.constant 0 : index
      %c0_62 = arith.constant 0 : index
      %149 = vector.load %arg2[%c0_60, %c0_61, %c0_62] : memref<1x8x32xf32, #tpu.memory_space<vmem>>, vector<1x8x32xf32>
      %150 = vector.shape_cast %149 : vector<1x8x32xf32> to vector<8x32xf32>
      %c0_63 = arith.constant 0 : index
      %c0_64 = arith.constant 0 : index
      %151 = vector.load %arg18[%c0_63, %c0_64] : memref<8x32xf32, #tpu.memory_space<vmem>>, vector<8x32xf32>
      tpu.vector_store %arg18[%c0_63, %c0_64], %150 {strides = array<i32>} : memref<8x32xf32, #tpu.memory_space<vmem>>, vector<8x32xf32>,
    } else {
    }
    %c0 = arith.constant 0 : index
    %c0_1 = arith.constant 0 : index
    %3 = vector.load %arg18[%c0, %c0_1] : memref<8x32xf32, #tpu.memory_space<vmem>>, vector<8x32xf32>
    %4 = arith.truncf %3 : vector<8x32xf32> to vector<8x32xbf16>
    %c0_2 = arith.constant 0 : index
    %c0_3 = arith.constant 0 : index
    %c0_4 = arith.constant 0 : index
    %5 = vector.load %arg3[%c0_2, %c0_3, %c0_4] : memref<1x32x96xbf16, #tpu.memory_space<vmem>>, vector<1x32x96xbf16>
    %6 = vector.shape_cast %5 : vector<1x32x96xbf16> to vector<32x96xbf16>
    %cst = arith.constant dense<0.000000e+00> : vector<8x96xf32>
    %7 = tpu.matmul %4, %6, %cst {dimension_numbers = #tpu.dot_dimension_numbers<[1], [0], [0], [1], [0, 0, 1, 1], [], []>} : vector<8x32xbf16>, vector<32x96xbf16>, vector<8x96xf32> -> vector<8x96xf32>
    %c0_5 = arith.constant 0 : index
    %c0_6 = arith.constant 0 : index
    %c0_7 = arith.constant 0 : index
    %8 = vector.load %arg4[%c0_5, %c0_6, %c0_7] : memref<1x1x96xf32, #tpu.memory_space<vmem>>, vector<1x1x96xf32>
    %9 = vector.shape_cast %8 : vector<1x1x96xf32> to vector<1x96xf32>
    %10 = vector.broadcast %9 : vector<1x96xf32> to vector<8x96xf32>
    %11 = arith.addf %7, %10 : vector<8x96xf32>
    %12 = vector.extract_strided_slice %11 {offsets = [0, 0], sizes = [8, 32], strides = [1, 1]} : vector<8x96xf32> to vector<8x32xf32>
    %13 = vector.extract_strided_slice %11 {offsets = [0, 32], sizes = [8, 32], strides = [1, 1]} : vector<8x96xf32> to vector<8x32xf32>
    %14 = vector.extract_strided_slice %11 {offsets = [0, 64], sizes = [8, 32], strides = [1, 1]} : vector<8x96xf32> to vector<8x32xf32>
    %15 = vector.extract_strided_slice %12 {offsets = [0, 0], sizes = [8, 8], strides = [1, 1]} : vector<8x32xf32> to vector<8x8xf32>
    %16 = vector.extract_strided_slice %12 {offsets = [0, 8], sizes = [8, 8], strides = [1, 1]} : vector<8x32xf32> to vector<8x8xf32>
    %17 = vector.extract_strided_slice %12 {offsets = [0, 16], sizes = [8, 8], strides = [1, 1]} : vector<8x32xf32> to vector<8x8xf32>
    %18 = vector.extract_strided_slice %12 {offsets = [0, 24], sizes = [8, 8], strides = [1, 1]} : vector<8x32xf32> to vector<8x8xf32>
    %19 = vector.shape_cast %15 : vector<8x8xf32> to vector<1x8x8xf32>
    %20 = vector.shape_cast %16 : vector<8x8xf32> to vector<1x8x8xf32>
    %21 = vector.shape_cast %17 : vector<8x8xf32> to vector<1x8x8xf32>
    %22 = vector.shape_cast %18 : vector<8x8xf32> to vector<1x8x8xf32>
    %23 = tpu.concatenate %19, %20, %21, %22 in 0 : vector<1x8x8xf32>, vector<1x8x8xf32>, vector<1x8x8xf32>, vector<1x8x8xf32> -> vector<4x8x8xf32>
    %24 = vector.extract_strided_slice %13 {offsets = [0, 0], sizes = [8, 8], strides = [1, 1]} : vector<8x32xf32> to vector<8x8xf32>
    %25 = vector.extract_strided_slice %13 {offsets = [0, 8], sizes = [8, 8], strides = [1, 1]} : vector<8x32xf32> to vector<8x8xf32>
    %26 = vector.extract_strided_slice %13 {offsets = [0, 16], sizes = [8, 8], strides = [1, 1]} : vector<8x32xf32> to vector<8x8xf32>
    %27 = vector.extract_strided_slice %13 {offsets = [0, 24], sizes = [8, 8], strides = [1, 1]} : vector<8x32xf32> to vector<8x8xf32>
    %28 = vector.shape_cast %24 : vector<8x8xf32> to vector<1x8x8xf32>
    %29 = vector.shape_cast %25 : vector<8x8xf32> to vector<1x8x8xf32>
    %30 = vector.shape_cast %26 : vector<8x8xf32> to vector<1x8x8xf32>
    %31 = vector.shape_cast %27 : vector<8x8xf32> to vector<1x8x8xf32>
    %32 = tpu.concatenate %28, %29, %30, %31 in 0 : vector<1x8x8xf32>, vector<1x8x8xf32>, vector<1x8x8xf32>, vector<1x8x8xf32> -> vector<4x8x8xf32>
    %33 = vector.extract_strided_slice %14 {offsets = [0, 0], sizes = [8, 8], strides = [1, 1]} : vector<8x32xf32> to vector<8x8xf32>
    %34 = vector.extract_strided_slice %14 {offsets = [0, 8], sizes = [8, 8], strides = [1, 1]} : vector<8x32xf32> to vector<8x8xf32>
    %35 = vector.extract_strided_slice %14 {offsets = [0, 16], sizes = [8, 8], strides = [1, 1]} : vector<8x32xf32> to vector<8x8xf32>
    %36 = vector.extract_strided_slice %14 {offsets = [0, 24], sizes = [8, 8], strides = [1, 1]} : vector<8x32xf32> to vector<8x8xf32>
    %37 = vector.shape_cast %33 : vector<8x8xf32> to vector<1x8x8xf32>
    %38 = vector.shape_cast %34 : vector<8x8xf32> to vector<1x8x8xf32>
    %39 = vector.shape_cast %35 : vector<8x8xf32> to vector<1x8x8xf32>
    %40 = vector.shape_cast %36 : vector<8x8xf32> to vector<1x8x8xf32>
    %41 = tpu.concatenate %37, %38, %39, %40 in 0 : vector<1x8x8xf32>, vector<1x8x8xf32>, vector<1x8x8xf32>, vector<1x8x8xf32> -> vector<4x8x8xf32>
    "tpu.trace_start"() <{level = 10 : i32, message = "hqd,hkd->hqk"}> : () -> ()
    %cst_8 = arith.constant dense<0.000000e+00> : vector<4x8x8xf32>
    %42 = tpu.matmul %23, %32, %cst_8 {dimension_numbers = #tpu.dot_dimension_numbers<[2], [2], [1], [1], [0, 0, 0, 1, 1, 1], [0], [0]>} : vector<4x8x8xf32>, vector<4x8x8xf32>, vector<4x8x8xf32> -> vector<4x8x8xf32>
    "tpu.trace_stop"() : () -> ()
    %cst_9 = arith.constant 0.353553385 : f32
    %43 = vector.broadcast %cst_9 : f32 to vector<4x8x8xf32>
    %44 = arith.mulf %42, %43 : vector<4x8x8xf32>
    %cst_10 = arith.constant dense<0xFF800000> : vector<4x8xf32>
    %45 = vector.multi_reduction <maximumf>, %44, %cst_10 [2] : vector<4x8x8xf32> to vector<4x8xf32>
    %46 = vector.shape_cast %45 : vector<4x8xf32> to vector<4x8x1xf32>
    %47 = vector.broadcast %46 : vector<4x8x1xf32> to vector<4x8x8xf32>
    %48 = arith.subf %44, %47 : vector<4x8x8xf32>
    %49 = math.exp %48 : vector<4x8x8xf32>
    %cst_11 = arith.constant dense<0.000000e+00> : vector<4x8xf32>
    %50 = vector.multi_reduction <add>, %49, %cst_11 [2] : vector<4x8x8xf32> to vector<4x8xf32>
    %51 = vector.shape_cast %50 : vector<4x8xf32> to vector<4x8x1xf32>
    %52 = tpu.reciprocal %51 {approx = true} : vector<4x8x1xf32> -> vector<4x8x1xf32>
    %53 = vector.broadcast %52 : vector<4x8x1xf32> to vector<4x8x8xf32>
    %54 = arith.mulf %49, %53 : vector<4x8x8xf32>
    "tpu.trace_start"() <{level = 10 : i32, message = "hqk,hkd->hqd"}> : () -> ()
    %cst_12 = arith.constant dense<0.000000e+00> : vector<4x8x8xf32>
    %55 = tpu.matmul %54, %41, %cst_12 {dimension_numbers = #tpu.dot_dimension_numbers<[2], [1], [1], [2], [0, 0, 0, 1, 1, 2], [0], [0]>} : vector<4x8x8xf32>, vector<4x8x8xf32>, vector<4x8x8xf32> -> vector<4x8x8xf32>
    "tpu.trace_stop"() : () -> ()
    %56 = vector.extract_strided_slice %55 {offsets = [0, 0, 0], sizes = [1, 8, 8], strides = [1, 1, 1]} : vector<4x8x8xf32> to vector<1x8x8xf32>
    %57 = vector.shape_cast %56 : vector<1x8x8xf32> to vector<8x8xf32>
    %58 = vector.extract_strided_slice %55 {offsets = [1, 0, 0], sizes = [1, 8, 8], strides = [1, 1, 1]} : vector<4x8x8xf32> to vector<1x8x8xf32>
    %59 = vector.shape_cast %58 : vector<1x8x8xf32> to vector<8x8xf32>
    %60 = vector.extract_strided_slice %55 {offsets = [2, 0, 0], sizes = [1, 8, 8], strides = [1, 1, 1]} : vector<4x8x8xf32> to vector<1x8x8xf32>
    %61 = vector.shape_cast %60 : vector<1x8x8xf32> to vector<8x8xf32>
    %62 = vector.extract_strided_slice %55 {offsets = [3, 0, 0], sizes = [1, 8, 8], strides = [1, 1, 1]} : vector<4x8x8xf32> to vector<1x8x8xf32>
    %63 = vector.shape_cast %62 : vector<1x8x8xf32> to vector<8x8xf32>
    %64 = tpu.concatenate %57, %59, %61, %63 in 1 : vector<8x8xf32>, vector<8x8xf32>, vector<8x8xf32>, vector<8x8xf32> -> vector<8x32xf32>
    %65 = arith.truncf %64 : vector<8x32xf32> to vector<8x32xbf16>
    %c0_13 = arith.constant 0 : index
    %c0_14 = arith.constant 0 : index
    %c0_15 = arith.constant 0 : index
    %66 = vector.load %arg5[%c0_13, %c0_14, %c0_15] : memref<1x32x32xbf16, #tpu.memory_space<vmem>>, vector<1x32x32xbf16>
    %67 = vector.shape_cast %66 : vector<1x32x32xbf16> to vector<32x32xbf16>
    %cst_16 = arith.constant dense<0.000000e+00> : vector<8x32xf32>
    %68 = tpu.matmul %65, %67, %cst_16 {dimension_numbers = #tpu.dot_dimension_numbers<[1], [0], [0], [1], [0, 0, 1, 1], [], []>} : vector<8x32xbf16>, vector<32x32xbf16>, vector<8x32xf32> -> vector<8x32xf32>
    %c0_17 = arith.constant 0 : index
    %c0_18 = arith.constant 0 : index
    %c0_19 = arith.constant 0 : index
    %69 = vector.load %arg6[%c0_17, %c0_18, %c0_19] : memref<1x1x32xf32, #tpu.memory_space<vmem>>, vector<1x1x32xf32>
    %70 = vector.shape_cast %69 : vector<1x1x32xf32> to vector<1x32xf32>
    %71 = vector.broadcast %70 : vector<1x32xf32> to vector<8x32xf32>
    %72 = arith.addf %68, %71 : vector<8x32xf32>
    %73 = arith.addf %3, %72 : vector<8x32xf32>
    %c0_20 = arith.constant 0 : index
    %c0_21 = arith.constant 0 : index
    %c0_22 = arith.constant 0 : index
    %74 = vector.load %arg7[%c0_20, %c0_21, %c0_22] : memref<1x1x32xf32, #tpu.memory_space<vmem>>, vector<1x1x32xf32>
    %75 = vector.shape_cast %74 : vector<1x1x32xf32> to vector<1x32xf32>
    %c0_23 = arith.constant 0 : index
    %c0_24 = arith.constant 0 : index
    %c0_25 = arith.constant 0 : index
    %76 = vector.load %arg8[%c0_23, %c0_24, %c0_25] : memref<1x1x32xf32, #tpu.memory_space<vmem>>, vector<1x1x32xf32>
    %77 = vector.shape_cast %76 : vector<1x1x32xf32> to vector<1x32xf32>
    %cst_26 = arith.constant dense<0.000000e+00> : vector<8xf32>
    %78 = vector.multi_reduction <add>, %73, %cst_26 [1] : vector<8x32xf32> to vector<8xf32>
    %79 = vector.shape_cast %78 : vector<8xf32> to vector<8x1xf32>
    %cst_27 = arith.constant 3.200000e+01 : f32
    %80 = vector.broadcast %cst_27 : f32 to vector<8x1xf32>
    %81 = arith.divf %79, %80 : vector<8x1xf32>
    %82 = vector.broadcast %81 : vector<8x1xf32> to vector<8x32xf32>
    %83 = arith.subf %73, %82 : vector<8x32xf32>
    %84 = arith.mulf %83, %83 : vector<8x32xf32>
    %cst_28 = arith.constant dense<0.000000e+00> : vector<8xf32>
    %85 = vector.multi_reduction <add>, %84, %cst_28 [1] : vector<8x32xf32> to vector<8xf32>
    %86 = vector.shape_cast %85 : vector<8xf32> to vector<8x1xf32>
    %cst_29 = arith.constant 3.200000e+01 : f32
    %87 = vector.broadcast %cst_29 : f32 to vector<8x1xf32>
    %88 = arith.divf %86, %87 : vector<8x1xf32>
    %89 = vector.broadcast %81 : vector<8x1xf32> to vector<8x32xf32>
    %90 = arith.subf %73, %89 : vector<8x32xf32>
    %cst_30 = arith.constant 9.99999974E-6 : f32
    %91 = vector.broadcast %cst_30 : f32 to vector<8x1xf32>
    %92 = arith.addf %88, %91 : vector<8x1xf32>
    %93 = math.rsqrt %92 : vector<8x1xf32>
    %94 = vector.broadcast %93 : vector<8x1xf32> to vector<8x32xf32>
    %95 = arith.mulf %90, %94 : vector<8x32xf32>
    %96 = vector.broadcast %75 : vector<1x32xf32> to vector<8x32xf32>
    %97 = arith.mulf %95, %96 : vector<8x32xf32>
    %98 = vector.broadcast %77 : vector<1x32xf32> to vector<8x32xf32>
    %99 = arith.addf %97, %98 : vector<8x32xf32>
    %100 = arith.truncf %99 : vector<8x32xf32> to vector<8x32xbf16>
    %c0_31 = arith.constant 0 : index
    %c0_32 = arith.constant 0 : index
    %c0_33 = arith.constant 0 : index
    %101 = vector.load %arg9[%c0_31, %c0_32, %c0_33] : memref<1x32x2048xbf16, #tpu.memory_space<vmem>>, vector<1x32x2048xbf16>
    %102 = vector.shape_cast %101 : vector<1x32x2048xbf16> to vector<32x2048xbf16>
    %cst_34 = arith.constant dense<0.000000e+00> : vector<8x2048xf32>
    %103 = tpu.matmul %100, %102, %cst_34 {dimension_numbers = #tpu.dot_dimension_numbers<[1], [0], [0], [1], [0, 0, 1, 1], [], []>} : vector<8x32xbf16>, vector<32x2048xbf16>, vector<8x2048xf32> -> vector<8x2048xf32>
    %c0_35 = arith.constant 0 : index
    %c0_36 = arith.constant 0 : index
    %c0_37 = arith.constant 0 : index
    %104 = vector.load %arg10[%c0_35, %c0_36, %c0_37] : memref<1x1x2048xf32, #tpu.memory_space<vmem>>, vector<1x1x2048xf32>
    %105 = vector.shape_cast %104 : vector<1x1x2048xf32> to vector<1x2048xf32>
    %106 = vector.broadcast %105 : vector<1x2048xf32> to vector<8x2048xf32>
    %107 = arith.addf %103, %106 : vector<8x2048xf32>
    %cst_38 = arith.constant 0.000000e+00 : f32
    %108 = vector.broadcast %cst_38 : f32 to vector<8x2048xf32>
    %109 = arith.maximumf %107, %108 : vector<8x2048xf32>
    %110 = arith.truncf %109 : vector<8x2048xf32> to vector<8x2048xbf16>
    %c0_39 = arith.constant 0 : index
    %c0_40 = arith.constant 0 : index
    %c0_41 = arith.constant 0 : index
    %111 = vector.load %arg11[%c0_39, %c0_40, %c0_41] : memref<1x2048x32xbf16, #tpu.memory_space<vmem>>, vector<1x2048x32xbf16>
    %112 = vector.shape_cast %111 : vector<1x2048x32xbf16> to vector<2048x32xbf16>
    %cst_42 = arith.constant dense<0.000000e+00> : vector<8x32xf32>
    %113 = tpu.matmul %110, %112, %cst_42 {dimension_numbers = #tpu.dot_dimension_numbers<[1], [0], [0], [1], [0, 0, 1, 1], [], []>} : vector<8x2048xbf16>, vector<2048x32xbf16>, vector<8x32xf32> -> vector<8x32xf32>
    %c0_43 = arith.constant 0 : index
    %c0_44 = arith.constant 0 : index
    %c0_45 = arith.constant 0 : index
    %114 = vector.load %arg12[%c0_43, %c0_44, %c0_45] : memref<1x1x32xf32, #tpu.memory_space<vmem>>, vector<1x1x32xf32>
    %115 = vector.shape_cast %114 : vector<1x1x32xf32> to vector<1x32xf32>
    %116 = vector.broadcast %115 : vector<1x32xf32> to vector<8x32xf32>
    %117 = arith.addf %113, %116 : vector<8x32xf32>
    %118 = arith.addf %99, %117 : vector<8x32xf32>
    %c0_46 = arith.constant 0 : index
    %c0_47 = arith.constant 0 : index
    %c0_48 = arith.constant 0 : index
    %119 = vector.load %arg13[%c0_46, %c0_47, %c0_48] : memref<1x1x32xf32, #tpu.memory_space<vmem>>, vector<1x1x32xf32>
    %120 = vector.shape_cast %119 : vector<1x1x32xf32> to vector<1x32xf32>
    %c0_49 = arith.constant 0 : index
    %c0_50 = arith.constant 0 : index
    %c0_51 = arith.constant 0 : index
    %121 = vector.load %arg14[%c0_49, %c0_50, %c0_51] : memref<1x1x32xf32, #tpu.memory_space<vmem>>, vector<1x1x32xf32>
    %122 = vector.shape_cast %121 : vector<1x1x32xf32> to vector<1x32xf32>
    %cst_52 = arith.constant dense<0.000000e+00> : vector<8xf32>
    %123 = vector.multi_reduction <add>, %118, %cst_52 [1] : vector<8x32xf32> to vector<8xf32>
    %124 = vector.shape_cast %123 : vector<8xf32> to vector<8x1xf32>
    %cst_53 = arith.constant 3.200000e+01 : f32
    %125 = vector.broadcast %cst_53 : f32 to vector<8x1xf32>
    %126 = arith.divf %124, %125 : vector<8x1xf32>
    %127 = vector.broadcast %126 : vector<8x1xf32> to vector<8x32xf32>
    %128 = arith.subf %118, %127 : vector<8x32xf32>
    %129 = arith.mulf %128, %128 : vector<8x32xf32>
    %cst_54 = arith.constant dense<0.000000e+00> : vector<8xf32>
    %130 = vector.multi_reduction <add>, %129, %cst_54 [1] : vector<8x32xf32> to vector<8xf32>
    %131 = vector.shape_cast %130 : vector<8xf32> to vector<8x1xf32>
    %cst_55 = arith.constant 3.200000e+01 : f32
    %132 = vector.broadcast %cst_55 : f32 to vector<8x1xf32>
    %133 = arith.divf %131, %132 : vector<8x1xf32>
    %134 = vector.broadcast %126 : vector<8x1xf32> to vector<8x32xf32>
    %135 = arith.subf %118, %134 : vector<8x32xf32>
    %cst_56 = arith.constant 9.99999974E-6 : f32
    %136 = vector.broadcast %cst_56 : f32 to vector<8x1xf32>
    %137 = arith.addf %133, %136 : vector<8x1xf32>
    %138 = math.rsqrt %137 : vector<8x1xf32>
    %139 = vector.broadcast %138 : vector<8x1xf32> to vector<8x32xf32>
    %140 = arith.mulf %135, %139 : vector<8x32xf32>
    %141 = vector.broadcast %120 : vector<1x32xf32> to vector<8x32xf32>
    %142 = arith.mulf %140, %141 : vector<8x32xf32>
    %143 = vector.broadcast %122 : vector<1x32xf32> to vector<8x32xf32>
    %144 = arith.addf %142, %143 : vector<8x32xf32>
    %c0_57 = arith.constant 0 : index
    %c0_58 = arith.constant 0 : index
    %145 = vector.load %arg18[%c0_57, %c0_58] : memref<8x32xf32, #tpu.memory_space<vmem>>, vector<8x32xf32>
    tpu.vector_store %arg18[%c0_57, %c0_58], %144 {strides = array<i32>} : memref<8x32xf32, #tpu.memory_space<vmem>>, vector<8x32xf32>,
    %c1_i32 = arith.constant 1 : i32
    %146 = arith.cmpi eq, %arg1, %c1_i32 : i32
    %147 = arith.extui %146 : i1 to i32
    %c0_i32_59 = arith.constant 0 : i32
    %148 = arith.cmpi ne, %147, %c0_i32_59 : i32
    scf.if %148 {
      %c0_60 = arith.constant 0 : index
      %c0_61 = arith.constant 0 : index
      %149 = vector.load %arg15[%c0_60, %c0_61] : memref<1x32xf32, #tpu.memory_space<vmem>>, vector<1x32xf32>
      %c0_62 = arith.constant 0 : index
      %c0_63 = arith.constant 0 : index
      %150 = vector.load %arg16[%c0_62, %c0_63] : memref<1x32xf32, #tpu.memory_space<vmem>>, vector<1x32xf32>
      %cst_64 = arith.constant dense<0.000000e+00> : vector<8xf32>
      %151 = vector.multi_reduction <add>, %144, %cst_64 [1] : vector<8x32xf32> to vector<8xf32>
      %152 = vector.shape_cast %151 : vector<8xf32> to vector<8x1xf32>
      %cst_65 = arith.constant 3.200000e+01 : f32
      %153 = vector.broadcast %cst_65 : f32 to vector<8x1xf32>
      %154 = arith.divf %152, %153 : vector<8x1xf32>
      %155 = vector.broadcast %154 : vector<8x1xf32> to vector<8x32xf32>
      %156 = arith.subf %144, %155 : vector<8x32xf32>
      %157 = arith.mulf %156, %156 : vector<8x32xf32>
      %cst_66 = arith.constant dense<0.000000e+00> : vector<8xf32>
      %158 = vector.multi_reduction <add>, %157, %cst_66 [1] : vector<8x32xf32> to vector<8xf32>
      %159 = vector.shape_cast %158 : vector<8xf32> to vector<8x1xf32>
      %cst_67 = arith.constant 3.200000e+01 : f32
      %160 = vector.broadcast %cst_67 : f32 to vector<8x1xf32>
      %161 = arith.divf %159, %160 : vector<8x1xf32>
      %162 = vector.broadcast %154 : vector<8x1xf32> to vector<8x32xf32>
      %163 = arith.subf %144, %162 : vector<8x32xf32>
      %cst_68 = arith.constant 9.99999974E-6 : f32
      %164 = vector.broadcast %cst_68 : f32 to vector<8x1xf32>
      %165 = arith.addf %161, %164 : vector<8x1xf32>
      %166 = math.rsqrt %165 : vector<8x1xf32>
      %167 = vector.broadcast %166 : vector<8x1xf32> to vector<8x32xf32>
      %168 = arith.mulf %163, %167 : vector<8x32xf32>
      %169 = vector.broadcast %149 : vector<1x32xf32> to vector<8x32xf32>
      %170 = arith.mulf %168, %169 : vector<8x32xf32>
      %171 = vector.broadcast %150 : vector<1x32xf32> to vector<8x32xf32>
      %172 = arith.addf %170, %171 : vector<8x32xf32>
      %c0_69 = arith.constant 0 : index
      %c0_70 = arith.constant 0 : index
      %c0_71 = arith.constant 0 : index
      %173 = vector.load %arg17[%c0_69, %c0_70, %c0_71] : memref<1x8x32xf32, #tpu.memory_space<vmem>>, vector<1x8x32xf32>
      %174 = vector.shape_cast %173 : vector<1x8x32xf32> to vector<8x32xf32>
      %175 = vector.shape_cast %172 : vector<8x32xf32> to vector<1x8x32xf32>
      tpu.vector_store %arg17[%c0_69, %c0_70, %c0_71], %175 {strides = array<i32>} : memref<1x8x32xf32, #tpu.memory_space<vmem>>, vector<1x8x32xf32>,
    } else {
    }
    return
  }
  func.func @transform_0(%arg0: i32, %arg1: i32) -> (i32, i32, i32) {
    %c0_i32 = arith.constant 0 : i32
    %c0_i32_0 = arith.constant 0 : i32
    %c0_i32_1 = arith.constant 0 : i32
    return %arg0, %c0_i32, %c0_i32_0 : i32, i32, i32
  }
  func.func @transform_1(%arg0: i32, %arg1: i32) -> (i32, i32, i32) {
    %c0_i32 = arith.constant 0 : i32
    %c0_i32_0 = arith.constant 0 : i32
    %c0_i32_1 = arith.constant 0 : i32
    return %arg1, %c0_i32, %c0_i32_0 : i32, i32, i32
  }
  func.func @transform_2(%arg0: i32, %arg1: i32) -> (i32, i32, i32) {
    %c0_i32 = arith.constant 0 : i32
    %c0_i32_0 = arith.constant 0 : i32
    %c0_i32_1 = arith.constant 0 : i32
    return %arg1, %c0_i32, %c0_i32_0 : i32, i32, i32
  }
  func.func @transform_3(%arg0: i32, %arg1: i32) -> (i32, i32, i32) {
    %c0_i32 = arith.constant 0 : i32
    %c0_i32_0 = arith.constant 0 : i32
    %c0_i32_1 = arith.constant 0 : i32
    return %arg1, %c0_i32, %c0_i32_0 : i32, i32, i32
  }
  func.func @transform_4(%arg0: i32, %arg1: i32) -> (i32, i32, i32) {
    %c0_i32 = arith.constant 0 : i32
    %c0_i32_0 = arith.constant 0 : i32
    %c0_i32_1 = arith.constant 0 : i32
    return %arg1, %c0_i32, %c0_i32_0 : i32, i32, i32
  }
  func.func @transform_5(%arg0: i32, %arg1: i32) -> (i32, i32, i32) {
    %c0_i32 = arith.constant 0 : i32
    %c0_i32_0 = arith.constant 0 : i32
    %c0_i32_1 = arith.constant 0 : i32
    return %arg1, %c0_i32, %c0_i32_0 : i32, i32, i32
  }
  func.func @transform_6(%arg0: i32, %arg1: i32) -> (i32, i32, i32) {
    %c0_i32 = arith.constant 0 : i32
    %c0_i32_0 = arith.constant 0 : i32
    %c0_i32_1 = arith.constant 0 : i32
    return %arg1, %c0_i32, %c0_i32_0 : i32, i32, i32
  }
  func.func @transform_7(%arg0: i32, %arg1: i32) -> (i32, i32, i32) {
    %c0_i32 = arith.constant 0 : i32
    %c0_i32_0 = arith.constant 0 : i32
    %c0_i32_1 = arith.constant 0 : i32
    return %arg1, %c0_i32, %c0_i32_0 : i32, i32, i32
  }
  func.func @transform_8(%arg0: i32, %arg1: i32) -> (i32, i32, i32) {
    %c0_i32 = arith.constant 0 : i32
    %c0_i32_0 = arith.constant 0 : i32
    %c0_i32_1 = arith.constant 0 : i32
    return %arg1, %c0_i32, %c0_i32_0 : i32, i32, i32
  }
  func.func @transform_9(%arg0: i32, %arg1: i32) -> (i32, i32, i32) {
    %c0_i32 = arith.constant 0 : i32
    %c0_i32_0 = arith.constant 0 : i32
    %c0_i32_1 = arith.constant 0 : i32
    return %arg1, %c0_i32, %c0_i32_0 : i32, i32, i32
  }
  func.func @transform_10(%arg0: i32, %arg1: i32) -> (i32, i32, i32) {
    %c0_i32 = arith.constant 0 : i32
    %c0_i32_0 = arith.constant 0 : i32
    %c0_i32_1 = arith.constant 0 : i32
    return %arg1, %c0_i32, %c0_i32_0 : i32, i32, i32
  }
  func.func @transform_11(%arg0: i32, %arg1: i32) -> (i32, i32, i32) {
    %c0_i32 = arith.constant 0 : i32
    %c0_i32_0 = arith.constant 0 : i32
    %c0_i32_1 = arith.constant 0 : i32
    return %arg1, %c0_i32, %c0_i32_0 : i32, i32, i32
  }
  func.func @transform_12(%arg0: i32, %arg1: i32) -> (i32, i32, i32) {
    %c0_i32 = arith.constant 0 : i32
    %c0_i32_0 = arith.constant 0 : i32
    %c0_i32_1 = arith.constant 0 : i32
    return %arg1, %c0_i32, %c0_i32_0 : i32, i32, i32
  }
  func.func @transform_13(%arg0: i32, %arg1: i32) -> (i32, i32) {
    %c0_i32 = arith.constant 0 : i32
    %c0_i32_0 = arith.constant 0 : i32
    %c0_i32_1 = arith.constant 0 : i32
    return %c0_i32, %c0_i32_0 : i32, i32
  }
  func.func @transform_14(%arg0: i32, %arg1: i32) -> (i32, i32) {
    %c0_i32 = arith.constant 0 : i32
    %c0_i32_0 = arith.constant 0 : i32
    %c0_i32_1 = arith.constant 0 : i32
    return %c0_i32, %c0_i32_0 : i32, i32
  }
  func.func @transform_15(%arg0: i32, %arg1: i32) -> (i32, i32, i32) {
    %c0_i32 = arith.constant 0 : i32
    %c0_i32_0 = arith.constant 0 : i32
    %c0_i32_1 = arith.constant 0 : i32
    return %arg0, %c0_i32, %c0_i32_0 : i32, i32, i32
  }
}

</mosaic_0001>

<llo_original>
// kernel: tpu_custom_call.1
$region0: #{tpu_custom_call.1}
  #allocation0 [shape = 'u32[]', space=smem, size = 0x4, offset = 0x4, fixed_abs, tag = 'smem constant byte address 0x4 - core index']
  #allocation1 [shape = 'u32[144,128]{1,0:T(1,128)}', space=vmem, size = 0x12000, scoped, tag = 'internal scratch']
  #allocation2 [shape = 'f32[8,32]{1,0:T(8,128)}', space=vmem, size = 0x1000, scoped, tag = 'scratch operand']
  %s0 = inlined_call_operand.vmem [shape: f32[2,8,32], index: 0, kind: input, shape index: {}]
  %s1 = inlined_call_operand.vmem [shape: bf16[2,32,96], index: 1, kind: input, shape index: {}]
  %s2 = inlined_call_operand.vmem [shape: f32[2,1,96], index: 2, kind: input, shape index: {}]
  %s3 = inlined_call_operand.vmem [shape: bf16[2,32,32], index: 3, kind: input, shape index: {}]
  %s4 = inlined_call_operand.vmem [shape: f32[2,1,32], index: 4, kind: input, shape index: {}]
  %s5 = inlined_call_operand.vmem [shape: f32[2,1,32], index: 5, kind: input, shape index: {}]
  %s6 = inlined_call_operand.vmem [shape: f32[2,1,32], index: 6, kind: input, shape index: {}]
  %s7 = inlined_call_operand.vmem [shape: bf16[2,32,2048], index: 7, kind: input, shape index: {}]
  %s8 = inlined_call_operand.vmem [shape: f32[2,1,2048], index: 8, kind: input, shape index: {}]
  %s9 = inlined_call_operand.vmem [shape: bf16[2,2048,32], index: 9, kind: input, shape index: {}]
  %s10 = inlined_call_operand.vmem [shape: f32[2,1,32], index: 10, kind: input, shape index: {}]
  %s11 = inlined_call_operand.vmem [shape: f32[2,1,32], index: 11, kind: input, shape index: {}]
  %s12 = inlined_call_operand.vmem [shape: f32[2,1,32], index: 12, kind: input, shape index: {}]
  %s13 = inlined_call_operand.vmem [shape: f32[1,32], index: 13, kind: input, shape index: {}]
  %s14 = inlined_call_operand.vmem [shape: f32[1,32], index: 14, kind: input, shape index: {}]
  %s15 = inlined_call_operand.hbm [shape: f32[2,8,32], index: 15, kind: output, shape index: {}]
  %s16 = sld [smem:[#allocation0]]
  $region101: #{tpu_custom_call.1} parent=0
    _
  %s18 = ssub.s32 1, %s16
  %s19 = scalar_select 0, %s18, %s16
  $region1: #{tpu_custom_call.1} parent=0
    #allocation3 [shape = 'u8[8192]{0}', space=vmem, size = 0x2000, scoped, tag = 'output window, operand 0']
    #allocation4 [shape = 's32[2]{0}', space=sflag, size = 0x8, scoped, tag = 'scoped memory for tpu_custom_call.1']
    %20 = vsyncpa [#allocation4], 0
    %s21 = scalar_lea.sflag [#allocation4], 1
    %22 = vsyncpa %s21, 0
    loop: start=0, step=1, limit=6
    $region2: #{tpu_custom_call.1} parent=1 // loop_pre_header
      _
    $region3: #{tpu_custom_call.1} parent=1 // loop_header
      %s24 = sphi 0, %s28
      %p25 = scmp.ge.s32.totalorder %s24, 6
      %s31 = sphi 0, %s43
      %s32 = sphi 0, %s39
      %s33 = sphi 0, %s31
      %s34 = sphi 0, %s32
      %s35 = sphi 0, %s33
      %s36 = sphi 0, %s34
      %s46 = sphi 0, %s48
      %s49 = sphi 0, %s46
      %s50 = sphi 0, %s49
      %s66 = sphi 0, %s50
      %s72 = sphi 0, %s74
      %s75 = sphi 0, %s72
      %s76 = sphi 0, %s75
      %s92 = sphi 0, %s76
      %s98 = sphi 0, %s100
      %s101 = sphi 0, %s98
      %s102 = sphi 0, %s101
      %s118 = sphi 0, %s102
      %s124 = sphi 0, %s126
      %s127 = sphi 0, %s124
      %s128 = sphi 0, %s127
      %s144 = sphi 0, %s128
      %s150 = sphi 0, %s152
      %s153 = sphi 0, %s150
      %s154 = sphi 0, %s153
      %s170 = sphi 0, %s154
      %s176 = sphi 0, %s178
      %s179 = sphi 0, %s176
      %s180 = sphi 0, %s179
      %s196 = sphi 0, %s180
      %s202 = sphi 0, %s204
      %s205 = sphi 0, %s202
      %s206 = sphi 0, %s205
      %s222 = sphi 0, %s206
      %s228 = sphi 0, %s230
      %s231 = sphi 0, %s228
      %s232 = sphi 0, %s231
      %s248 = sphi 0, %s232
      %s254 = sphi 0, %s256
      %s257 = sphi 0, %s254
      %s258 = sphi 0, %s257
      %s274 = sphi 0, %s258
      %s280 = sphi 0, %s282
      %s283 = sphi 0, %s280
      %s284 = sphi 0, %s283
      %s300 = sphi 0, %s284
      %s306 = sphi 0, %s308
      %s309 = sphi 0, %s306
      %s310 = sphi 0, %s309
      %s326 = sphi 0, %s310
      %s332 = sphi 0, %s334
      %s335 = sphi 0, %s332
      %s336 = sphi 0, %s335
      %s352 = sphi 0, %s336
      %s358 = sphi 0, %s360
      %s361 = sphi 0, %s358
      %s362 = sphi 0, %s361
      %s378 = sphi 0, %s362
      %s382 = sphi 0, %s382
      %s384 = sphi 0, %s382
      %s385 = sphi 0, %s384
      %s399 = sphi 0, %s385
      %s403 = sphi 0, %s403
      %s405 = sphi 0, %s403
      %s406 = sphi 0, %s405
      %s420 = sphi 0, %s406
      %s426 = sphi 0, %s428
      %s429 = sphi 0, %s426
      %s430 = sphi 0, %s429
      %s446 = sphi 0, %s430
    $region4: #{tpu_custom_call.1} parent=1 // loop_header_branch
      %27 = sbr.rel (%p25) target = $region8
    $region5: #{tpu_custom_call.1} parent=1 // loop_body
      %s29 = ssub.s32 %s24, 1
      %s30 = ssub.s32 %s24, 2
      %s37 = sadd.s32 1, %s32
      %p38 = scmp.ge.s32.totalorder %s37, 2
      %s39 = scalar_select %p38, 0, %s37
      %s40 = sadd.s32 1, %s31
      %s41 = scalar_select %p38, %s40, %s31
      %p42 = scmp.ge.s32.totalorder %s41, 2
      %s43 = scalar_select %p42, 0, %s41
      %s44 = ssub.s32 %s31, %s43
      %p45 = scmp.eq.s32.totalorder %s44, 0
      %s47 = sadd.s32 %s46, 1
      %s48 = scalar_select %p45, %s46, %s47
      %p51 = pneg %p45
      %p52 = scmp.eq.s32.totalorder %s24, 3
      %p53 = por %p51, %p52
      %p54 = scmp.ne.s32.totalorder %s46, %s49
      %p55 = scmp.eq.s32.totalorder %s24, 0
      %p56 = por %p54, %p55
      %p57 = scmp.ne.s32.totalorder %s46, %s49
      %p58 = scmp.eq.s32.totalorder %s29, 3
      %p59 = por %p57, %p58
      %p60 = scmp.ne.s32.totalorder %s49, %s50
      %p61 = scmp.eq.s32.totalorder %s29, 0
      %p62 = por %p60, %p61
      %p63 = scmp.ne.s32.totalorder %s49, %s50
      %p64 = scmp.eq.s32.totalorder %s30, 3
      %p65 = por %p63, %p64
      %p67 = scmp.ne.s32.totalorder %s50, %s66
      %p68 = scmp.eq.s32.totalorder %s30, 0
      %p69 = por %p67, %p68
      %s70 = ssub.s32 %s32, %s39
      %p71 = scmp.eq.s32.totalorder %s70, 0
      %s73 = sadd.s32 %s72, 1
      %s74 = scalar_select %p71, %s72, %s73
      %p77 = pneg %p71
      %p78 = scmp.eq.s32.totalorder %s24, 3
      %p79 = por %p77, %p78
      %p80 = scmp.ne.s32.totalorder %s72, %s75
      %p81 = scmp.eq.s32.totalorder %s24, 0
      %p82 = por %p80, %p81
      %p83 = scmp.ne.s32.totalorder %s72, %s75
      %p84 = scmp.eq.s32.totalorder %s29, 3
      %p85 = por %p83, %p84
      %p86 = scmp.ne.s32.totalorder %s75, %s76
      %p87 = scmp.eq.s32.totalorder %s29, 0
      %p88 = por %p86, %p87
      %p89 = scmp.ne.s32.totalorder %s75, %s76
      %p90 = scmp.eq.s32.totalorder %s30, 3
      %p91 = por %p89, %p90
      %p93 = scmp.ne.s32.totalorder %s76, %s92
      %p94 = scmp.eq.s32.totalorder %s30, 0
      %p95 = por %p93, %p94
      %s96 = ssub.s32 %s32, %s39
      %p97 = scmp.eq.s32.totalorder %s96, 0
      %s99 = sadd.s32 %s98, 1
      %s100 = scalar_select %p97, %s98, %s99
      %p103 = pneg %p97
      %p104 = scmp.eq.s32.totalorder %s24, 3
      %p105 = por %p103, %p104
      %p106 = scmp.ne.s32.totalorder %s98, %s101
      %p107 = scmp.eq.s32.totalorder %s24, 0
      %p108 = por %p106, %p107
      %p109 = scmp.ne.s32.totalorder %s98, %s101
      %p110 = scmp.eq.s32.totalorder %s29, 3
      %p111 = por %p109, %p110
      %p112 = scmp.ne.s32.totalorder %s101, %s102
      %p113 = scmp.eq.s32.totalorder %s29, 0
      %p114 = por %p112, %p113
      %p115 = scmp.ne.s32.totalorder %s101, %s102
      %p116 = scmp.eq.s32.totalorder %s30, 3
      %p117 = por %p115, %p116
      %p119 = scmp.ne.s32.totalorder %s102, %s118
      %p120 = scmp.eq.s32.totalorder %s30, 0
      %p121 = por %p119, %p120
      %s122 = ssub.s32 %s32, %s39
      %p123 = scmp.eq.s32.totalorder %s122, 0
      %s125 = sadd.s32 %s124, 1
      %s126 = scalar_select %p123, %s124, %s125
      %p129 = pneg %p123
      %p130 = scmp.eq.s32.totalorder %s24, 3
      %p131 = por %p129, %p130
      %p132 = scmp.ne.s32.totalorder %s124, %s127
      %p133 = scmp.eq.s32.totalorder %s24, 0
      %p134 = por %p132, %p133
      %p135 = scmp.ne.s32.totalorder %s124, %s127
      %p136 = scmp.eq.s32.totalorder %s29, 3
      %p137 = por %p135, %p136
      %p138 = scmp.ne.s32.totalorder %s127, %s128
      %p139 = scmp.eq.s32.totalorder %s29, 0
      %p140 = por %p138, %p139
      %p141 = scmp.ne.s32.totalorder %s127, %s128
      %p142 = scmp.eq.s32.totalorder %s30, 3
      %p143 = por %p141, %p142
      %p145 = scmp.ne.s32.totalorder %s128, %s144
      %p146 = scmp.eq.s32.totalorder %s30, 0
      %p147 = por %p145, %p146
      %s148 = ssub.s32 %s32, %s39
      %p149 = scmp.eq.s32.totalorder %s148, 0
      %s151 = sadd.s32 %s150, 1
      %s152 = scalar_select %p149, %s150, %s151
      %p155 = pneg %p149
      %p156 = scmp.eq.s32.totalorder %s24, 3
      %p157 = por %p155, %p156
      %p158 = scmp.ne.s32.totalorder %s150, %s153
      %p159 = scmp.eq.s32.totalorder %s24, 0
      %p160 = por %p158, %p159
      %p161 = scmp.ne.s32.totalorder %s150, %s153
      %p162 = scmp.eq.s32.totalorder %s29, 3
      %p163 = por %p161, %p162
      %p164 = scmp.ne.s32.totalorder %s153, %s154
      %p165 = scmp.eq.s32.totalorder %s29, 0
      %p166 = por %p164, %p165
      %p167 = scmp.ne.s32.totalorder %s153, %s154
      %p168 = scmp.eq.s32.totalorder %s30, 3
      %p169 = por %p167, %p168
      %p171 = scmp.ne.s32.totalorder %s154, %s170
      %p172 = scmp.eq.s32.totalorder %s30, 0
      %p173 = por %p171, %p172
      %s174 = ssub.s32 %s32, %s39
      %p175 = scmp.eq.s32.totalorder %s174, 0
      %s177 = sadd.s32 %s176, 1
      %s178 = scalar_select %p175, %s176, %s177
      %p181 = pneg %p175
      %p182 = scmp.eq.s32.totalorder %s24, 3
      %p183 = por %p181, %p182
      %p184 = scmp.ne.s32.totalorder %s176, %s179
      %p185 = scmp.eq.s32.totalorder %s24, 0
      %p186 = por %p184, %p185
      %p187 = scmp.ne.s32.totalorder %s176, %s179
      %p188 = scmp.eq.s32.totalorder %s29, 3
      %p189 = por %p187, %p188
      %p190 = scmp.ne.s32.totalorder %s179, %s180
      %p191 = scmp.eq.s32.totalorder %s29, 0
      %p192 = por %p190, %p191
      %p193 = scmp.ne.s32.totalorder %s179, %s180
      %p194 = scmp.eq.s32.totalorder %s30, 3
      %p195 = por %p193, %p194
      %p197 = scmp.ne.s32.totalorder %s180, %s196
      %p198 = scmp.eq.s32.totalorder %s30, 0
      %p199 = por %p197, %p198
      %s200 = ssub.s32 %s32, %s39
      %p201 = scmp.eq.s32.totalorder %s200, 0
      %s203 = sadd.s32 %s202, 1
      %s204 = scalar_select %p201, %s202, %s203
      %p207 = pneg %p201
      %p208 = scmp.eq.s32.totalorder %s24, 3
      %p209 = por %p207, %p208
      %p210 = scmp.ne.s32.totalorder %s202, %s205
      %p211 = scmp.eq.s32.totalorder %s24, 0
      %p212 = por %p210, %p211
      %p213 = scmp.ne.s32.totalorder %s202, %s205
      %p214 = scmp.eq.s32.totalorder %s29, 3
      %p215 = por %p213, %p214
      %p216 = scmp.ne.s32.totalorder %s205, %s206
      %p217 = scmp.eq.s32.totalorder %s29, 0
      %p218 = por %p216, %p217
      %p219 = scmp.ne.s32.totalorder %s205, %s206
      %p220 = scmp.eq.s32.totalorder %s30, 3
      %p221 = por %p219, %p220
      %p223 = scmp.ne.s32.totalorder %s206, %s222
      %p224 = scmp.eq.s32.totalorder %s30, 0
      %p225 = por %p223, %p224
      %s226 = ssub.s32 %s32, %s39
      %p227 = scmp.eq.s32.totalorder %s226, 0
      %s229 = sadd.s32 %s228, 1
      %s230 = scalar_select %p227, %s228, %s229
      %p233 = pneg %p227
      %p234 = scmp.eq.s32.totalorder %s24, 3
      %p235 = por %p233, %p234
      %p236 = scmp.ne.s32.totalorder %s228, %s231
      %p237 = scmp.eq.s32.totalorder %s24, 0
      %p238 = por %p236, %p237
      %p239 = scmp.ne.s32.totalorder %s228, %s231
      %p240 = scmp.eq.s32.totalorder %s29, 3
      %p241 = por %p239, %p240
      %p242 = scmp.ne.s32.totalorder %s231, %s232
      %p243 = scmp.eq.s32.totalorder %s29, 0
      %p244 = por %p242, %p243
      %p245 = scmp.ne.s32.totalorder %s231, %s232
      %p246 = scmp.eq.s32.totalorder %s30, 3
      %p247 = por %p245, %p246
      %p249 = scmp.ne.s32.totalorder %s232, %s248
      %p250 = scmp.eq.s32.totalorder %s30, 0
      %p251 = por %p249, %p250
      %s252 = ssub.s32 %s32, %s39
      %p253 = scmp.eq.s32.totalorder %s252, 0
      %s255 = sadd.s32 %s254, 1
      %s256 = scalar_select %p253, %s254, %s255
      %p259 = pneg %p253
      %p260 = scmp.eq.s32.totalorder %s24, 3
      %p261 = por %p259, %p260
      %p262 = scmp.ne.s32.totalorder %s254, %s257
      %p263 = scmp.eq.s32.totalorder %s24, 0
      %p264 = por %p262, %p263
      %p265 = scmp.ne.s32.totalorder %s254, %s257
      %p266 = scmp.eq.s32.totalorder %s29, 3
      %p267 = por %p265, %p266
      %p268 = scmp.ne.s32.totalorder %s257, %s258
      %p269 = scmp.eq.s32.totalorder %s29, 0
      %p270 = por %p268, %p269
      %p271 = scmp.ne.s32.totalorder %s257, %s258
      %p272 = scmp.eq.s32.totalorder %s30, 3
      %p273 = por %p271, %p272
      %p275 = scmp.ne.s32.totalorder %s258, %s274
      %p276 = scmp.eq.s32.totalorder %s30, 0
      %p277 = por %p275, %p276
      %s278 = ssub.s32 %s32, %s39
      %p279 = scmp.eq.s32.totalorder %s278, 0
      %s281 = sadd.s32 %s280, 1
      %s282 = scalar_select %p279, %s280, %s281
      %p285 = pneg %p279
      %p286 = scmp.eq.s32.totalorder %s24, 3
      %p287 = por %p285, %p286
      %p288 = scmp.ne.s32.totalorder %s280, %s283
      %p289 = scmp.eq.s32.totalorder %s24, 0
      %p290 = por %p288, %p289
      %p291 = scmp.ne.s32.totalorder %s280, %s283
      %p292 = scmp.eq.s32.totalorder %s29, 3
      %p293 = por %p291, %p292
      %p294 = scmp.ne.s32.totalorder %s283, %s284
      %p295 = scmp.eq.s32.totalorder %s29, 0
      %p296 = por %p294, %p295
      %p297 = scmp.ne.s32.totalorder %s283, %s284
      %p298 = scmp.eq.s32.totalorder %s30, 3
      %p299 = por %p297, %p298
      %p301 = scmp.ne.s32.totalorder %s284, %s300
      %p302 = scmp.eq.s32.totalorder %s30, 0
      %p303 = por %p301, %p302
      %s304 = ssub.s32 %s32, %s39
      %p305 = scmp.eq.s32.totalorder %s304, 0
      %s307 = sadd.s32 %s306, 1
      %s308 = scalar_select %p305, %s306, %s307
      %p311 = pneg %p305
      %p312 = scmp.eq.s32.totalorder %s24, 3
      %p313 = por %p311, %p312
      %p314 = scmp.ne.s32.totalorder %s306, %s309
      %p315 = scmp.eq.s32.totalorder %s24, 0
      %p316 = por %p314, %p315
      %p317 = scmp.ne.s32.totalorder %s306, %s309
      %p318 = scmp.eq.s32.totalorder %s29, 3
      %p319 = por %p317, %p318
      %p320 = scmp.ne.s32.totalorder %s309, %s310
      %p321 = scmp.eq.s32.totalorder %s29, 0
      %p322 = por %p320, %p321
      %p323 = scmp.ne.s32.totalorder %s309, %s310
      %p324 = scmp.eq.s32.totalorder %s30, 3
      %p325 = por %p323, %p324
      %p327 = scmp.ne.s32.totalorder %s310, %s326
      %p328 = scmp.eq.s32.totalorder %s30, 0
      %p329 = por %p327, %p328
      %s330 = ssub.s32 %s32, %s39
      %p331 = scmp.eq.s32.totalorder %s330, 0
      %s333 = sadd.s32 %s332, 1
      %s334 = scalar_select %p331, %s332, %s333
      %p337 = pneg %p331
      %p338 = scmp.eq.s32.totalorder %s24, 3
      %p339 = por %p337, %p338
      %p340 = scmp.ne.s32.totalorder %s332, %s335
      %p341 = scmp.eq.s32.totalorder %s24, 0
      %p342 = por %p340, %p341
      %p343 = scmp.ne.s32.totalorder %s332, %s335
      %p344 = scmp.eq.s32.totalorder %s29, 3
      %p345 = por %p343, %p344
      %p346 = scmp.ne.s32.totalorder %s335, %s336
      %p347 = scmp.eq.s32.totalorder %s29, 0
      %p348 = por %p346, %p347
      %p349 = scmp.ne.s32.totalorder %s335, %s336
      %p350 = scmp.eq.s32.totalorder %s30, 3
      %p351 = por %p349, %p350
      %p353 = scmp.ne.s32.totalorder %s336, %s352
      %p354 = scmp.eq.s32.totalorder %s30, 0
      %p355 = por %p353, %p354
      %s356 = ssub.s32 %s32, %s39
      %p357 = scmp.eq.s32.totalorder %s356, 0
      %s359 = sadd.s32 %s358, 1
      %s360 = scalar_select %p357, %s358, %s359
      %p363 = pneg %p357
      %p364 = scmp.eq.s32.totalorder %s24, 3
      %p365 = por %p363, %p364
      %p366 = scmp.ne.s32.totalorder %s358, %s361
      %p367 = scmp.eq.s32.totalorder %s24, 0
      %p368 = por %p366, %p367
      %p369 = scmp.ne.s32.totalorder %s358, %s361
      %p370 = scmp.eq.s32.totalorder %s29, 3
      %p371 = por %p369, %p370
      %p372 = scmp.ne.s32.totalorder %s361, %s362
      %p373 = scmp.eq.s32.totalorder %s29, 0
      %p374 = por %p372, %p373
      %p375 = scmp.ne.s32.totalorder %s361, %s362
      %p376 = scmp.eq.s32.totalorder %s30, 3
      %p377 = por %p375, %p376
      %p379 = scmp.ne.s32.totalorder %s362, %s378
      %p380 = scmp.eq.s32.totalorder %s30, 0
      %p381 = por %p379, %p380
      %s383 = sadd.s32 %s382, 1
      %p386 = scmp.eq.s32.totalorder %s24, 3
      %p387 = scmp.ne.s32.totalorder %s382, %s384
      %p388 = scmp.eq.s32.totalorder %s24, 0
      %p389 = por %p387, %p388
      %p390 = scmp.ne.s32.totalorder %s382, %s384
      %p391 = scmp.eq.s32.totalorder %s29, 3
      %p392 = por %p390, %p391
      %p393 = scmp.ne.s32.totalorder %s384, %s385
      %p394 = scmp.eq.s32.totalorder %s29, 0
      %p395 = por %p393, %p394
      %p396 = scmp.ne.s32.totalorder %s384, %s385
      %p397 = scmp.eq.s32.totalorder %s30, 3
      %p398 = por %p396, %p397
      %p400 = scmp.ne.s32.totalorder %s385, %s399
      %p401 = scmp.eq.s32.totalorder %s30, 0
      %p402 = por %p400, %p401
      %s404 = sadd.s32 %s403, 1
      %p407 = scmp.eq.s32.totalorder %s24, 3
      %p408 = scmp.ne.s32.totalorder %s403, %s405
      %p409 = scmp.eq.s32.totalorder %s24, 0
      %p410 = por %p408, %p409
      %p411 = scmp.ne.s32.totalorder %s403, %s405
      %p412 = scmp.eq.s32.totalorder %s29, 3
      %p413 = por %p411, %p412
      %p414 = scmp.ne.s32.totalorder %s405, %s406
      %p415 = scmp.eq.s32.totalorder %s29, 0
      %p416 = por %p414, %p415
      %p417 = scmp.ne.s32.totalorder %s405, %s406
      %p418 = scmp.eq.s32.totalorder %s30, 3
      %p419 = por %p417, %p418
      %p421 = scmp.ne.s32.totalorder %s406, %s420
      %p422 = scmp.eq.s32.totalorder %s30, 0
      %p423 = por %p421, %p422
      %s424 = ssub.s32 %s31, %s43
      %p425 = scmp.eq.s32.totalorder %s424, 0
      %s427 = sadd.s32 %s426, 1
      %s428 = scalar_select %p425, %s426, %s427
      %p431 = pneg %p425
      %p432 = scmp.eq.s32.totalorder %s24, 3
      %p433 = por %p431, %p432
      %p434 = scmp.ne.s32.totalorder %s426, %s429
      %p435 = scmp.eq.s32.totalorder %s24, 0
      %p436 = por %p434, %p435
      %p437 = scmp.ne.s32.totalorder %s426, %s429
      %p438 = scmp.eq.s32.totalorder %s29, 3
      %p439 = por %p437, %p438
      %p440 = scmp.ne.s32.totalorder %s429, %s430
      %p441 = scmp.eq.s32.totalorder %s29, 0
      %p442 = por %p440, %p441
      %p443 = scmp.ne.s32.totalorder %s429, %s430
      %p444 = scmp.eq.s32.totalorder %s30, 3
      %p445 = por %p443, %p444
      %p447 = scmp.ne.s32.totalorder %s430, %s446
      %p448 = scmp.eq.s32.totalorder %s30, 0
      %p449 = por %p447, %p448
      %p450 = scmp.le.s32.totalorder 1, %s24
      %p451 = scmp.lt.s32.totalorder %s24, 5
      %p452 = pnand %p450, %p451
      %p453 = pneg %p452
      // Predicated region
      $region9: #{tpu_custom_call.1} parent=5 // pred_check
        _
      $region10: #{tpu_custom_call.1} parent=5 // pred_check_branch
        %455 = sbr.rel (%p452) target = $region12
      $region11: #{tpu_custom_call.1} parent=5 // pred_region
        %s456 = ssub.s32 %s24, 1
        // Predicated region
        $region13: #{tpu_custom_call.1} parent=11 // pred_check
          %p457 = pneg %p395
        $region14: #{tpu_custom_call.1} parent=11 // pred_check_branch
          %459 = sbr.rel (%p457) target = $region16
        $region15: #{tpu_custom_call.1} parent=11 // pred_region
          _
        $region16: #{tpu_custom_call.1} parent=11 // pred_fallthru
          _
        // Predicated region
        $region17: #{tpu_custom_call.1} parent=11 // pred_check
          %p460 = pneg %p416
        $region18: #{tpu_custom_call.1} parent=11 // pred_check_branch
          %462 = sbr.rel (%p460) target = $region20
        $region19: #{tpu_custom_call.1} parent=11 // pred_region
          _
        $region20: #{tpu_custom_call.1} parent=11 // pred_fallthru
          _
      $region12: #{tpu_custom_call.1} parent=5 // pred_fallthru
        _
      %p463 = scmp.lt.s32.totalorder %s24, 4
      // Predicated region
      $region21: #{tpu_custom_call.1} parent=5 // pred_check
        %p464 = pneg %p463
      $region22: #{tpu_custom_call.1} parent=5 // pred_check_branch
        %466 = sbr.rel (%p464) target = $region24
      $region23: #{tpu_custom_call.1} parent=5 // pred_region
        // Predicated region
        $region25: #{tpu_custom_call.1} parent=23 // pred_check
          %p467 = pneg %p56
        $region26: #{tpu_custom_call.1} parent=23 // pred_check_branch
          %469 = sbr.rel (%p467) target = $region28
        $region27: #{tpu_custom_call.1} parent=23 // pred_region
          %p470 = scmp.lt.s32.totalorder %s31, 1
          %s471 = scalar_select %p470, %s31, 1
          %s472 = smul.addr %s471, 8
          %s473 = scalar_lea.vmem %s0, %s472
        $region28: #{tpu_custom_call.1} parent=23 // pred_fallthru
          _
        // Predicated region
        $region29: #{tpu_custom_call.1} parent=23 // pred_check
          %p474 = pneg %p82
        $region30: #{tpu_custom_call.1} parent=23 // pred_check_branch
          %476 = sbr.rel (%p474) target = $region32
        $region31: #{tpu_custom_call.1} parent=23 // pred_region
          %p477 = scmp.lt.s32.totalorder %s32, 1
          %s478 = scalar_select %p477, %s32, 1
          %s479 = smul.addr %s478, 4
          %s480 = smul.addr %s479, 4
          %s481 = scalar_lea.vmem %s1, %s480
        $region32: #{tpu_custom_call.1} parent=23 // pred_fallthru
          _
        // Predicated region
        $region33: #{tpu_custom_call.1} parent=23 // pred_check
          %p482 = pneg %p108
        $region34: #{tpu_custom_call.1} parent=23 // pred_check_branch
          %484 = sbr.rel (%p482) target = $region36
        $region35: #{tpu_custom_call.1} parent=23 // pred_region
          %p485 = scmp.lt.s32.totalorder %s32, 1
          %s486 = scalar_select %p485, %s32, 1
          %s487 = scalar_lea.vmem %s2, %s486
        $region36: #{tpu_custom_call.1} parent=23 // pred_fallthru
          _
        // Predicated region
        $region37: #{tpu_custom_call.1} parent=23 // pred_check
          %p488 = pneg %p134
        $region38: #{tpu_custom_call.1} parent=23 // pred_check_branch
          %490 = sbr.rel (%p488) target = $region40
        $region39: #{tpu_custom_call.1} parent=23 // pred_region
          %p491 = scmp.lt.s32.totalorder %s32, 1
          %s492 = scalar_select %p491, %s32, 1
          %s493 = smul.addr %s492, 4
          %s494 = smul.addr %s493, 4
          %s495 = scalar_lea.vmem %s3, %s494
        $region40: #{tpu_custom_call.1} parent=23 // pred_fallthru
          _
        // Predicated region
        $region41: #{tpu_custom_call.1} parent=23 // pred_check
          %p496 = pneg %p160
        $region42: #{tpu_custom_call.1} parent=23 // pred_check_branch
          %498 = sbr.rel (%p496) target = $region44
        $region43: #{tpu_custom_call.1} parent=23 // pred_region
          %p499 = scmp.lt.s32.totalorder %s32, 1
          %s500 = scalar_select %p499, %s32, 1
          %s501 = scalar_lea.vmem %s4, %s500
        $region44: #{tpu_custom_call.1} parent=23 // pred_fallthru
          _
        // Predicated region
        $region45: #{tpu_custom_call.1} parent=23 // pred_check
          %p502 = pneg %p186
        $region46: #{tpu_custom_call.1} parent=23 // pred_check_branch
          %504 = sbr.rel (%p502) target = $region48
        $region47: #{tpu_custom_call.1} parent=23 // pred_region
          %p505 = scmp.lt.s32.totalorder %s32, 1
          %s506 = scalar_select %p505, %s32, 1
          %s507 = scalar_lea.vmem %s5, %s506
        $region48: #{tpu_custom_call.1} parent=23 // pred_fallthru
          _
        // Predicated region
        $region49: #{tpu_custom_call.1} parent=23 // pred_check
          %p508 = pneg %p212
        $region50: #{tpu_custom_call.1} parent=23 // pred_check_branch
          %510 = sbr.rel (%p508) target = $region52
        $region51: #{tpu_custom_call.1} parent=23 // pred_region
          %p511 = scmp.lt.s32.totalorder %s32, 1
          %s512 = scalar_select %p511, %s32, 1
          %s513 = scalar_lea.vmem %s6, %s512
        $region52: #{tpu_custom_call.1} parent=23 // pred_fallthru
          _
        // Predicated region
        $region53: #{tpu_custom_call.1} parent=23 // pred_check
          %p514 = pneg %p238
        $region54: #{tpu_custom_call.1} parent=23 // pred_check_branch
          %516 = sbr.rel (%p514) target = $region56
        $region55: #{tpu_custom_call.1} parent=23 // pred_region
          %p517 = scmp.lt.s32.totalorder %s32, 1
          %s518 = scalar_select %p517, %s32, 1
          %s519 = smul.addr %s518, 64
          %s520 = smul.addr %s519, 4
          %s521 = scalar_lea.vmem %s7, %s520
        $region56: #{tpu_custom_call.1} parent=23 // pred_fallthru
          _
        // Predicated region
        $region57: #{tpu_custom_call.1} parent=23 // pred_check
          %p522 = pneg %p264
        $region58: #{tpu_custom_call.1} parent=23 // pred_check_branch
          %524 = sbr.rel (%p522) target = $region60
        $region59: #{tpu_custom_call.1} parent=23 // pred_region
          %p525 = scmp.lt.s32.totalorder %s32, 1
          %s526 = scalar_select %p525, %s32, 1
          %s527 = smul.addr %s526, 16
          %s528 = scalar_lea.vmem %s8, %s527
        $region60: #{tpu_custom_call.1} parent=23 // pred_fallthru
          _
        // Predicated region
        $region61: #{tpu_custom_call.1} parent=23 // pred_check
          %p529 = pneg %p290
        $region62: #{tpu_custom_call.1} parent=23 // pred_check_branch
          %531 = sbr.rel (%p529) target = $region64
        $region63: #{tpu_custom_call.1} parent=23 // pred_region
          %p532 = scmp.lt.s32.totalorder %s32, 1
          %s533 = scalar_select %p532, %s32, 1
          %s534 = smul.addr %s533, 256
          %s535 = smul.addr %s534, 4
          %s536 = scalar_lea.vmem %s9, %s535
        $region64: #{tpu_custom_call.1} parent=23 // pred_fallthru
          _
        // Predicated region
        $region65: #{tpu_custom_call.1} parent=23 // pred_check
          %p537 = pneg %p316
        $region66: #{tpu_custom_call.1} parent=23 // pred_check_branch
          %539 = sbr.rel (%p537) target = $region68
        $region67: #{tpu_custom_call.1} parent=23 // pred_region
          %p540 = scmp.lt.s32.totalorder %s32, 1
          %s541 = scalar_select %p540, %s32, 1
          %s542 = scalar_lea.vmem %s10, %s541
        $region68: #{tpu_custom_call.1} parent=23 // pred_fallthru
          _
        // Predicated region
        $region69: #{tpu_custom_call.1} parent=23 // pred_check
          %p543 = pneg %p342
        $region70: #{tpu_custom_call.1} parent=23 // pred_check_branch
          %545 = sbr.rel (%p543) target = $region72
        $region71: #{tpu_custom_call.1} parent=23 // pred_region
          %p546 = scmp.lt.s32.totalorder %s32, 1
          %s547 = scalar_select %p546, %s32, 1
          %s548 = scalar_lea.vmem %s11, %s547
        $region72: #{tpu_custom_call.1} parent=23 // pred_fallthru
          _
        // Predicated region
        $region73: #{tpu_custom_call.1} parent=23 // pred_check
          %p549 = pneg %p368
        $region74: #{tpu_custom_call.1} parent=23 // pred_check_branch
          %551 = sbr.rel (%p549) target = $region76
        $region75: #{tpu_custom_call.1} parent=23 // pred_region
          %p552 = scmp.lt.s32.totalorder %s32, 1
          %s553 = scalar_select %p552, %s32, 1
          %s554 = scalar_lea.vmem %s12, %s553
        $region76: #{tpu_custom_call.1} parent=23 // pred_fallthru
          _
      $region24: #{tpu_custom_call.1} parent=5 // pred_fallthru
        _
      %p555 = scmp.le.s32.totalorder 1, %s24
      %p556 = scmp.lt.s32.totalorder %s24, 5
      %p557 = pnand %p555, %p556
      %p558 = pneg %p557
      // Predicated region
      $region77: #{tpu_custom_call.1} parent=5 // pred_check
        _
      $region78: #{tpu_custom_call.1} parent=5 // pred_check_branch
        %560 = sbr.rel (%p557) target = $region80
      $region79: #{tpu_custom_call.1} parent=5 // pred_region
        %s561 = ssub.s32 %s24, 1
        %p562 = scmp.lt.s32.totalorder %s33, 1
        %s563 = scalar_select %p562, %s33, 1
        %s564 = smul.addr %s563, 8
        %s565 = scalar_lea.vmem %s0, %s564
        %p566 = pneg %p62
        %p567 = pneg %p59
        %p568 = scmp.lt.s32.totalorder %s34, 1
        %s569 = scalar_select %p568, %s34, 1
        %s570 = smul.addr %s569, 4
        %s571 = smul.addr %s570, 4
        %s572 = scalar_lea.vmem %s1, %s571
        %p573 = pneg %p88
        %p574 = pneg %p85
        %p575 = scmp.lt.s32.totalorder %s34, 1
        %s576 = scalar_select %p575, %s34, 1
        %s577 = scalar_lea.vmem %s2, %s576
        %p578 = pneg %p114
        %p579 = pneg %p111
        %p580 = scmp.lt.s32.totalorder %s34, 1
        %s581 = scalar_select %p580, %s34, 1
        %s582 = smul.addr %s581, 4
        %s583 = smul.addr %s582, 4
        %s584 = scalar_lea.vmem %s3, %s583
        %p585 = pneg %p140
        %p586 = pneg %p137
        %p587 = scmp.lt.s32.totalorder %s34, 1
        %s588 = scalar_select %p587, %s34, 1
        %s589 = scalar_lea.vmem %s4, %s588
        %p590 = pneg %p166
        %p591 = pneg %p163
        %p592 = scmp.lt.s32.totalorder %s34, 1
        %s593 = scalar_select %p592, %s34, 1
        %s594 = scalar_lea.vmem %s5, %s593
        %p595 = pneg %p192
        %p596 = pneg %p189
        %p597 = scmp.lt.s32.totalorder %s34, 1
        %s598 = scalar_select %p597, %s34, 1
        %s599 = scalar_lea.vmem %s6, %s598
        %p600 = pneg %p218
        %p601 = pneg %p215
        %p602 = scmp.lt.s32.totalorder %s34, 1
        %s603 = scalar_select %p602, %s34, 1
        %s604 = smul.addr %s603, 64
        %s605 = smul.addr %s604, 4
        %s606 = scalar_lea.vmem %s7, %s605
        %p607 = pneg %p244
        %p608 = pneg %p241
        %p609 = scmp.lt.s32.totalorder %s34, 1
        %s610 = scalar_select %p609, %s34, 1
        %s611 = smul.addr %s610, 16
        %s612 = scalar_lea.vmem %s8, %s611
        %p613 = pneg %p270
        %p614 = pneg %p267
        %p615 = scmp.lt.s32.totalorder %s34, 1
        %s616 = scalar_select %p615, %s34, 1
        %s617 = smul.addr %s616, 256
        %s618 = smul.addr %s617, 4
        %s619 = scalar_lea.vmem %s9, %s618
        %p620 = pneg %p296
        %p621 = pneg %p293
        %p622 = scmp.lt.s32.totalorder %s34, 1
        %s623 = scalar_select %p622, %s34, 1
        %s624 = scalar_lea.vmem %s10, %s623
        %p625 = pneg %p322
        %p626 = pneg %p319
        %p627 = scmp.lt.s32.totalorder %s34, 1
        %s628 = scalar_select %p627, %s34, 1
        %s629 = scalar_lea.vmem %s11, %s628
        %p630 = pneg %p348
        %p631 = pneg %p345
        %p632 = scmp.lt.s32.totalorder %s34, 1
        %s633 = scalar_select %p632, %s34, 1
        %s634 = scalar_lea.vmem %s12, %s633
        %p635 = pneg %p374
        %p636 = pneg %p371
        %p637 = pneg %p395
        %p638 = pneg %p392
        %p639 = pneg %p416
        %p640 = pneg %p413
        %p641 = pneg %p442
        %p642 = pneg %p439
        %s643 = sand.u32 %s429, 1
        %s644 = scalar_lea.sflag [#allocation4], %s643
        %s645 = sand.u32 %s429, 1
        %s646 = smul.addr %s645, 8
        %s647 = scalar_lea.vmem [#allocation3], %s646
        %p648 = scmp.lt.s32.totalorder %s33, 1
        %s649 = scalar_select %p648, %s33, 1
        %s650 = smul.addr %s649, 8
        %s651 = scalar_lea.vmem %s0, %s650
        %p652 = scmp.lt.s32.totalorder %s34, 1
        %s653 = scalar_select %p652, %s34, 1
        %s654 = smul.addr %s653, 4
        %s655 = smul.addr %s654, 4
        %s656 = scalar_lea.vmem %s1, %s655
        %p657 = scmp.lt.s32.totalorder %s34, 1
        %s658 = scalar_select %p657, %s34, 1
        %s659 = scalar_lea.vmem %s2, %s658
        %p660 = scmp.lt.s32.totalorder %s34, 1
        %s661 = scalar_select %p660, %s34, 1
        %s662 = smul.addr %s661, 4
        %s663 = smul.addr %s662, 4
        %s664 = scalar_lea.vmem %s3, %s663
        %p665 = scmp.lt.s32.totalorder %s34, 1
        %s666 = scalar_select %p665, %s34, 1
        %s667 = scalar_lea.vmem %s4, %s666
        %p668 = scmp.lt.s32.totalorder %s34, 1
        %s669 = scalar_select %p668, %s34, 1
        %s670 = scalar_lea.vmem %s5, %s669
        %p671 = scmp.lt.s32.totalorder %s34, 1
        %s672 = scalar_select %p671, %s34, 1
        %s673 = scalar_lea.vmem %s6, %s672
        %p674 = scmp.lt.s32.totalorder %s34, 1
        %s675 = scalar_select %p674, %s34, 1
        %s676 = smul.addr %s675, 64
        %s677 = smul.addr %s676, 4
        %s678 = scalar_lea.vmem %s7, %s677
        %p679 = scmp.lt.s32.totalorder %s34, 1
        %s680 = scalar_select %p679, %s34, 1
        %s681 = smul.addr %s680, 16
        %s682 = scalar_lea.vmem %s8, %s681
        %p683 = scmp.lt.s32.totalorder %s34, 1
        %s684 = scalar_select %p683, %s34, 1
        %s685 = smul.addr %s684, 256
        %s686 = smul.addr %s685, 4
        %s687 = scalar_lea.vmem %s9, %s686
        %p688 = scmp.lt.s32.totalorder %s34, 1
        %s689 = scalar_select %p688, %s34, 1
        %s690 = scalar_lea.vmem %s10, %s689
        %p691 = scmp.lt.s32.totalorder %s34, 1
        %s692 = scalar_select %p691, %s34, 1
        %s693 = scalar_lea.vmem %s11, %s692
        %p694 = scmp.lt.s32.totalorder %s34, 1
        %s695 = scalar_select %p694, %s34, 1
        %s696 = scalar_lea.vmem %s12, %s695
        %p698 = scmp.eq.s32.totalorder %s34, 0
        // Predicated region
        $region81: #{tpu_custom_call.1} parent=79 // pred_check
          %p699 = pneg %p698
        $region82: #{tpu_custom_call.1} parent=79 // pred_check_branch
          %701 = sbr.rel (%p699) target = $region84
        $region83: #{tpu_custom_call.1} parent=79 // pred_region
          %v702 = vld [vmem:[%s651] sm:$0xff]
          %vm703 = vcmask 261120
          %704 = vst.msk [vmem:[#allocation2] sm:$0xff] %vm703, %v702
        $region84: #{tpu_custom_call.1} parent=79 // pred_fallthru
          _
        %v705 = vld [vmem:[#allocation2] sm:$0xff]
        %v706 = vpack.c.bf16 %v705, %v705
        %v707 = vld [vmem:[%s656] sm:$0xf]
        %v708 = vld [vmem:[%s656 + $0x4] sm:$0xf]
        %v709 = vld [vmem:[%s656 + $0x8] sm:$0xf]
        %v710 = vld [vmem:[%s656 + $0xc] sm:$0xf]
        %v711 = vld [vmem:[%s659] sm:$0x1]
        %v713 = vlaneseq
        %v714 = vshrl.u32 %v713, 7
        %v715 = vsub.s32 0, %v714
        %v716 = vrot.slane %v711, %v715
        %v722 = vunpack.c.l.b16 %v707
        %v723 = vunpack.c.l.b16 %v708
        %v724 = vunpack.c.l.b16 %v709
        %v725 = vunpack.c.l.b16 %v710
        %v726 = vpack.c.b16 %v723, %v722
        %v727 = vpack.c.b16 %v725, %v724
        %vm730 = vcmask 261120
        %v732 = vsel %vm730, %v706, 0
        %734 = vmatprep.subr.bf16.mxu0 0
        %735 = vmatpush1.bf16.msra.mxu0 0
        %736 = vmatprep.subr.bf16.mxu0 0
        %737 = vmatpush1.bf16.msra.mxu0 0
        %738 = vmatprep.subr.bf16.mxu0 0
        %739 = vmatpush1.bf16.msra.mxu0 0
        %740 = vmatprep.subr.bf16.mxu0 0
        %741 = vmatpush1.bf16.msra.mxu0 0
        %742 = vmatprep.subr.bf16.mxu0 0
        %743 = vmatpush1.bf16.msra.mxu0 0
        %744 = vmatprep.subr.bf16.mxu0 0
        %745 = vmatpush1.bf16.msra.mxu0 0
        %746 = vmatprep.subr.bf16.mxu0 0
        %747 = vmatpush1.bf16.msra.mxu0 %v727
        %748 = vmatprep.subr.bf16.mxu0 0
        %749 = vmatpush1.bf16.msra.mxu0 %v726
        %750 = vmatprep.subr.bf16.mxu0 0
        %751 = vmatpush2.bf16.msra.mxu0 0
        %752 = vmatprep.subr.bf16.mxu0 0
        %753 = vmatpush2.bf16.msra.mxu0 0
        %754 = vmatprep.subr.bf16.mxu0 0
        %755 = vmatpush2.bf16.msra.mxu0 0
        %756 = vmatprep.subr.bf16.mxu0 0
        %757 = vmatpush2.bf16.msra.mxu0 0
        %758 = vmatprep.subr.bf16.mxu0 0
        %759 = vmatpush2.bf16.msra.mxu0 0
        %760 = vmatprep.subr.bf16.mxu0 0
        %761 = vmatpush2.bf16.msra.mxu0 0
        %762 = vmatprep.subr.bf16.mxu0 0
        %763 = vmatpush2.bf16.msra.mxu0 0
        %764 = vmatprep.subr.bf16.mxu0 0
        %765 = vmatpush2.bf16.msra.mxu0 0
        %766 = vmatprep.mubr.bf16.mxu0 0
        %767 = vmatmul.mubr.bf16.gmra.mxu0 %v732
        %v768 = vpop.f32.mrf.mxu0
        %v769 = vadd.f32 %v716, %v768
        %v770 = vpop.f32.mrf.mxu0
        %v771 = vpop.f32.mrf.mxu0
        %v772 = vpop.f32.mrf.mxu0
        %773 = vdwg.mxu0
        %775 = vrot.lane.b32.xlu0 %v769, 120
        %v776 = vpop.permute.xlu0 %775
        %777 = vrot.lane.b32.xlu0 %v769, 112
        %v778 = vpop.permute.xlu0 %777
        %779 = vrot.lane.b32.xlu0 %v769, 104
        %v780 = vpop.permute.xlu0 %779
        %781 = vrot.lane.b32.xlu0 %v769, 96
        %v782 = vpop.permute.xlu0 %781
        %vm783 = vcmask 64512
        %v784 = vsel %vm783, %v769, 0
        %v786 = vsel %vm783, %v782, 0
        %788 = vmatprep.subr.mxu0 0.0
        %789 = vmatpush1.xpose.msra.mxu0 0.0
        %790 = vmatprep.subr.mxu0 0.0
        %791 = vmatpush1.xpose.msra.mxu0 0.0
        %792 = vmatprep.subr.mxu0 0.0
        %793 = vmatpush1.xpose.msra.mxu0 0.0
        %794 = vmatprep.subr.mxu0 0.0
        %795 = vmatpush1.xpose.msra.mxu0 0.0
        %796 = vmatprep.subr.mxu0 0.0
        %797 = vmatpush1.xpose.msra.mxu0 0.0
        %798 = vmatprep.subr.mxu0 0.0
        %799 = vmatpush1.xpose.msra.mxu0 0.0
        %800 = vmatprep.subr.mxu0 0.0
        %801 = vmatpush1.xpose.msra.mxu0 0.0
        %802 = vmatprep.subr.mxu0 0.0
        %803 = vmatpush1.xpose.msra.mxu0 0.0
        %804 = vmatprep.subr.mxu0 0.0
        %805 = vmatpush1.xpose.msra.mxu0 0.0
        %806 = vmatprep.subr.mxu0 0.0
        %807 = vmatpush1.xpose.msra.mxu0 0.0
        %808 = vmatprep.subr.mxu0 0.0
        %809 = vmatpush1.xpose.msra.mxu0 0.0
        %810 = vmatprep.subr.mxu0 0.0
        %811 = vmatpush1.xpose.msra.mxu0 0.0
        %812 = vmatprep.subr.mxu0 0.0
        %813 = vmatpush1.xpose.msra.mxu0 0.0
        %814 = vmatprep.subr.mxu0 0.0
        %815 = vmatpush1.xpose.msra.mxu0 0.0
        %816 = vmatprep.subr.mxu0 0.0
        %817 = vmatpush1.xpose.msra.mxu0 0.0
        %818 = vmatprep.subr.mxu0 0.0
        %819 = vmatpush1.xpose.msra.mxu0 %v786
        %820 = vmatprep.subr.mxu0 0.0
        %821 = vmatpush2.xpose.msra.mxu0 0.0
        %822 = vmatprep.subr.mxu0 0.0
        %823 = vmatpush2.xpose.msra.mxu0 0.0
        %824 = vmatprep.subr.mxu0 0.0
        %825 = vmatpush2.xpose.msra.mxu0 0.0
        %826 = vmatprep.subr.mxu0 0.0
        %827 = vmatpush2.xpose.msra.mxu0 0.0
        %828 = vmatprep.subr.mxu0 0.0
        %829 = vmatpush2.xpose.msra.mxu0 0.0
        %830 = vmatprep.subr.mxu0 0.0
        %831 = vmatpush2.xpose.msra.mxu0 0.0
        %832 = vmatprep.subr.mxu0 0.0
        %833 = vmatpush2.xpose.msra.mxu0 0.0
        %834 = vmatprep.subr.mxu0 0.0
        %835 = vmatpush2.xpose.msra.mxu0 0.0
        %836 = vmatprep.subr.mxu0 0.0
        %837 = vmatpush2.xpose.msra.mxu0 0.0
        %838 = vmatprep.subr.mxu0 0.0
        %839 = vmatpush2.xpose.msra.mxu0 0.0
        %840 = vmatprep.subr.mxu0 0.0
        %841 = vmatpush2.xpose.msra.mxu0 0.0
        %842 = vmatprep.subr.mxu0 0.0
        %843 = vmatpush2.xpose.msra.mxu0 0.0
        %844 = vmatprep.subr.mxu0 0.0
        %845 = vmatpush2.xpose.msra.mxu0 0.0
        %846 = vmatprep.subr.mxu0 0.0
        %847 = vmatpush2.xpose.msra.mxu0 0.0
        %848 = vmatprep.subr.mxu0 0.0
        %849 = vmatpush2.xpose.msra.mxu0 0.0
        %850 = vmatprep.subr.mxu0 0.0
        %851 = vmatpush2.xpose.msra.mxu0 0.0
        %852 = vmatprep.mubr.f32.mxu0 0.0
        %853 = vmatmul.mubr.f32.gmra.mxu0 %v784
        %v854 = vpop.f32.mrf.mxu0
        %v855 = vadd.f32 0.0, %v854
        %v856 = vpop.f32.mrf.mxu0
        %857 = vdwg.mxu0
        %858 = vrot.lane.b32.xlu0 %v776, 96
        %v859 = vpop.permute.xlu0 %858
        %v860 = vsel %vm783, %v776, 0
        %v862 = vsel %vm783, %v859, 0
        %864 = vmatprep.subr.mxu0 0.0
        %865 = vmatpush1.xpose.msra.mxu0 0.0
        %866 = vmatprep.subr.mxu0 0.0
        %867 = vmatpush1.xpose.msra.mxu0 0.0
        %868 = vmatprep.subr.mxu0 0.0
        %869 = vmatpush1.xpose.msra.mxu0 0.0
        %870 = vmatprep.subr.mxu0 0.0
        %871 = vmatpush1.xpose.msra.mxu0 0.0
        %872 = vmatprep.subr.mxu0 0.0
        %873 = vmatpush1.xpose.msra.mxu0 0.0
        %874 = vmatprep.subr.mxu0 0.0
        %875 = vmatpush1.xpose.msra.mxu0 0.0
        %876 = vmatprep.subr.mxu0 0.0
        %877 = vmatpush1.xpose.msra.mxu0 0.0
        %878 = vmatprep.subr.mxu0 0.0
        %879 = vmatpush1.xpose.msra.mxu0 0.0
        %880 = vmatprep.subr.mxu0 0.0
        %881 = vmatpush1.xpose.msra.mxu0 0.0
        %882 = vmatprep.subr.mxu0 0.0
        %883 = vmatpush1.xpose.msra.mxu0 0.0
        %884 = vmatprep.subr.mxu0 0.0
        %885 = vmatpush1.xpose.msra.mxu0 0.0
        %886 = vmatprep.subr.mxu0 0.0
        %887 = vmatpush1.xpose.msra.mxu0 0.0
        %888 = vmatprep.subr.mxu0 0.0
        %889 = vmatpush1.xpose.msra.mxu0 0.0
        %890 = vmatprep.subr.mxu0 0.0
        %891 = vmatpush1.xpose.msra.mxu0 0.0
        %892 = vmatprep.subr.mxu0 0.0
        %893 = vmatpush1.xpose.msra.mxu0 0.0
        %894 = vmatprep.subr.mxu0 0.0
        %895 = vmatpush1.xpose.msra.mxu0 %v862
        %896 = vmatprep.subr.mxu0 0.0
        %897 = vmatpush2.xpose.msra.mxu0 0.0
        %898 = vmatprep.subr.mxu0 0.0
        %899 = vmatpush2.xpose.msra.mxu0 0.0
        %900 = vmatprep.subr.mxu0 0.0
        %901 = vmatpush2.xpose.msra.mxu0 0.0
        %902 = vmatprep.subr.mxu0 0.0
        %903 = vmatpush2.xpose.msra.mxu0 0.0
        %904 = vmatprep.subr.mxu0 0.0
        %905 = vmatpush2.xpose.msra.mxu0 0.0
        %906 = vmatprep.subr.mxu0 0.0
        %907 = vmatpush2.xpose.msra.mxu0 0.0
        %908 = vmatprep.subr.mxu0 0.0
        %909 = vmatpush2.xpose.msra.mxu0 0.0
        %910 = vmatprep.subr.mxu0 0.0
        %911 = vmatpush2.xpose.msra.mxu0 0.0
        %912 = vmatprep.subr.mxu0 0.0
        %913 = vmatpush2.xpose.msra.mxu0 0.0
        %914 = vmatprep.subr.mxu0 0.0
        %915 = vmatpush2.xpose.msra.mxu0 0.0
        %916 = vmatprep.subr.mxu0 0.0
        %917 = vmatpush2.xpose.msra.mxu0 0.0
        %918 = vmatprep.subr.mxu0 0.0
        %919 = vmatpush2.xpose.msra.mxu0 0.0
        %920 = vmatprep.subr.mxu0 0.0
        %921 = vmatpush2.xpose.msra.mxu0 0.0
        %922 = vmatprep.subr.mxu0 0.0
        %923 = vmatpush2.xpose.msra.mxu0 0.0
        %924 = vmatprep.subr.mxu0 0.0
        %925 = vmatpush2.xpose.msra.mxu0 0.0
        %926 = vmatprep.subr.mxu0 0.0
        %927 = vmatpush2.xpose.msra.mxu0 0.0
        %928 = vmatprep.mubr.f32.mxu0 0.0
        %929 = vmatmul.mubr.f32.gmra.mxu0 %v860
        %v930 = vpop.f32.mrf.mxu0
        %v931 = vadd.f32 0.0, %v930
        %v932 = vpop.f32.mrf.mxu0
        %933 = vdwg.mxu0
        %934 = vrot.lane.b32.xlu0 %v778, 96
        %v935 = vpop.permute.xlu0 %934
        %v936 = vsel %vm783, %v778, 0
        %v938 = vsel %vm783, %v935, 0
        %940 = vmatprep.subr.mxu0 0.0
        %941 = vmatpush1.xpose.msra.mxu0 0.0
        %942 = vmatprep.subr.mxu0 0.0
        %943 = vmatpush1.xpose.msra.mxu0 0.0
        %944 = vmatprep.subr.mxu0 0.0
        %945 = vmatpush1.xpose.msra.mxu0 0.0
        %946 = vmatprep.subr.mxu0 0.0
        %947 = vmatpush1.xpose.msra.mxu0 0.0
        %948 = vmatprep.subr.mxu0 0.0
        %949 = vmatpush1.xpose.msra.mxu0 0.0
        %950 = vmatprep.subr.mxu0 0.0
        %951 = vmatpush1.xpose.msra.mxu0 0.0
        %952 = vmatprep.subr.mxu0 0.0
        %953 = vmatpush1.xpose.msra.mxu0 0.0
        %954 = vmatprep.subr.mxu0 0.0
        %955 = vmatpush1.xpose.msra.mxu0 0.0
        %956 = vmatprep.subr.mxu0 0.0
        %957 = vmatpush1.xpose.msra.mxu0 0.0
        %958 = vmatprep.subr.mxu0 0.0
        %959 = vmatpush1.xpose.msra.mxu0 0.0
        %960 = vmatprep.subr.mxu0 0.0
        %961 = vmatpush1.xpose.msra.mxu0 0.0
        %962 = vmatprep.subr.mxu0 0.0
        %963 = vmatpush1.xpose.msra.mxu0 0.0
        %964 = vmatprep.subr.mxu0 0.0
        %965 = vmatpush1.xpose.msra.mxu0 0.0
        %966 = vmatprep.subr.mxu0 0.0
        %967 = vmatpush1.xpose.msra.mxu0 0.0
        %968 = vmatprep.subr.mxu0 0.0
        %969 = vmatpush1.xpose.msra.mxu0 0.0
        %970 = vmatprep.subr.mxu0 0.0
        %971 = vmatpush1.xpose.msra.mxu0 %v938
        %972 = vmatprep.subr.mxu0 0.0
        %973 = vmatpush2.xpose.msra.mxu0 0.0
        %974 = vmatprep.subr.mxu0 0.0
        %975 = vmatpush2.xpose.msra.mxu0 0.0
        %976 = vmatprep.subr.mxu0 0.0
        %977 = vmatpush2.xpose.msra.mxu0 0.0
        %978 = vmatprep.subr.mxu0 0.0
        %979 = vmatpush2.xpose.msra.mxu0 0.0
        %980 = vmatprep.subr.mxu0 0.0
        %981 = vmatpush2.xpose.msra.mxu0 0.0
        %982 = vmatprep.subr.mxu0 0.0
        %983 = vmatpush2.xpose.msra.mxu0 0.0
        %984 = vmatprep.subr.mxu0 0.0
        %985 = vmatpush2.xpose.msra.mxu0 0.0
        %986 = vmatprep.subr.mxu0 0.0
        %987 = vmatpush2.xpose.msra.mxu0 0.0
        %988 = vmatprep.subr.mxu0 0.0
        %989 = vmatpush2.xpose.msra.mxu0 0.0
        %990 = vmatprep.subr.mxu0 0.0
        %991 = vmatpush2.xpose.msra.mxu0 0.0
        %992 = vmatprep.subr.mxu0 0.0
        %993 = vmatpush2.xpose.msra.mxu0 0.0
        %994 = vmatprep.subr.mxu0 0.0
        %995 = vmatpush2.xpose.msra.mxu0 0.0
        %996 = vmatprep.subr.mxu0 0.0
        %997 = vmatpush2.xpose.msra.mxu0 0.0
        %998 = vmatprep.subr.mxu0 0.0
        %999 = vmatpush2.xpose.msra.mxu0 0.0
        %1000 = vmatprep.subr.mxu0 0.0
        %1001 = vmatpush2.xpose.msra.mxu0 0.0
        %1002 = vmatprep.subr.mxu0 0.0
        %1003 = vmatpush2.xpose.msra.mxu0 0.0
        %1004 = vmatprep.mubr.f32.mxu0 0.0
        %1005 = vmatmul.mubr.f32.gmra.mxu0 %v936
        %v1006 = vpop.f32.mrf.mxu0
        %v1007 = vadd.f32 0.0, %v1006
        %v1008 = vpop.f32.mrf.mxu0
        %1009 = vdwg.mxu0
        %1010 = vrot.lane.b32.xlu0 %v780, 96
        %v1011 = vpop.permute.xlu0 %1010
        %v1012 = vsel %vm783, %v780, 0
        %v1014 = vsel %vm783, %v1011, 0
        %1016 = vmatprep.subr.mxu0 0.0
        %1017 = vmatpush1.xpose.msra.mxu0 0.0
        %1018 = vmatprep.subr.mxu0 0.0
        %1019 = vmatpush1.xpose.msra.mxu0 0.0
        %1020 = vmatprep.subr.mxu0 0.0
        %1021 = vmatpush1.xpose.msra.mxu0 0.0
        %1022 = vmatprep.subr.mxu0 0.0
        %1023 = vmatpush1.xpose.msra.mxu0 0.0
        %1024 = vmatprep.subr.mxu0 0.0
        %1025 = vmatpush1.xpose.msra.mxu0 0.0
        %1026 = vmatprep.subr.mxu0 0.0
        %1027 = vmatpush1.xpose.msra.mxu0 0.0
        %1028 = vmatprep.subr.mxu0 0.0
        %1029 = vmatpush1.xpose.msra.mxu0 0.0
        %1030 = vmatprep.subr.mxu0 0.0
        %1031 = vmatpush1.xpose.msra.mxu0 0.0
        %1032 = vmatprep.subr.mxu0 0.0
        %1033 = vmatpush1.xpose.msra.mxu0 0.0
        %1034 = vmatprep.subr.mxu0 0.0
        %1035 = vmatpush1.xpose.msra.mxu0 0.0
        %1036 = vmatprep.subr.mxu0 0.0
        %1037 = vmatpush1.xpose.msra.mxu0 0.0
        %1038 = vmatprep.subr.mxu0 0.0
        %1039 = vmatpush1.xpose.msra.mxu0 0.0
        %1040 = vmatprep.subr.mxu0 0.0
        %1041 = vmatpush1.xpose.msra.mxu0 0.0
        %1042 = vmatprep.subr.mxu0 0.0
        %1043 = vmatpush1.xpose.msra.mxu0 0.0
        %1044 = vmatprep.subr.mxu0 0.0
        %1045 = vmatpush1.xpose.msra.mxu0 0.0
        %1046 = vmatprep.subr.mxu0 0.0
        %1047 = vmatpush1.xpose.msra.mxu0 %v1014
        %1048 = vmatprep.subr.mxu0 0.0
        %1049 = vmatpush2.xpose.msra.mxu0 0.0
        %1050 = vmatprep.subr.mxu0 0.0
        %1051 = vmatpush2.xpose.msra.mxu0 0.0
        %1052 = vmatprep.subr.mxu0 0.0
        %1053 = vmatpush2.xpose.msra.mxu0 0.0
        %1054 = vmatprep.subr.mxu0 0.0
        %1055 = vmatpush2.xpose.msra.mxu0 0.0
        %1056 = vmatprep.subr.mxu0 0.0
        %1057 = vmatpush2.xpose.msra.mxu0 0.0
        %1058 = vmatprep.subr.mxu0 0.0
        %1059 = vmatpush2.xpose.msra.mxu0 0.0
        %1060 = vmatprep.subr.mxu0 0.0
        %1061 = vmatpush2.xpose.msra.mxu0 0.0
        %1062 = vmatprep.subr.mxu0 0.0
        %1063 = vmatpush2.xpose.msra.mxu0 0.0
        %1064 = vmatprep.subr.mxu0 0.0
        %1065 = vmatpush2.xpose.msra.mxu0 0.0
        %1066 = vmatprep.subr.mxu0 0.0
        %1067 = vmatpush2.xpose.msra.mxu0 0.0
        %1068 = vmatprep.subr.mxu0 0.0
        %1069 = vmatpush2.xpose.msra.mxu0 0.0
        %1070 = vmatprep.subr.mxu0 0.0
        %1071 = vmatpush2.xpose.msra.mxu0 0.0
        %1072 = vmatprep.subr.mxu0 0.0
        %1073 = vmatpush2.xpose.msra.mxu0 0.0
        %1074 = vmatprep.subr.mxu0 0.0
        %1075 = vmatpush2.xpose.msra.mxu0 0.0
        %1076 = vmatprep.subr.mxu0 0.0
        %1077 = vmatpush2.xpose.msra.mxu0 0.0
        %1078 = vmatprep.subr.mxu0 0.0
        %1079 = vmatpush2.xpose.msra.mxu0 0.0
        %1080 = vmatprep.mubr.f32.mxu0 0.0
        %1081 = vmatmul.mubr.f32.gmra.mxu0 %v1012
        %v1082 = vpop.f32.mrf.mxu0
        %v1083 = vadd.f32 0.0, %v1082
        %v1084 = vpop.f32.mrf.mxu0
        %1085 = vdwg.mxu0
        %v1086 = vmul.f32 %v855, 0.35355338
        %v1087 = vmul.f32 %v931, 0.35355338
        %v1088 = vmul.f32 %v1007, 0.35355338
        %v1089 = vmul.f32 %v1083, 0.35355338
        %v1090 = vsel %vm783, %v1086, -inf
        %1091 = vmax.xlane.f32.xlu0 %v1090
        %v1092 = vpop.xlane.xlu0 %1091
        %v1093 = vsel %vm783, %v1087, -inf
        %1094 = vmax.xlane.f32.xlu0 %v1093
        %v1095 = vpop.xlane.xlu0 %1094
        %v1096 = vsel %vm783, %v1088, -inf
        %1097 = vmax.xlane.f32.xlu0 %v1096
        %v1098 = vpop.xlane.xlu0 %1097
        %v1099 = vsel %vm783, %v1089, -inf
        %1100 = vmax.xlane.f32.xlu0 %v1099
        %v1101 = vpop.xlane.xlu0 %1100
        %v1102 = vsub.f32 %v1086, %v1092
        %v1103 = vsub.f32 %v1087, %v1095
        %v1104 = vsub.f32 %v1088, %v1098
        %v1105 = vsub.f32 %v1089, %v1101
        %v1106 = vmul.f32 %v1102, 1.442695
        %v1107 = vpow.pop %v1106
        %v1108 = vmul.f32 %v1103, 1.442695
        %v1109 = vpow.pop %v1108
        %v1110 = vmul.f32 %v1104, 1.442695
        %v1111 = vpow.pop %v1110
        %v1112 = vmul.f32 %v1105, 1.442695
        %v1113 = vpow.pop %v1112
        %v1114 = vsel %vm783, %v1107, 0.0
        %1115 = vadd.xlane.f32.xlu0 %v1114
        %v1116 = vpop.xlane.xlu0 %1115
        %v1117 = vsel %vm783, %v1109, 0.0
        %1118 = vadd.xlane.f32.xlu0 %v1117
        %v1119 = vpop.xlane.xlu0 %1118
        %v1120 = vsel %vm783, %v1111, 0.0
        %1121 = vadd.xlane.f32.xlu0 %v1120
        %v1122 = vpop.xlane.xlu0 %1121
        %v1123 = vsel %vm783, %v1113, 0.0
        %1124 = vadd.xlane.f32.xlu0 %v1123
        %v1125 = vpop.xlane.xlu0 %1124
        %v1126 = vrcp.pop %v1116
        %v1127 = vrcp.pop %v1119
        %v1128 = vrcp.pop %v1122
        %v1129 = vrcp.pop %v1125
        %v1130 = vmul.f32 %v1107, %v1126
        %v1131 = vmul.f32 %v1109, %v1127
        %v1132 = vmul.f32 %v1111, %v1128
        %v1133 = vmul.f32 %v1113, %v1129
        %1134 = vrot.lane.b32.xlu0 %v769, 64
        %v1135 = vpop.permute.xlu0 %1134
        %v1138 = vsel %vm783, %v1130, 0
        %1140 = vmatprep.subr.mxu0 0.0
        %1141 = vmatpush1.msra.mxu0 0.0
        %1142 = vmatprep.subr.mxu0 0.0
        %1143 = vmatpush1.msra.mxu0 0.0
        %1144 = vmatprep.subr.mxu0 0.0
        %1145 = vmatpush1.msra.mxu0 0.0
        %1146 = vmatprep.subr.mxu0 0.0
        %1147 = vmatpush1.msra.mxu0 0.0
        %1148 = vmatprep.subr.mxu0 0.0
        %1149 = vmatpush1.msra.mxu0 0.0
        %1150 = vmatprep.subr.mxu0 0.0
        %1151 = vmatpush1.msra.mxu0 0.0
        %1152 = vmatprep.subr.mxu0 0.0
        %1153 = vmatpush1.msra.mxu0 0.0
        %1154 = vmatprep.subr.mxu0 0.0
        %1155 = vmatpush1.msra.mxu0 0.0
        %1156 = vmatprep.subr.mxu0 0.0
        %1157 = vmatpush1.msra.mxu0 0.0
        %1158 = vmatprep.subr.mxu0 0.0
        %1159 = vmatpush1.msra.mxu0 0.0
        %1160 = vmatprep.subr.mxu0 0.0
        %1161 = vmatpush1.msra.mxu0 0.0
        %1162 = vmatprep.subr.mxu0 0.0
        %1163 = vmatpush1.msra.mxu0 0.0
        %1164 = vmatprep.subr.mxu0 0.0
        %1165 = vmatpush1.msra.mxu0 0.0
        %1166 = vmatprep.subr.mxu0 0.0
        %1167 = vmatpush1.msra.mxu0 0.0
        %1168 = vmatprep.subr.mxu0 0.0
        %1169 = vmatpush1.msra.mxu0 0.0
        %1170 = vmatprep.subr.mxu0 0.0
        %1171 = vmatpush1.msra.mxu0 %v1135
        %1172 = vmatprep.subr.mxu0 0.0
        %1173 = vmatpush2.msra.mxu0 0.0
        %1174 = vmatprep.subr.mxu0 0.0
        %1175 = vmatpush2.msra.mxu0 0.0
        %1176 = vmatprep.subr.mxu0 0.0
        %1177 = vmatpush2.msra.mxu0 0.0
        %1178 = vmatprep.subr.mxu0 0.0
        %1179 = vmatpush2.msra.mxu0 0.0
        %1180 = vmatprep.subr.mxu0 0.0
        %1181 = vmatpush2.msra.mxu0 0.0
        %1182 = vmatprep.subr.mxu0 0.0
        %1183 = vmatpush2.msra.mxu0 0.0
        %1184 = vmatprep.subr.mxu0 0.0
        %1185 = vmatpush2.msra.mxu0 0.0
        %1186 = vmatprep.subr.mxu0 0.0
        %1187 = vmatpush2.msra.mxu0 0.0
        %1188 = vmatprep.subr.mxu0 0.0
        %1189 = vmatpush2.msra.mxu0 0.0
        %1190 = vmatprep.subr.mxu0 0.0
        %1191 = vmatpush2.msra.mxu0 0.0
        %1192 = vmatprep.subr.mxu0 0.0
        %1193 = vmatpush2.msra.mxu0 0.0
        %1194 = vmatprep.subr.mxu0 0.0
        %1195 = vmatpush2.msra.mxu0 0.0
        %1196 = vmatprep.subr.mxu0 0.0
        %1197 = vmatpush2.msra.mxu0 0.0
        %1198 = vmatprep.subr.mxu0 0.0
        %1199 = vmatpush2.msra.mxu0 0.0
        %1200 = vmatprep.subr.mxu0 0.0
        %1201 = vmatpush2.msra.mxu0 0.0
        %1202 = vmatprep.subr.mxu0 0.0
        %1203 = vmatpush2.msra.mxu0 0.0
        %1204 = vmatprep.mubr.f32.mxu0 0.0
        %1205 = vmatmul.mubr.f32.gmra.mxu0 %v1138
        %v1206 = vpop.f32.mrf.mxu0
        %v1207 = vadd.f32 0.0, %v1206
        %v1208 = vpop.f32.mrf.mxu0
        %1209 = vdwg.mxu0
        %1210 = vrot.lane.b32.xlu0 %v776, 64
        %v1211 = vpop.permute.xlu0 %1210
        %v1214 = vsel %vm783, %v1131, 0
        %1216 = vmatprep.subr.mxu0 0.0
        %1217 = vmatpush1.msra.mxu0 0.0
        %1218 = vmatprep.subr.mxu0 0.0
        %1219 = vmatpush1.msra.mxu0 0.0
        %1220 = vmatprep.subr.mxu0 0.0
        %1221 = vmatpush1.msra.mxu0 0.0
        %1222 = vmatprep.subr.mxu0 0.0
        %1223 = vmatpush1.msra.mxu0 0.0
        %1224 = vmatprep.subr.mxu0 0.0
        %1225 = vmatpush1.msra.mxu0 0.0
        %1226 = vmatprep.subr.mxu0 0.0
        %1227 = vmatpush1.msra.mxu0 0.0
        %1228 = vmatprep.subr.mxu0 0.0
        %1229 = vmatpush1.msra.mxu0 0.0
        %1230 = vmatprep.subr.mxu0 0.0
        %1231 = vmatpush1.msra.mxu0 0.0
        %1232 = vmatprep.subr.mxu0 0.0
        %1233 = vmatpush1.msra.mxu0 0.0
        %1234 = vmatprep.subr.mxu0 0.0
        %1235 = vmatpush1.msra.mxu0 0.0
        %1236 = vmatprep.subr.mxu0 0.0
        %1237 = vmatpush1.msra.mxu0 0.0
        %1238 = vmatprep.subr.mxu0 0.0
        %1239 = vmatpush1.msra.mxu0 0.0
        %1240 = vmatprep.subr.mxu0 0.0
        %1241 = vmatpush1.msra.mxu0 0.0
        %1242 = vmatprep.subr.mxu0 0.0
        %1243 = vmatpush1.msra.mxu0 0.0
        %1244 = vmatprep.subr.mxu0 0.0
        %1245 = vmatpush1.msra.mxu0 0.0
        %1246 = vmatprep.subr.mxu0 0.0
        %1247 = vmatpush1.msra.mxu0 %v1211
        %1248 = vmatprep.subr.mxu0 0.0
        %1249 = vmatpush2.msra.mxu0 0.0
        %1250 = vmatprep.subr.mxu0 0.0
        %1251 = vmatpush2.msra.mxu0 0.0
        %1252 = vmatprep.subr.mxu0 0.0
        %1253 = vmatpush2.msra.mxu0 0.0
        %1254 = vmatprep.subr.mxu0 0.0
        %1255 = vmatpush2.msra.mxu0 0.0
        %1256 = vmatprep.subr.mxu0 0.0
        %1257 = vmatpush2.msra.mxu0 0.0
        %1258 = vmatprep.subr.mxu0 0.0
        %1259 = vmatpush2.msra.mxu0 0.0
        %1260 = vmatprep.subr.mxu0 0.0
        %1261 = vmatpush2.msra.mxu0 0.0
        %1262 = vmatprep.subr.mxu0 0.0
        %1263 = vmatpush2.msra.mxu0 0.0
        %1264 = vmatprep.subr.mxu0 0.0
        %1265 = vmatpush2.msra.mxu0 0.0
        %1266 = vmatprep.subr.mxu0 0.0
        %1267 = vmatpush2.msra.mxu0 0.0
        %1268 = vmatprep.subr.mxu0 0.0
        %1269 = vmatpush2.msra.mxu0 0.0
        %1270 = vmatprep.subr.mxu0 0.0
        %1271 = vmatpush2.msra.mxu0 0.0
        %1272 = vmatprep.subr.mxu0 0.0
        %1273 = vmatpush2.msra.mxu0 0.0
        %1274 = vmatprep.subr.mxu0 0.0
        %1275 = vmatpush2.msra.mxu0 0.0
        %1276 = vmatprep.subr.mxu0 0.0
        %1277 = vmatpush2.msra.mxu0 0.0
        %1278 = vmatprep.subr.mxu0 0.0
        %1279 = vmatpush2.msra.mxu0 0.0
        %1280 = vmatprep.mubr.f32.mxu0 0.0
        %1281 = vmatmul.mubr.f32.gmra.mxu0 %v1214
        %v1282 = vpop.f32.mrf.mxu0
        %v1283 = vadd.f32 0.0, %v1282
        %v1284 = vpop.f32.mrf.mxu0
        %1285 = vdwg.mxu0
        %1286 = vrot.lane.b32.xlu0 %v778, 64
        %v1287 = vpop.permute.xlu0 %1286
        %v1290 = vsel %vm783, %v1132, 0
        %1292 = vmatprep.subr.mxu0 0.0
        %1293 = vmatpush1.msra.mxu0 0.0
        %1294 = vmatprep.subr.mxu0 0.0
        %1295 = vmatpush1.msra.mxu0 0.0
        %1296 = vmatprep.subr.mxu0 0.0
        %1297 = vmatpush1.msra.mxu0 0.0
        %1298 = vmatprep.subr.mxu0 0.0
        %1299 = vmatpush1.msra.mxu0 0.0
        %1300 = vmatprep.subr.mxu0 0.0
        %1301 = vmatpush1.msra.mxu0 0.0
        %1302 = vmatprep.subr.mxu0 0.0
        %1303 = vmatpush1.msra.mxu0 0.0
        %1304 = vmatprep.subr.mxu0 0.0
        %1305 = vmatpush1.msra.mxu0 0.0
        %1306 = vmatprep.subr.mxu0 0.0
        %1307 = vmatpush1.msra.mxu0 0.0
        %1308 = vmatprep.subr.mxu0 0.0
        %1309 = vmatpush1.msra.mxu0 0.0
        %1310 = vmatprep.subr.mxu0 0.0
        %1311 = vmatpush1.msra.mxu0 0.0
        %1312 = vmatprep.subr.mxu0 0.0
        %1313 = vmatpush1.msra.mxu0 0.0
        %1314 = vmatprep.subr.mxu0 0.0
        %1315 = vmatpush1.msra.mxu0 0.0
        %1316 = vmatprep.subr.mxu0 0.0
        %1317 = vmatpush1.msra.mxu0 0.0
        %1318 = vmatprep.subr.mxu0 0.0
        %1319 = vmatpush1.msra.mxu0 0.0
        %1320 = vmatprep.subr.mxu0 0.0
        %1321 = vmatpush1.msra.mxu0 0.0
        %1322 = vmatprep.subr.mxu0 0.0
        %1323 = vmatpush1.msra.mxu0 %v1287
        %1324 = vmatprep.subr.mxu0 0.0
        %1325 = vmatpush2.msra.mxu0 0.0
        %1326 = vmatprep.subr.mxu0 0.0
        %1327 = vmatpush2.msra.mxu0 0.0
        %1328 = vmatprep.subr.mxu0 0.0
        %1329 = vmatpush2.msra.mxu0 0.0
        %1330 = vmatprep.subr.mxu0 0.0
        %1331 = vmatpush2.msra.mxu0 0.0
        %1332 = vmatprep.subr.mxu0 0.0
        %1333 = vmatpush2.msra.mxu0 0.0
        %1334 = vmatprep.subr.mxu0 0.0
        %1335 = vmatpush2.msra.mxu0 0.0
        %1336 = vmatprep.subr.mxu0 0.0
        %1337 = vmatpush2.msra.mxu0 0.0
        %1338 = vmatprep.subr.mxu0 0.0
        %1339 = vmatpush2.msra.mxu0 0.0
        %1340 = vmatprep.subr.mxu0 0.0
        %1341 = vmatpush2.msra.mxu0 0.0
        %1342 = vmatprep.subr.mxu0 0.0
        %1343 = vmatpush2.msra.mxu0 0.0
        %1344 = vmatprep.subr.mxu0 0.0
        %1345 = vmatpush2.msra.mxu0 0.0
        %1346 = vmatprep.subr.mxu0 0.0
        %1347 = vmatpush2.msra.mxu0 0.0
        %1348 = vmatprep.subr.mxu0 0.0
        %1349 = vmatpush2.msra.mxu0 0.0
        %1350 = vmatprep.subr.mxu0 0.0
        %1351 = vmatpush2.msra.mxu0 0.0
        %1352 = vmatprep.subr.mxu0 0.0
        %1353 = vmatpush2.msra.mxu0 0.0
        %1354 = vmatprep.subr.mxu0 0.0
        %1355 = vmatpush2.msra.mxu0 0.0
        %1356 = vmatprep.mubr.f32.mxu0 0.0
        %1357 = vmatmul.mubr.f32.gmra.mxu0 %v1290
        %v1358 = vpop.f32.mrf.mxu0
        %v1359 = vadd.f32 0.0, %v1358
        %v1360 = vpop.f32.mrf.mxu0
        %1361 = vdwg.mxu0
        %1362 = vrot.lane.b32.xlu0 %v780, 64
        %v1363 = vpop.permute.xlu0 %1362
        %v1366 = vsel %vm783, %v1133, 0
        %1368 = vmatprep.subr.mxu0 0.0
        %1369 = vmatpush1.msra.mxu0 0.0
        %1370 = vmatprep.subr.mxu0 0.0
        %1371 = vmatpush1.msra.mxu0 0.0
        %1372 = vmatprep.subr.mxu0 0.0
        %1373 = vmatpush1.msra.mxu0 0.0
        %1374 = vmatprep.subr.mxu0 0.0
        %1375 = vmatpush1.msra.mxu0 0.0
        %1376 = vmatprep.subr.mxu0 0.0
        %1377 = vmatpush1.msra.mxu0 0.0
        %1378 = vmatprep.subr.mxu0 0.0
        %1379 = vmatpush1.msra.mxu0 0.0
        %1380 = vmatprep.subr.mxu0 0.0
        %1381 = vmatpush1.msra.mxu0 0.0
        %1382 = vmatprep.subr.mxu0 0.0
        %1383 = vmatpush1.msra.mxu0 0.0
        %1384 = vmatprep.subr.mxu0 0.0
        %1385 = vmatpush1.msra.mxu0 0.0
        %1386 = vmatprep.subr.mxu0 0.0
        %1387 = vmatpush1.msra.mxu0 0.0
        %1388 = vmatprep.subr.mxu0 0.0
        %1389 = vmatpush1.msra.mxu0 0.0
        %1390 = vmatprep.subr.mxu0 0.0
        %1391 = vmatpush1.msra.mxu0 0.0
        %1392 = vmatprep.subr.mxu0 0.0
        %1393 = vmatpush1.msra.mxu0 0.0
        %1394 = vmatprep.subr.mxu0 0.0
        %1395 = vmatpush1.msra.mxu0 0.0
        %1396 = vmatprep.subr.mxu0 0.0
        %1397 = vmatpush1.msra.mxu0 0.0
        %1398 = vmatprep.subr.mxu0 0.0
        %1399 = vmatpush1.msra.mxu0 %v1363
        %1400 = vmatprep.subr.mxu0 0.0
        %1401 = vmatpush2.msra.mxu0 0.0
        %1402 = vmatprep.subr.mxu0 0.0
        %1403 = vmatpush2.msra.mxu0 0.0
        %1404 = vmatprep.subr.mxu0 0.0
        %1405 = vmatpush2.msra.mxu0 0.0
        %1406 = vmatprep.subr.mxu0 0.0
        %1407 = vmatpush2.msra.mxu0 0.0
        %1408 = vmatprep.subr.mxu0 0.0
        %1409 = vmatpush2.msra.mxu0 0.0
        %1410 = vmatprep.subr.mxu0 0.0
        %1411 = vmatpush2.msra.mxu0 0.0
        %1412 = vmatprep.subr.mxu0 0.0
        %1413 = vmatpush2.msra.mxu0 0.0
        %1414 = vmatprep.subr.mxu0 0.0
        %1415 = vmatpush2.msra.mxu0 0.0
        %1416 = vmatprep.subr.mxu0 0.0
        %1417 = vmatpush2.msra.mxu0 0.0
        %1418 = vmatprep.subr.mxu0 0.0
        %1419 = vmatpush2.msra.mxu0 0.0
        %1420 = vmatprep.subr.mxu0 0.0
        %1421 = vmatpush2.msra.mxu0 0.0
        %1422 = vmatprep.subr.mxu0 0.0
        %1423 = vmatpush2.msra.mxu0 0.0
        %1424 = vmatprep.subr.mxu0 0.0
        %1425 = vmatpush2.msra.mxu0 0.0
        %1426 = vmatprep.subr.mxu0 0.0
        %1427 = vmatpush2.msra.mxu0 0.0
        %1428 = vmatprep.subr.mxu0 0.0
        %1429 = vmatpush2.msra.mxu0 0.0
        %1430 = vmatprep.subr.mxu0 0.0
        %1431 = vmatpush2.msra.mxu0 0.0
        %1432 = vmatprep.mubr.f32.mxu0 0.0
        %1433 = vmatmul.mubr.f32.gmra.mxu0 %v1366
        %v1434 = vpop.f32.mrf.mxu0
        %v1435 = vadd.f32 0.0, %v1434
        %v1436 = vpop.f32.mrf.mxu0
        %1437 = vdwg.mxu0
        %1439 = vrot.lane.b32.xlu0 %v1283, 8
        %v1440 = vpop.permute.xlu0 %1439
        %1443 = vrot.lane.b32.xlu0 %v1359, 16
        %v1444 = vpop.permute.xlu0 %1443
        %1447 = vrot.lane.b32.xlu0 %v1435, 24
        %v1448 = vpop.permute.xlu0 %1447
        %v1450 = vsel %vm783, %v1207, %v1440
        %vm1451 = vcmask 130048
        %v1452 = vsel %vm1451, %v1450, %v1444
        %vm1453 = vcmask 195584
        %v1454 = vsel %vm1453, %v1452, %v1448
        %v1455 = vpack.c.bf16 %v1454, %v1454
        %v1456 = vld [vmem:[%s664] sm:$0xf]
        %v1457 = vld [vmem:[%s664 + $0x4] sm:$0xf]
        %v1458 = vld [vmem:[%s664 + $0x8] sm:$0xf]
        %v1459 = vld [vmem:[%s664 + $0xc] sm:$0xf]
        %v1460 = vld [vmem:[%s667] sm:$0x1]
        %v1462 = vlaneseq
        %v1463 = vshrl.u32 %v1462, 7
        %v1464 = vsub.s32 0, %v1463
        %v1465 = vrot.slane %v1460, %v1464
        %v1471 = vunpack.c.l.b16 %v1456
        %v1472 = vunpack.c.l.b16 %v1457
        %v1473 = vunpack.c.l.b16 %v1458
        %v1474 = vunpack.c.l.b16 %v1459
        %v1475 = vpack.c.b16 %v1472, %v1471
        %v1476 = vpack.c.b16 %v1474, %v1473
        %v1480 = vsel %vm730, %v1455, 0
        %1482 = vmatprep.subr.bf16.mxu0 0
        %1483 = vmatpush1.bf16.msra.mxu0 0
        %1484 = vmatprep.subr.bf16.mxu0 0
        %1485 = vmatpush1.bf16.msra.mxu0 0
        %1486 = vmatprep.subr.bf16.mxu0 0
        %1487 = vmatpush1.bf16.msra.mxu0 0
        %1488 = vmatprep.subr.bf16.mxu0 0
        %1489 = vmatpush1.bf16.msra.mxu0 0
        %1490 = vmatprep.subr.bf16.mxu0 0
        %1491 = vmatpush1.bf16.msra.mxu0 0
        %1492 = vmatprep.subr.bf16.mxu0 0
        %1493 = vmatpush1.bf16.msra.mxu0 0
        %1494 = vmatprep.subr.bf16.mxu0 0
        %1495 = vmatpush1.bf16.msra.mxu0 %v1476
        %1496 = vmatprep.subr.bf16.mxu0 0
        %1497 = vmatpush1.bf16.msra.mxu0 %v1475
        %1498 = vmatprep.subr.bf16.mxu0 0
        %1499 = vmatpush2.bf16.msra.mxu0 0
        %1500 = vmatprep.subr.bf16.mxu0 0
        %1501 = vmatpush2.bf16.msra.mxu0 0
        %1502 = vmatprep.subr.bf16.mxu0 0
        %1503 = vmatpush2.bf16.msra.mxu0 0
        %1504 = vmatprep.subr.bf16.mxu0 0
        %1505 = vmatpush2.bf16.msra.mxu0 0
        %1506 = vmatprep.subr.bf16.mxu0 0
        %1507 = vmatpush2.bf16.msra.mxu0 0
        %1508 = vmatprep.subr.bf16.mxu0 0
        %1509 = vmatpush2.bf16.msra.mxu0 0
        %1510 = vmatprep.subr.bf16.mxu0 0
        %1511 = vmatpush2.bf16.msra.mxu0 0
        %1512 = vmatprep.subr.bf16.mxu0 0
        %1513 = vmatpush2.bf16.msra.mxu0 0
        %1514 = vmatprep.mubr.bf16.mxu0 0
        %1515 = vmatmul.mubr.bf16.gmra.mxu0 %v1480
        %v1516 = vpop.f32.mrf.mxu0
        %v1517 = vadd.f32 %v1465, %v1516
        %v1518 = vpop.f32.mrf.mxu0
        %v1519 = vpop.f32.mrf.mxu0
        %v1520 = vpop.f32.mrf.mxu0
        %1521 = vdwg.mxu0
        %v1522 = vadd.f32 %v705, %v1517
        %v1523 = vld [vmem:[%s670] sm:$0x1]
        %v1524 = vld [vmem:[%s673] sm:$0x1]
        %v1525 = vsel %vm730, %v1522, 0.0
        %1526 = vadd.xlane.f32.xlu0 %v1525
        %v1527 = vpop.xlane.xlu0 %1526
        %v1528 = vrcp.pop 32.0
        %v1529 = vmul.f32 %v1527, %v1528
        %v1530 = vsub.f32 %v1522, %v1529
        %v1531 = vmul.f32 %v1530, %v1530
        %v1532 = vsel %vm730, %v1531, 0.0
        %1533 = vadd.xlane.f32.xlu0 %v1532
        %v1534 = vpop.xlane.xlu0 %1533
        %v1535 = vmul.f32 %v1534, %v1528
        %v1536 = vadd.f32 %v1535, 1e-05
        %v1537 = vrsqrt.pop %v1536
        %v1538 = vmul.f32 %v1530, %v1537
        %v1540 = vlaneseq
        %v1541 = vshrl.u32 %v1540, 7
        %v1542 = vsub.s32 0, %v1541
        %v1543 = vrot.slane %v1523, %v1542
        %v1545 = vmul.f32 %v1538, %v1543
        %v1547 = vlaneseq
        %v1548 = vshrl.u32 %v1547, 7
        %v1549 = vsub.s32 0, %v1548
        %v1550 = vrot.slane %v1524, %v1549
        %v1552 = vadd.f32 %v1545, %v1550
        %v1553 = vpack.c.bf16 %v1552, %v1552
        %v1554 = vld [vmem:[%s678] sm:$0xff]
        %v1555 = vld [vmem:[%s678 + $0x8] sm:$0xff]
        %v1556 = vld [vmem:[%s678 + $0x10] sm:$0xff]
        %v1557 = vld [vmem:[%s678 + $0x18] sm:$0xff]
        %v1558 = vld [vmem:[%s678 + $0x20] sm:$0xff]
        %v1559 = vld [vmem:[%s678 + $0x28] sm:$0xff]
        %v1560 = vld [vmem:[%s678 + $0x30] sm:$0xff]
        %v1561 = vld [vmem:[%s678 + $0x38] sm:$0xff]
        %v1562 = vld [vmem:[%s678 + $0x40] sm:$0xff]
        %v1563 = vld [vmem:[%s678 + $0x48] sm:$0xff]
        %v1564 = vld [vmem:[%s678 + $0x50] sm:$0xff]
        %v1565 = vld [vmem:[%s678 + $0x58] sm:$0xff]
        %v1566 = vld [vmem:[%s678 + $0x60] sm:$0xff]
        %v1567 = vld [vmem:[%s678 + $0x68] sm:$0xff]
        %v1568 = vld [vmem:[%s678 + $0x70] sm:$0xff]
        %v1569 = vld [vmem:[%s678 + $0x78] sm:$0xff]
        %v1570 = vld [vmem:[%s678 + $0x80] sm:$0xff]
        %v1571 = vld [vmem:[%s678 + $0x88] sm:$0xff]
        %v1572 = vld [vmem:[%s678 + $0x90] sm:$0xff]
        %v1573 = vld [vmem:[%s678 + $0x98] sm:$0xff]
        %v1574 = vld [vmem:[%s678 + $0xa0] sm:$0xff]
        %v1575 = vld [vmem:[%s678 + $0xa8] sm:$0xff]
        %v1576 = vld [vmem:[%s678 + $0xb0] sm:$0xff]
        %v1577 = vld [vmem:[%s678 + $0xb8] sm:$0xff]
        %v1578 = vld [vmem:[%s678 + $0xc0] sm:$0xff]
        %v1579 = vld [vmem:[%s678 + $0xc8] sm:$0xff]
        %v1580 = vld [vmem:[%s678 + $0xd0] sm:$0xff]
        %v1581 = vld [vmem:[%s678 + $0xd8] sm:$0xff]
        %v1582 = vld [vmem:[%s678 + $0xe0] sm:$0xff]
        %v1583 = vld [vmem:[%s678 + $0xe8] sm:$0xff]
        %v1584 = vld [vmem:[%s678 + $0xf0] sm:$0xff]
        %v1585 = vld [vmem:[%s678 + $0xf8] sm:$0xff]
        %v1586 = vld [vmem:[%s682] sm:$0xff]
        %v1587 = vld [vmem:[%s682 + $0x8] sm:$0xff]
        %v1590 = vlaneseq
        %v1591 = vshrl.u32 %v1590, 7
        %v1592 = vsub.s32 0, %v1591
        %v1593 = vrot.slane %v1586, %v1592
        %v1594 = vlaneseq
        %v1595 = vshrl.u32 %v1594, 7
        %v1596 = vsub.s32 1, %v1595
        %v1597 = vrot.slane %v1586, %v1596
        %v1598 = vlaneseq
        %v1599 = vshrl.u32 %v1598, 7
        %v1600 = vsub.s32 2, %v1599
        %v1601 = vrot.slane %v1586, %v1600
        %v1602 = vlaneseq
        %v1603 = vshrl.u32 %v1602, 7
        %v1604 = vsub.s32 3, %v1603
        %v1605 = vrot.slane %v1586, %v1604
        %v1606 = vlaneseq
        %v1607 = vshrl.u32 %v1606, 7
        %v1608 = vsub.s32 4, %v1607
        %v1609 = vrot.slane %v1586, %v1608
        %v1610 = vlaneseq
        %v1611 = vshrl.u32 %v1610, 7
        %v1612 = vsub.s32 5, %v1611
        %v1613 = vrot.slane %v1586, %v1612
        %v1614 = vlaneseq
        %v1615 = vshrl.u32 %v1614, 7
        %v1616 = vsub.s32 6, %v1615
        %v1617 = vrot.slane %v1586, %v1616
        %v1618 = vlaneseq
        %v1619 = vshrl.u32 %v1618, 7
        %v1620 = vsub.s32 7, %v1619
        %v1621 = vrot.slane %v1586, %v1620
        %v1622 = vlaneseq
        %v1623 = vshrl.u32 %v1622, 7
        %v1624 = vsub.s32 0, %v1623
        %v1625 = vrot.slane %v1587, %v1624
        %v1626 = vlaneseq
        %v1627 = vshrl.u32 %v1626, 7
        %v1628 = vsub.s32 1, %v1627
        %v1629 = vrot.slane %v1587, %v1628
        %v1630 = vlaneseq
        %v1631 = vshrl.u32 %v1630, 7
        %v1632 = vsub.s32 2, %v1631
        %v1633 = vrot.slane %v1587, %v1632
        %v1634 = vlaneseq
        %v1635 = vshrl.u32 %v1634, 7
        %v1636 = vsub.s32 3, %v1635
        %v1637 = vrot.slane %v1587, %v1636
        %v1638 = vlaneseq
        %v1639 = vshrl.u32 %v1638, 7
        %v1640 = vsub.s32 4, %v1639
        %v1641 = vrot.slane %v1587, %v1640
        %v1642 = vlaneseq
        %v1643 = vshrl.u32 %v1642, 7
        %v1644 = vsub.s32 5, %v1643
        %v1645 = vrot.slane %v1587, %v1644
        %v1646 = vlaneseq
        %v1647 = vshrl.u32 %v1646, 7
        %v1648 = vsub.s32 6, %v1647
        %v1649 = vrot.slane %v1587, %v1648
        %v1650 = vlaneseq
        %v1651 = vshrl.u32 %v1650, 7
        %v1652 = vsub.s32 7, %v1651
        %v1653 = vrot.slane %v1587, %v1652
        %v1702 = vunpack.c.l.b16 %v1554
        %v1703 = vunpack.c.h.b16 %v1554
        %v1704 = vunpack.c.l.b16 %v1555
        %v1705 = vunpack.c.h.b16 %v1555
        %v1706 = vunpack.c.l.b16 %v1556
        %v1707 = vunpack.c.h.b16 %v1556
        %v1708 = vunpack.c.l.b16 %v1557
        %v1709 = vunpack.c.h.b16 %v1557
        %v1710 = vunpack.c.l.b16 %v1558
        %v1711 = vunpack.c.h.b16 %v1558
        %v1712 = vunpack.c.l.b16 %v1559
        %v1713 = vunpack.c.h.b16 %v1559
        %v1714 = vunpack.c.l.b16 %v1560
        %v1715 = vunpack.c.h.b16 %v1560
        %v1716 = vunpack.c.l.b16 %v1561
        %v1717 = vunpack.c.h.b16 %v1561
        %v1718 = vunpack.c.l.b16 %v1562
        %v1719 = vunpack.c.h.b16 %v1562
        %v1720 = vunpack.c.l.b16 %v1563
        %v1721 = vunpack.c.h.b16 %v1563
        %v1722 = vunpack.c.l.b16 %v1564
        %v1723 = vunpack.c.h.b16 %v1564
        %v1724 = vunpack.c.l.b16 %v1565
        %v1725 = vunpack.c.h.b16 %v1565
        %v1726 = vunpack.c.l.b16 %v1566
        %v1727 = vunpack.c.h.b16 %v1566
        %v1728 = vunpack.c.l.b16 %v1567
        %v1729 = vunpack.c.h.b16 %v1567
        %v1730 = vunpack.c.l.b16 %v1568
        %v1731 = vunpack.c.h.b16 %v1568
        %v1732 = vunpack.c.l.b16 %v1569
        %v1733 = vunpack.c.h.b16 %v1569
        %v1734 = vunpack.c.l.b16 %v1570
        %v1735 = vunpack.c.h.b16 %v1570
        %v1736 = vunpack.c.l.b16 %v1571
        %v1737 = vunpack.c.h.b16 %v1571
        %v1738 = vunpack.c.l.b16 %v1572
        %v1739 = vunpack.c.h.b16 %v1572
        %v1740 = vunpack.c.l.b16 %v1573
        %v1741 = vunpack.c.h.b16 %v1573
        %v1742 = vunpack.c.l.b16 %v1574
        %v1743 = vunpack.c.h.b16 %v1574
        %v1744 = vunpack.c.l.b16 %v1575
        %v1745 = vunpack.c.h.b16 %v1575
        %v1746 = vunpack.c.l.b16 %v1576
        %v1747 = vunpack.c.h.b16 %v1576
        %v1748 = vunpack.c.l.b16 %v1577
        %v1749 = vunpack.c.h.b16 %v1577
        %v1750 = vunpack.c.l.b16 %v1578
        %v1751 = vunpack.c.h.b16 %v1578
        %v1752 = vunpack.c.l.b16 %v1579
        %v1753 = vunpack.c.h.b16 %v1579
        %v1754 = vunpack.c.l.b16 %v1580
        %v1755 = vunpack.c.h.b16 %v1580
        %v1756 = vunpack.c.l.b16 %v1581
        %v1757 = vunpack.c.h.b16 %v1581
        %v1758 = vunpack.c.l.b16 %v1582
        %v1759 = vunpack.c.h.b16 %v1582
        %v1760 = vunpack.c.l.b16 %v1583
        %v1761 = vunpack.c.h.b16 %v1583
        %v1762 = vunpack.c.l.b16 %v1584
        %v1763 = vunpack.c.h.b16 %v1584
        %v1764 = vunpack.c.l.b16 %v1585
        %v1765 = vunpack.c.h.b16 %v1585
        %v1766 = vpack.c.b16 %v1718, %v1702
        %v1767 = vpack.c.b16 %v1719, %v1703
        %v1768 = vpack.c.b16 %v1720, %v1704
        %v1769 = vpack.c.b16 %v1721, %v1705
        %v1770 = vpack.c.b16 %v1722, %v1706
        %v1771 = vpack.c.b16 %v1723, %v1707
        %v1772 = vpack.c.b16 %v1724, %v1708
        %v1773 = vpack.c.b16 %v1725, %v1709
        %v1774 = vpack.c.b16 %v1726, %v1710
        %v1775 = vpack.c.b16 %v1727, %v1711
        %v1776 = vpack.c.b16 %v1728, %v1712
        %v1777 = vpack.c.b16 %v1729, %v1713
        %v1778 = vpack.c.b16 %v1730, %v1714
        %v1779 = vpack.c.b16 %v1731, %v1715
        %v1780 = vpack.c.b16 %v1732, %v1716
        %v1781 = vpack.c.b16 %v1733, %v1717
        %v1782 = vpack.c.b16 %v1750, %v1734
        %v1783 = vpack.c.b16 %v1751, %v1735
        %v1784 = vpack.c.b16 %v1752, %v1736
        %v1785 = vpack.c.b16 %v1753, %v1737
        %v1786 = vpack.c.b16 %v1754, %v1738
        %v1787 = vpack.c.b16 %v1755, %v1739
        %v1788 = vpack.c.b16 %v1756, %v1740
        %v1789 = vpack.c.b16 %v1757, %v1741
        %v1790 = vpack.c.b16 %v1758, %v1742
        %v1791 = vpack.c.b16 %v1759, %v1743
        %v1792 = vpack.c.b16 %v1760, %v1744
        %v1793 = vpack.c.b16 %v1761, %v1745
        %v1794 = vpack.c.b16 %v1762, %v1746
        %v1795 = vpack.c.b16 %v1763, %v1747
        %v1796 = vpack.c.b16 %v1764, %v1748
        %v1797 = vpack.c.b16 %v1765, %v1749
        %v1831 = vsel %vm730, %v1553, 0
        %1833 = vmatprep.subr.bf16.mxu0 0
        %1834 = vmatpush1.bf16.msra.mxu0 0
        %1835 = vmatprep.subr.bf16.mxu0 0
        %1836 = vmatpush1.bf16.msra.mxu0 0
        %1837 = vmatprep.subr.bf16.mxu0 0
        %1838 = vmatpush1.bf16.msra.mxu0 0
        %1839 = vmatprep.subr.bf16.mxu0 0
        %1840 = vmatpush1.bf16.msra.mxu0 0
        %1841 = vmatprep.subr.bf16.mxu0 0
        %1842 = vmatpush1.bf16.msra.mxu0 0
        %1843 = vmatprep.subr.bf16.mxu0 0
        %1844 = vmatpush1.bf16.msra.mxu0 0
        %1845 = vmatprep.subr.bf16.mxu0 %v1783
        %1846 = vmatpush1.bf16.msra.mxu0 %v1782
        %1847 = vmatprep.subr.bf16.mxu0 %v1767
        %1848 = vmatpush1.bf16.msra.mxu0 %v1766
        %1849 = vmatprep.subr.bf16.mxu0 0
        %1850 = vmatpush2.bf16.msra.mxu0 0
        %1851 = vmatprep.subr.bf16.mxu0 0
        %1852 = vmatpush2.bf16.msra.mxu0 0
        %1853 = vmatprep.subr.bf16.mxu0 0
        %1854 = vmatpush2.bf16.msra.mxu0 0
        %1855 = vmatprep.subr.bf16.mxu0 0
        %1856 = vmatpush2.bf16.msra.mxu0 0
        %1857 = vmatprep.subr.bf16.mxu0 0
        %1858 = vmatpush2.bf16.msra.mxu0 0
        %1859 = vmatprep.subr.bf16.mxu0 0
        %1860 = vmatpush2.bf16.msra.mxu0 0
        %1861 = vmatprep.subr.bf16.mxu0 0
        %1862 = vmatpush2.bf16.msra.mxu0 0
        %1863 = vmatprep.subr.bf16.mxu0 0
        %1864 = vmatpush2.bf16.msra.mxu0 0
        %1865 = vmatprep.mubr.bf16.mxu0 0
        %1866 = vmatmul.mubr.bf16.gmra.mxu0 %v1831
        %v1867 = vpop.f32.mrf.mxu0
        %v1868 = vadd.f32 %v1593, %v1867
        %v1869 = vpop.f32.mrf.mxu0
        %v1870 = vadd.f32 %v1597, %v1869
        %v1871 = vpop.f32.mrf.mxu0
        %v1872 = vpop.f32.mrf.mxu0
        %1873 = vdwg.mxu0
        %1874 = vmatprep.subr.bf16.mxu0 0
        %1875 = vmatpush1.bf16.msra.mxu0 0
        %1876 = vmatprep.subr.bf16.mxu0 0
        %1877 = vmatpush1.bf16.msra.mxu0 0
        %1878 = vmatprep.subr.bf16.mxu0 0
        %1879 = vmatpush1.bf16.msra.mxu0 0
        %1880 = vmatprep.subr.bf16.mxu0 0
        %1881 = vmatpush1.bf16.msra.mxu0 0
        %1882 = vmatprep.subr.bf16.mxu0 0
        %1883 = vmatpush1.bf16.msra.mxu0 0
        %1884 = vmatprep.subr.bf16.mxu0 0
        %1885 = vmatpush1.bf16.msra.mxu0 0
        %1886 = vmatprep.subr.bf16.mxu0 %v1785
        %1887 = vmatpush1.bf16.msra.mxu0 %v1784
        %1888 = vmatprep.subr.bf16.mxu0 %v1769
        %1889 = vmatpush1.bf16.msra.mxu0 %v1768
        %1890 = vmatprep.subr.bf16.mxu0 0
        %1891 = vmatpush2.bf16.msra.mxu0 0
        %1892 = vmatprep.subr.bf16.mxu0 0
        %1893 = vmatpush2.bf16.msra.mxu0 0
        %1894 = vmatprep.subr.bf16.mxu0 0
        %1895 = vmatpush2.bf16.msra.mxu0 0
        %1896 = vmatprep.subr.bf16.mxu0 0
        %1897 = vmatpush2.bf16.msra.mxu0 0
        %1898 = vmatprep.subr.bf16.mxu0 0
        %1899 = vmatpush2.bf16.msra.mxu0 0
        %1900 = vmatprep.subr.bf16.mxu0 0
        %1901 = vmatpush2.bf16.msra.mxu0 0
        %1902 = vmatprep.subr.bf16.mxu0 0
        %1903 = vmatpush2.bf16.msra.mxu0 0
        %1904 = vmatprep.subr.bf16.mxu0 0
        %1905 = vmatpush2.bf16.msra.mxu0 0
        %1906 = vmatprep.mubr.bf16.mxu0 0
        %1907 = vmatmul.mubr.bf16.gmra.mxu0 %v1831
        %v1908 = vpop.f32.mrf.mxu0
        %v1909 = vadd.f32 %v1601, %v1908
        %v1910 = vpop.f32.mrf.mxu0
        %v1911 = vadd.f32 %v1605, %v1910
        %v1912 = vpop.f32.mrf.mxu0
        %v1913 = vpop.f32.mrf.mxu0
        %1914 = vdwg.mxu0
        %1915 = vmatprep.subr.bf16.mxu0 0
        %1916 = vmatpush1.bf16.msra.mxu0 0
        %1917 = vmatprep.subr.bf16.mxu0 0
        %1918 = vmatpush1.bf16.msra.mxu0 0
        %1919 = vmatprep.subr.bf16.mxu0 0
        %1920 = vmatpush1.bf16.msra.mxu0 0
        %1921 = vmatprep.subr.bf16.mxu0 0
        %1922 = vmatpush1.bf16.msra.mxu0 0
        %1923 = vmatprep.subr.bf16.mxu0 0
        %1924 = vmatpush1.bf16.msra.mxu0 0
        %1925 = vmatprep.subr.bf16.mxu0 0
        %1926 = vmatpush1.bf16.msra.mxu0 0
        %1927 = vmatprep.subr.bf16.mxu0 %v1787
        %1928 = vmatpush1.bf16.msra.mxu0 %v1786
        %1929 = vmatprep.subr.bf16.mxu0 %v1771
        %1930 = vmatpush1.bf16.msra.mxu0 %v1770
        %1931 = vmatprep.subr.bf16.mxu0 0
        %1932 = vmatpush2.bf16.msra.mxu0 0
        %1933 = vmatprep.subr.bf16.mxu0 0
        %1934 = vmatpush2.bf16.msra.mxu0 0
        %1935 = vmatprep.subr.bf16.mxu0 0
        %1936 = vmatpush2.bf16.msra.mxu0 0
        %1937 = vmatprep.subr.bf16.mxu0 0
        %1938 = vmatpush2.bf16.msra.mxu0 0
        %1939 = vmatprep.subr.bf16.mxu0 0
        %1940 = vmatpush2.bf16.msra.mxu0 0
        %1941 = vmatprep.subr.bf16.mxu0 0
        %1942 = vmatpush2.bf16.msra.mxu0 0
        %1943 = vmatprep.subr.bf16.mxu0 0
        %1944 = vmatpush2.bf16.msra.mxu0 0
        %1945 = vmatprep.subr.bf16.mxu0 0
        %1946 = vmatpush2.bf16.msra.mxu0 0
        %1947 = vmatprep.mubr.bf16.mxu0 0
        %1948 = vmatmul.mubr.bf16.gmra.mxu0 %v1831
        %v1949 = vpop.f32.mrf.mxu0
        %v1950 = vadd.f32 %v1609, %v1949
        %v1951 = vpop.f32.mrf.mxu0
        %v1952 = vadd.f32 %v1613, %v1951
        %v1953 = vpop.f32.mrf.mxu0
        %v1954 = vpop.f32.mrf.mxu0
        %1955 = vdwg.mxu0
        %1956 = vmatprep.subr.bf16.mxu0 0
        %1957 = vmatpush1.bf16.msra.mxu0 0
        %1958 = vmatprep.subr.bf16.mxu0 0
        %1959 = vmatpush1.bf16.msra.mxu0 0
        %1960 = vmatprep.subr.bf16.mxu0 0
        %1961 = vmatpush1.bf16.msra.mxu0 0
        %1962 = vmatprep.subr.bf16.mxu0 0
        %1963 = vmatpush1.bf16.msra.mxu0 0
        %1964 = vmatprep.subr.bf16.mxu0 0
        %1965 = vmatpush1.bf16.msra.mxu0 0
        %1966 = vmatprep.subr.bf16.mxu0 0
        %1967 = vmatpush1.bf16.msra.mxu0 0
        %1968 = vmatprep.subr.bf16.mxu0 %v1789
        %1969 = vmatpush1.bf16.msra.mxu0 %v1788
        %1970 = vmatprep.subr.bf16.mxu0 %v1773
        %1971 = vmatpush1.bf16.msra.mxu0 %v1772
        %1972 = vmatprep.subr.bf16.mxu0 0
        %1973 = vmatpush2.bf16.msra.mxu0 0
        %1974 = vmatprep.subr.bf16.mxu0 0
        %1975 = vmatpush2.bf16.msra.mxu0 0
        %1976 = vmatprep.subr.bf16.mxu0 0
        %1977 = vmatpush2.bf16.msra.mxu0 0
        %1978 = vmatprep.subr.bf16.mxu0 0
        %1979 = vmatpush2.bf16.msra.mxu0 0
        %1980 = vmatprep.subr.bf16.mxu0 0
        %1981 = vmatpush2.bf16.msra.mxu0 0
        %1982 = vmatprep.subr.bf16.mxu0 0
        %1983 = vmatpush2.bf16.msra.mxu0 0
        %1984 = vmatprep.subr.bf16.mxu0 0
        %1985 = vmatpush2.bf16.msra.mxu0 0
        %1986 = vmatprep.subr.bf16.mxu0 0
        %1987 = vmatpush2.bf16.msra.mxu0 0
        %1988 = vmatprep.mubr.bf16.mxu0 0
        %1989 = vmatmul.mubr.bf16.gmra.mxu0 %v1831
        %v1990 = vpop.f32.mrf.mxu0
        %v1991 = vadd.f32 %v1617, %v1990
        %v1992 = vpop.f32.mrf.mxu0
        %v1993 = vadd.f32 %v1621, %v1992
        %v1994 = vpop.f32.mrf.mxu0
        %v1995 = vpop.f32.mrf.mxu0
        %1996 = vdwg.mxu0
        %1997 = vmatprep.subr.bf16.mxu0 0
        %1998 = vmatpush1.bf16.msra.mxu0 0
        %1999 = vmatprep.subr.bf16.mxu0 0
        %2000 = vmatpush1.bf16.msra.mxu0 0
        %2001 = vmatprep.subr.bf16.mxu0 0
        %2002 = vmatpush1.bf16.msra.mxu0 0
        %2003 = vmatprep.subr.bf16.mxu0 0
        %2004 = vmatpush1.bf16.msra.mxu0 0
        %2005 = vmatprep.subr.bf16.mxu0 0
        %2006 = vmatpush1.bf16.msra.mxu0 0
        %2007 = vmatprep.subr.bf16.mxu0 0
        %2008 = vmatpush1.bf16.msra.mxu0 0
        %2009 = vmatprep.subr.bf16.mxu0 %v1791
        %2010 = vmatpush1.bf16.msra.mxu0 %v1790
        %2011 = vmatprep.subr.bf16.mxu0 %v1775
        %2012 = vmatpush1.bf16.msra.mxu0 %v1774
        %2013 = vmatprep.subr.bf16.mxu0 0
        %2014 = vmatpush2.bf16.msra.mxu0 0
        %2015 = vmatprep.subr.bf16.mxu0 0
        %2016 = vmatpush2.bf16.msra.mxu0 0
        %2017 = vmatprep.subr.bf16.mxu0 0
        %2018 = vmatpush2.bf16.msra.mxu0 0
        %2019 = vmatprep.subr.bf16.mxu0 0
        %2020 = vmatpush2.bf16.msra.mxu0 0
        %2021 = vmatprep.subr.bf16.mxu0 0
        %2022 = vmatpush2.bf16.msra.mxu0 0
        %2023 = vmatprep.subr.bf16.mxu0 0
        %2024 = vmatpush2.bf16.msra.mxu0 0
        %2025 = vmatprep.subr.bf16.mxu0 0
        %2026 = vmatpush2.bf16.msra.mxu0 0
        %2027 = vmatprep.subr.bf16.mxu0 0
        %2028 = vmatpush2.bf16.msra.mxu0 0
        %2029 = vmatprep.mubr.bf16.mxu0 0
        %2030 = vmatmul.mubr.bf16.gmra.mxu0 %v1831
        %v2031 = vpop.f32.mrf.mxu0
        %v2032 = vadd.f32 %v1625, %v2031
        %v2033 = vpop.f32.mrf.mxu0
        %v2034 = vadd.f32 %v1629, %v2033
        %v2035 = vpop.f32.mrf.mxu0
        %v2036 = vpop.f32.mrf.mxu0
        %2037 = vdwg.mxu0
        %2038 = vmatprep.subr.bf16.mxu0 0
        %2039 = vmatpush1.bf16.msra.mxu0 0
        %2040 = vmatprep.subr.bf16.mxu0 0
        %2041 = vmatpush1.bf16.msra.mxu0 0
        %2042 = vmatprep.subr.bf16.mxu0 0
        %2043 = vmatpush1.bf16.msra.mxu0 0
        %2044 = vmatprep.subr.bf16.mxu0 0
        %2045 = vmatpush1.bf16.msra.mxu0 0
        %2046 = vmatprep.subr.bf16.mxu0 0
        %2047 = vmatpush1.bf16.msra.mxu0 0
        %2048 = vmatprep.subr.bf16.mxu0 0
        %2049 = vmatpush1.bf16.msra.mxu0 0
        %2050 = vmatprep.subr.bf16.mxu0 %v1793
        %2051 = vmatpush1.bf16.msra.mxu0 %v1792
        %2052 = vmatprep.subr.bf16.mxu0 %v1777
        %2053 = vmatpush1.bf16.msra.mxu0 %v1776
        %2054 = vmatprep.subr.bf16.mxu0 0
        %2055 = vmatpush2.bf16.msra.mxu0 0
        %2056 = vmatprep.subr.bf16.mxu0 0
        %2057 = vmatpush2.bf16.msra.mxu0 0
        %2058 = vmatprep.subr.bf16.mxu0 0
        %2059 = vmatpush2.bf16.msra.mxu0 0
        %2060 = vmatprep.subr.bf16.mxu0 0
        %2061 = vmatpush2.bf16.msra.mxu0 0
        %2062 = vmatprep.subr.bf16.mxu0 0
        %2063 = vmatpush2.bf16.msra.mxu0 0
        %2064 = vmatprep.subr.bf16.mxu0 0
        %2065 = vmatpush2.bf16.msra.mxu0 0
        %2066 = vmatprep.subr.bf16.mxu0 0
        %2067 = vmatpush2.bf16.msra.mxu0 0
        %2068 = vmatprep.subr.bf16.mxu0 0
        %2069 = vmatpush2.bf16.msra.mxu0 0
        %2070 = vmatprep.mubr.bf16.mxu0 0
        %2071 = vmatmul.mubr.bf16.gmra.mxu0 %v1831
        %v2072 = vpop.f32.mrf.mxu0
        %v2073 = vadd.f32 %v1633, %v2072
        %v2074 = vpop.f32.mrf.mxu0
        %v2075 = vadd.f32 %v1637, %v2074
        %v2076 = vpop.f32.mrf.mxu0
        %v2077 = vpop.f32.mrf.mxu0
        %2078 = vdwg.mxu0
        %2079 = vmatprep.subr.bf16.mxu0 0
        %2080 = vmatpush1.bf16.msra.mxu0 0
        %2081 = vmatprep.subr.bf16.mxu0 0
        %2082 = vmatpush1.bf16.msra.mxu0 0
        %2083 = vmatprep.subr.bf16.mxu0 0
        %2084 = vmatpush1.bf16.msra.mxu0 0
        %2085 = vmatprep.subr.bf16.mxu0 0
        %2086 = vmatpush1.bf16.msra.mxu0 0
        %2087 = vmatprep.subr.bf16.mxu0 0
        %2088 = vmatpush1.bf16.msra.mxu0 0
        %2089 = vmatprep.subr.bf16.mxu0 0
        %2090 = vmatpush1.bf16.msra.mxu0 0
        %2091 = vmatprep.subr.bf16.mxu0 %v1795
        %2092 = vmatpush1.bf16.msra.mxu0 %v1794
        %2093 = vmatprep.subr.bf16.mxu0 %v1779
        %2094 = vmatpush1.bf16.msra.mxu0 %v1778
        %2095 = vmatprep.subr.bf16.mxu0 0
        %2096 = vmatpush2.bf16.msra.mxu0 0
        %2097 = vmatprep.subr.bf16.mxu0 0
        %2098 = vmatpush2.bf16.msra.mxu0 0
        %2099 = vmatprep.subr.bf16.mxu0 0
        %2100 = vmatpush2.bf16.msra.mxu0 0
        %2101 = vmatprep.subr.bf16.mxu0 0
        %2102 = vmatpush2.bf16.msra.mxu0 0
        %2103 = vmatprep.subr.bf16.mxu0 0
        %2104 = vmatpush2.bf16.msra.mxu0 0
        %2105 = vmatprep.subr.bf16.mxu0 0
        %2106 = vmatpush2.bf16.msra.mxu0 0
        %2107 = vmatprep.subr.bf16.mxu0 0
        %2108 = vmatpush2.bf16.msra.mxu0 0
        %2109 = vmatprep.subr.bf16.mxu0 0
        %2110 = vmatpush2.bf16.msra.mxu0 0
        %2111 = vmatprep.mubr.bf16.mxu0 0
        %2112 = vmatmul.mubr.bf16.gmra.mxu0 %v1831
        %v2113 = vpop.f32.mrf.mxu0
        %v2114 = vadd.f32 %v1641, %v2113
        %v2115 = vpop.f32.mrf.mxu0
        %v2116 = vadd.f32 %v1645, %v2115
        %v2117 = vpop.f32.mrf.mxu0
        %v2118 = vpop.f32.mrf.mxu0
        %2119 = vdwg.mxu0
        %2120 = vmatprep.subr.bf16.mxu0 0
        %2121 = vmatpush1.bf16.msra.mxu0 0
        %2122 = vmatprep.subr.bf16.mxu0 0
        %2123 = vmatpush1.bf16.msra.mxu0 0
        %2124 = vmatprep.subr.bf16.mxu0 0
        %2125 = vmatpush1.bf16.msra.mxu0 0
        %2126 = vmatprep.subr.bf16.mxu0 0
        %2127 = vmatpush1.bf16.msra.mxu0 0
        %2128 = vmatprep.subr.bf16.mxu0 0
        %2129 = vmatpush1.bf16.msra.mxu0 0
        %2130 = vmatprep.subr.bf16.mxu0 0
        %2131 = vmatpush1.bf16.msra.mxu0 0
        %2132 = vmatprep.subr.bf16.mxu0 %v1797
        %2133 = vmatpush1.bf16.msra.mxu0 %v1796
        %2134 = vmatprep.subr.bf16.mxu0 %v1781
        %2135 = vmatpush1.bf16.msra.mxu0 %v1780
        %2136 = vmatprep.subr.bf16.mxu0 0
        %2137 = vmatpush2.bf16.msra.mxu0 0
        %2138 = vmatprep.subr.bf16.mxu0 0
        %2139 = vmatpush2.bf16.msra.mxu0 0
        %2140 = vmatprep.subr.bf16.mxu0 0
        %2141 = vmatpush2.bf16.msra.mxu0 0
        %2142 = vmatprep.subr.bf16.mxu0 0
        %2143 = vmatpush2.bf16.msra.mxu0 0
        %2144 = vmatprep.subr.bf16.mxu0 0
        %2145 = vmatpush2.bf16.msra.mxu0 0
        %2146 = vmatprep.subr.bf16.mxu0 0
        %2147 = vmatpush2.bf16.msra.mxu0 0
        %2148 = vmatprep.subr.bf16.mxu0 0
        %2149 = vmatpush2.bf16.msra.mxu0 0
        %2150 = vmatprep.subr.bf16.mxu0 0
        %2151 = vmatpush2.bf16.msra.mxu0 0
        %2152 = vmatprep.mubr.bf16.mxu0 0
        %2153 = vmatmul.mubr.bf16.gmra.mxu0 %v1831
        %v2154 = vpop.f32.mrf.mxu0
        %v2155 = vadd.f32 %v1649, %v2154
        %v2156 = vpop.f32.mrf.mxu0
        %v2157 = vadd.f32 %v1653, %v2156
        %v2158 = vpop.f32.mrf.mxu0
        %v2159 = vpop.f32.mrf.mxu0
        %2160 = vdwg.mxu0
        %v2161 = vmax.f32 %v1868, 0.0
        %v2162 = vmax.f32 %v1870, 0.0
        %v2163 = vmax.f32 %v1909, 0.0
        %v2164 = vmax.f32 %v1911, 0.0
        %v2165 = vmax.f32 %v1950, 0.0
        %v2166 = vmax.f32 %v1952, 0.0
        %v2167 = vmax.f32 %v1991, 0.0
        %v2168 = vmax.f32 %v1993, 0.0
        %v2169 = vmax.f32 %v2032, 0.0
        %v2170 = vmax.f32 %v2034, 0.0
        %v2171 = vmax.f32 %v2073, 0.0
        %v2172 = vmax.f32 %v2075, 0.0
        %v2173 = vmax.f32 %v2114, 0.0
        %v2174 = vmax.f32 %v2116, 0.0
        %v2175 = vmax.f32 %v2155, 0.0
        %v2176 = vmax.f32 %v2157, 0.0
        %v2177 = vpack.c.bf16 %v2161, %v2161
        %v2178 = vpack.c.bf16 %v2162, %v2162
        %v2179 = vpack.c.bf16 %v2163, %v2163
        %v2180 = vpack.c.bf16 %v2164, %v2164
        %v2181 = vpack.c.bf16 %v2165, %v2165
        %v2182 = vpack.c.bf16 %v2166, %v2166
        %v2183 = vpack.c.bf16 %v2167, %v2167
        %v2184 = vpack.c.bf16 %v2168, %v2168
        %v2185 = vpack.c.bf16 %v2169, %v2169
        %v2186 = vpack.c.bf16 %v2170, %v2170
        %v2187 = vpack.c.bf16 %v2171, %v2171
        %v2188 = vpack.c.bf16 %v2172, %v2172
        %v2189 = vpack.c.bf16 %v2173, %v2173
        %v2190 = vpack.c.bf16 %v2174, %v2174
        %v2191 = vpack.c.bf16 %v2175, %v2175
        %v2192 = vpack.c.bf16 %v2176, %v2176
        %v2193 = vld [vmem:[%s687] sm:$0xf]
        %v2194 = vld [vmem:[%s687 + $0x4] sm:$0xf]
        %v2195 = vld [vmem:[%s687 + $0x8] sm:$0xf]
        %v2196 = vld [vmem:[%s687 + $0xc] sm:$0xf]
        %v2197 = vld [vmem:[%s687 + $0x10] sm:$0xf]
        %v2198 = vld [vmem:[%s687 + $0x14] sm:$0xf]
        %v2199 = vld [vmem:[%s687 + $0x18] sm:$0xf]
        %v2200 = vld [vmem:[%s687 + $0x1c] sm:$0xf]
        %v2201 = vld [vmem:[%s687 + $0x20] sm:$0xf]
        %v2202 = vld [vmem:[%s687 + $0x24] sm:$0xf]
        %v2203 = vld [vmem:[%s687 + $0x28] sm:$0xf]
        %v2204 = vld [vmem:[%s687 + $0x2c] sm:$0xf]
        %v2205 = vld [vmem:[%s687 + $0x30] sm:$0xf]
        %v2206 = vld [vmem:[%s687 + $0x34] sm:$0xf]
        %v2207 = vld [vmem:[%s687 + $0x38] sm:$0xf]
        %v2208 = vld [vmem:[%s687 + $0x3c] sm:$0xf]
        %v2209 = vld [vmem:[%s687 + $0x40] sm:$0xf]
        %v2210 = vld [vmem:[%s687 + $0x44] sm:$0xf]
        %v2211 = vld [vmem:[%s687 + $0x48] sm:$0xf]
        %v2212 = vld [vmem:[%s687 + $0x4c] sm:$0xf]
        %v2213 = vld [vmem:[%s687 + $0x50] sm:$0xf]
        %v2214 = vld [vmem:[%s687 + $0x54] sm:$0xf]
        %v2215 = vld [vmem:[%s687 + $0x58] sm:$0xf]
        %v2216 = vld [vmem:[%s687 + $0x5c] sm:$0xf]
        %v2217 = vld [vmem:[%s687 + $0x60] sm:$0xf]
        %v2218 = vld [vmem:[%s687 + $0x64] sm:$0xf]
        %v2219 = vld [vmem:[%s687 + $0x68] sm:$0xf]
        %v2220 = vld [vmem:[%s687 + $0x6c] sm:$0xf]
        %v2221 = vld [vmem:[%s687 + $0x70] sm:$0xf]
        %v2222 = vld [vmem:[%s687 + $0x74] sm:$0xf]
        %v2223 = vld [vmem:[%s687 + $0x78] sm:$0xf]
        %v2224 = vld [vmem:[%s687 + $0x7c] sm:$0xf]
        %v2225 = vld [vmem:[%s687 + $0x80] sm:$0xf]
        %v2226 = vld [vmem:[%s687 + $0x84] sm:$0xf]
        %v2227 = vld [vmem:[%s687 + $0x88] sm:$0xf]
        %v2228 = vld [vmem:[%s687 + $0x8c] sm:$0xf]
        %v2229 = vld [vmem:[%s687 + $0x90] sm:$0xf]
        %v2230 = vld [vmem:[%s687 + $0x94] sm:$0xf]
        %v2231 = vld [vmem:[%s687 + $0x98] sm:$0xf]
        %v2232 = vld [vmem:[%s687 + $0x9c] sm:$0xf]
        %v2233 = vld [vmem:[%s687 + $0xa0] sm:$0xf]
        %v2234 = vld [vmem:[%s687 + $0xa4] sm:$0xf]
        %v2235 = vld [vmem:[%s687 + $0xa8] sm:$0xf]
        %v2236 = vld [vmem:[%s687 + $0xac] sm:$0xf]
        %v2237 = vld [vmem:[%s687 + $0xb0] sm:$0xf]
        %v2238 = vld [vmem:[%s687 + $0xb4] sm:$0xf]
        %v2239 = vld [vmem:[%s687 + $0xb8] sm:$0xf]
        %v2240 = vld [vmem:[%s687 + $0xbc] sm:$0xf]
        %v2241 = vld [vmem:[%s687 + $0xc0] sm:$0xf]
        %v2242 = vld [vmem:[%s687 + $0xc4] sm:$0xf]
        %v2243 = vld [vmem:[%s687 + $0xc8] sm:$0xf]
        %v2244 = vld [vmem:[%s687 + $0xcc] sm:$0xf]
        %v2245 = vld [vmem:[%s687 + $0xd0] sm:$0xf]
        %v2246 = vld [vmem:[%s687 + $0xd4] sm:$0xf]
        %v2247 = vld [vmem:[%s687 + $0xd8] sm:$0xf]
        %v2248 = vld [vmem:[%s687 + $0xdc] sm:$0xf]
        %v2249 = vld [vmem:[%s687 + $0xe0] sm:$0xf]
        %v2250 = vld [vmem:[%s687 + $0xe4] sm:$0xf]
        %v2251 = vld [vmem:[%s687 + $0xe8] sm:$0xf]
        %v2252 = vld [vmem:[%s687 + $0xec] sm:$0xf]
        %v2253 = vld [vmem:[%s687 + $0xf0] sm:$0xf]
        %v2254 = vld [vmem:[%s687 + $0xf4] sm:$0xf]
        %v2255 = vld [vmem:[%s687 + $0xf8] sm:$0xf]
        %v2256 = vld [vmem:[%s687 + $0xfc] sm:$0xf]
        %v2257 = vld [vmem:[%s687 + $0x100] sm:$0xf]
        %v2258 = vld [vmem:[%s687 + $0x104] sm:$0xf]
        %v2259 = vld [vmem:[%s687 + $0x108] sm:$0xf]
        %v2260 = vld [vmem:[%s687 + $0x10c] sm:$0xf]
        %v2261 = vld [vmem:[%s687 + $0x110] sm:$0xf]
        %v2262 = vld [vmem:[%s687 + $0x114] sm:$0xf]
        %v2263 = vld [vmem:[%s687 + $0x118] sm:$0xf]
        %v2264 = vld [vmem:[%s687 + $0x11c] sm:$0xf]
        %v2265 = vld [vmem:[%s687 + $0x120] sm:$0xf]
        %v2266 = vld [vmem:[%s687 + $0x124] sm:$0xf]
        %v2267 = vld [vmem:[%s687 + $0x128] sm:$0xf]
        %v2268 = vld [vmem:[%s687 + $0x12c] sm:$0xf]
        %v2269 = vld [vmem:[%s687 + $0x130] sm:$0xf]
        %v2270 = vld [vmem:[%s687 + $0x134] sm:$0xf]
        %v2271 = vld [vmem:[%s687 + $0x138] sm:$0xf]
        %v2272 = vld [vmem:[%s687 + $0x13c] sm:$0xf]
        %v2273 = vld [vmem:[%s687 + $0x140] sm:$0xf]
        %v2274 = vld [vmem:[%s687 + $0x144] sm:$0xf]
        %v2275 = vld [vmem:[%s687 + $0x148] sm:$0xf]
        %v2276 = vld [vmem:[%s687 + $0x14c] sm:$0xf]
        %v2277 = vld [vmem:[%s687 + $0x150] sm:$0xf]
        %v2278 = vld [vmem:[%s687 + $0x154] sm:$0xf]
        %v2279 = vld [vmem:[%s687 + $0x158] sm:$0xf]
        %v2280 = vld [vmem:[%s687 + $0x15c] sm:$0xf]
        %v2281 = vld [vmem:[%s687 + $0x160] sm:$0xf]
        %v2282 = vld [vmem:[%s687 + $0x164] sm:$0xf]
        %v2283 = vld [vmem:[%s687 + $0x168] sm:$0xf]
        %v2284 = vld [vmem:[%s687 + $0x16c] sm:$0xf]
        %v2285 = vld [vmem:[%s687 + $0x170] sm:$0xf]
        %v2286 = vld [vmem:[%s687 + $0x174] sm:$0xf]
        %v2287 = vld [vmem:[%s687 + $0x178] sm:$0xf]
        %v2288 = vld [vmem:[%s687 + $0x17c] sm:$0xf]
        %v2289 = vld [vmem:[%s687 + $0x180] sm:$0xf]
        %v2290 = vld [vmem:[%s687 + $0x184] sm:$0xf]
        %v2291 = vld [vmem:[%s687 + $0x188] sm:$0xf]
        %v2292 = vld [vmem:[%s687 + $0x18c] sm:$0xf]
        %v2293 = vld [vmem:[%s687 + $0x190] sm:$0xf]
        %v2294 = vld [vmem:[%s687 + $0x194] sm:$0xf]
        %v2295 = vld [vmem:[%s687 + $0x198] sm:$0xf]
        %v2296 = vld [vmem:[%s687 + $0x19c] sm:$0xf]
        %v2297 = vld [vmem:[%s687 + $0x1a0] sm:$0xf]
        %v2298 = vld [vmem:[%s687 + $0x1a4] sm:$0xf]
        %v2299 = vld [vmem:[%s687 + $0x1a8] sm:$0xf]
        %v2300 = vld [vmem:[%s687 + $0x1ac] sm:$0xf]
        %v2301 = vld [vmem:[%s687 + $0x1b0] sm:$0xf]
        %v2302 = vld [vmem:[%s687 + $0x1b4] sm:$0xf]
        %v2303 = vld [vmem:[%s687 + $0x1b8] sm:$0xf]
        %v2304 = vld [vmem:[%s687 + $0x1bc] sm:$0xf]
        %v2305 = vld [vmem:[%s687 + $0x1c0] sm:$0xf]
        %v2306 = vld [vmem:[%s687 + $0x1c4] sm:$0xf]
        %v2307 = vld [vmem:[%s687 + $0x1c8] sm:$0xf]
        %v2308 = vld [vmem:[%s687 + $0x1cc] sm:$0xf]
        %v2309 = vld [vmem:[%s687 + $0x1d0] sm:$0xf]
        %v2310 = vld [vmem:[%s687 + $0x1d4] sm:$0xf]
        %v2311 = vld [vmem:[%s687 + $0x1d8] sm:$0xf]
        %v2312 = vld [vmem:[%s687 + $0x1dc] sm:$0xf]
        %v2313 = vld [vmem:[%s687 + $0x1e0] sm:$0xf]
        %v2314 = vld [vmem:[%s687 + $0x1e4] sm:$0xf]
        %v2315 = vld [vmem:[%s687 + $0x1e8] sm:$0xf]
        %v2316 = vld [vmem:[%s687 + $0x1ec] sm:$0xf]
        %v2317 = vld [vmem:[%s687 + $0x1f0] sm:$0xf]
        %v2318 = vld [vmem:[%s687 + $0x1f4] sm:$0xf]
        %v2319 = vld [vmem:[%s687 + $0x1f8] sm:$0xf]
        %v2320 = vld [vmem:[%s687 + $0x1fc] sm:$0xf]
        %v2321 = vld [vmem:[%s687 + $0x200] sm:$0xf]
        %v2322 = vld [vmem:[%s687 + $0x204] sm:$0xf]
        %v2323 = vld [vmem:[%s687 + $0x208] sm:$0xf]
        %v2324 = vld [vmem:[%s687 + $0x20c] sm:$0xf]
        %v2325 = vld [vmem:[%s687 + $0x210] sm:$0xf]
        %v2326 = vld [vmem:[%s687 + $0x214] sm:$0xf]
        %v2327 = vld [vmem:[%s687 + $0x218] sm:$0xf]
        %v2328 = vld [vmem:[%s687 + $0x21c] sm:$0xf]
        %v2329 = vld [vmem:[%s687 + $0x220] sm:$0xf]
        %v2330 = vld [vmem:[%s687 + $0x224] sm:$0xf]
        %v2331 = vld [vmem:[%s687 + $0x228] sm:$0xf]
        %v2332 = vld [vmem:[%s687 + $0x22c] sm:$0xf]
        %v2333 = vld [vmem:[%s687 + $0x230] sm:$0xf]
        %v2334 = vld [vmem:[%s687 + $0x234] sm:$0xf]
        %v2335 = vld [vmem:[%s687 + $0x238] sm:$0xf]
        %v2336 = vld [vmem:[%s687 + $0x23c] sm:$0xf]
        %v2337 = vld [vmem:[%s687 + $0x240] sm:$0xf]
        %v2338 = vld [vmem:[%s687 + $0x244] sm:$0xf]
        %v2339 = vld [vmem:[%s687 + $0x248] sm:$0xf]
        %v2340 = vld [vmem:[%s687 + $0x24c] sm:$0xf]
        %v2341 = vld [vmem:[%s687 + $0x250] sm:$0xf]
        %v2342 = vld [vmem:[%s687 + $0x254] sm:$0xf]
        %v2343 = vld [vmem:[%s687 + $0x258] sm:$0xf]
        %v2344 = vld [vmem:[%s687 + $0x25c] sm:$0xf]
        %v2345 = vld [vmem:[%s687 + $0x260] sm:$0xf]
        %v2346 = vld [vmem:[%s687 + $0x264] sm:$0xf]
        %v2347 = vld [vmem:[%s687 + $0x268] sm:$0xf]
        %v2348 = vld [vmem:[%s687 + $0x26c] sm:$0xf]
        %v2349 = vld [vmem:[%s687 + $0x270] sm:$0xf]
        %v2350 = vld [vmem:[%s687 + $0x274] sm:$0xf]
        %v2351 = vld [vmem:[%s687 + $0x278] sm:$0xf]
        %v2352 = vld [vmem:[%s687 + $0x27c] sm:$0xf]
        %v2353 = vld [vmem:[%s687 + $0x280] sm:$0xf]
        %v2354 = vld [vmem:[%s687 + $0x284] sm:$0xf]
        %v2355 = vld [vmem:[%s687 + $0x288] sm:$0xf]
        %v2356 = vld [vmem:[%s687 + $0x28c] sm:$0xf]
        %v2357 = vld [vmem:[%s687 + $0x290] sm:$0xf]
        %v2358 = vld [vmem:[%s687 + $0x294] sm:$0xf]
        %v2359 = vld [vmem:[%s687 + $0x298] sm:$0xf]
        %v2360 = vld [vmem:[%s687 + $0x29c] sm:$0xf]
        %v2361 = vld [vmem:[%s687 + $0x2a0] sm:$0xf]
        %v2362 = vld [vmem:[%s687 + $0x2a4] sm:$0xf]
        %v2363 = vld [vmem:[%s687 + $0x2a8] sm:$0xf]
        %v2364 = vld [vmem:[%s687 + $0x2ac] sm:$0xf]
        %v2365 = vld [vmem:[%s687 + $0x2b0] sm:$0xf]
        %v2366 = vld [vmem:[%s687 + $0x2b4] sm:$0xf]
        %v2367 = vld [vmem:[%s687 + $0x2b8] sm:$0xf]
        %v2368 = vld [vmem:[%s687 + $0x2bc] sm:$0xf]
        %v2369 = vld [vmem:[%s687 + $0x2c0] sm:$0xf]
        %v2370 = vld [vmem:[%s687 + $0x2c4] sm:$0xf]
        %v2371 = vld [vmem:[%s687 + $0x2c8] sm:$0xf]
        %v2372 = vld [vmem:[%s687 + $0x2cc] sm:$0xf]
        %v2373 = vld [vmem:[%s687 + $0x2d0] sm:$0xf]
        %v2374 = vld [vmem:[%s687 + $0x2d4] sm:$0xf]
        %v2375 = vld [vmem:[%s687 + $0x2d8] sm:$0xf]
        %v2376 = vld [vmem:[%s687 + $0x2dc] sm:$0xf]
        %v2377 = vld [vmem:[%s687 + $0x2e0] sm:$0xf]
        %v2378 = vld [vmem:[%s687 + $0x2e4] sm:$0xf]
        %v2379 = vld [vmem:[%s687 + $0x2e8] sm:$0xf]
        %v2380 = vld [vmem:[%s687 + $0x2ec] sm:$0xf]
        %v2381 = vld [vmem:[%s687 + $0x2f0] sm:$0xf]
        %v2382 = vld [vmem:[%s687 + $0x2f4] sm:$0xf]
        %v2383 = vld [vmem:[%s687 + $0x2f8] sm:$0xf]
        %v2384 = vld [vmem:[%s687 + $0x2fc] sm:$0xf]
        %v2385 = vld [vmem:[%s687 + $0x300] sm:$0xf]
        %v2386 = vld [vmem:[%s687 + $0x304] sm:$0xf]
        %v2387 = vld [vmem:[%s687 + $0x308] sm:$0xf]
        %v2388 = vld [vmem:[%s687 + $0x30c] sm:$0xf]
        %v2389 = vld [vmem:[%s687 + $0x310] sm:$0xf]
        %v2390 = vld [vmem:[%s687 + $0x314] sm:$0xf]
        %v2391 = vld [vmem:[%s687 + $0x318] sm:$0xf]
        %v2392 = vld [vmem:[%s687 + $0x31c] sm:$0xf]
        %v2393 = vld [vmem:[%s687 + $0x320] sm:$0xf]
        %v2394 = vld [vmem:[%s687 + $0x324] sm:$0xf]
        %v2395 = vld [vmem:[%s687 + $0x328] sm:$0xf]
        %v2396 = vld [vmem:[%s687 + $0x32c] sm:$0xf]
        %v2397 = vld [vmem:[%s687 + $0x330] sm:$0xf]
        %v2398 = vld [vmem:[%s687 + $0x334] sm:$0xf]
        %v2399 = vld [vmem:[%s687 + $0x338] sm:$0xf]
        %v2400 = vld [vmem:[%s687 + $0x33c] sm:$0xf]
        %v2401 = vld [vmem:[%s687 + $0x340] sm:$0xf]
        %v2402 = vld [vmem:[%s687 + $0x344] sm:$0xf]
        %v2403 = vld [vmem:[%s687 + $0x348] sm:$0xf]
        %v2404 = vld [vmem:[%s687 + $0x34c] sm:$0xf]
        %v2405 = vld [vmem:[%s687 + $0x350] sm:$0xf]
        %v2406 = vld [vmem:[%s687 + $0x354] sm:$0xf]
        %v2407 = vld [vmem:[%s687 + $0x358] sm:$0xf]
        %v2408 = vld [vmem:[%s687 + $0x35c] sm:$0xf]
        %v2409 = vld [vmem:[%s687 + $0x360] sm:$0xf]
        %v2410 = vld [vmem:[%s687 + $0x364] sm:$0xf]
        %v2411 = vld [vmem:[%s687 + $0x368] sm:$0xf]
        %v2412 = vld [vmem:[%s687 + $0x36c] sm:$0xf]
        %v2413 = vld [vmem:[%s687 + $0x370] sm:$0xf]
        %v2414 = vld [vmem:[%s687 + $0x374] sm:$0xf]
        %v2415 = vld [vmem:[%s687 + $0x378] sm:$0xf]
        %v2416 = vld [vmem:[%s687 + $0x37c] sm:$0xf]
        %v2417 = vld [vmem:[%s687 + $0x380] sm:$0xf]
        %v2418 = vld [vmem:[%s687 + $0x384] sm:$0xf]
        %v2419 = vld [vmem:[%s687 + $0x388] sm:$0xf]
        %v2420 = vld [vmem:[%s687 + $0x38c] sm:$0xf]
        %v2421 = vld [vmem:[%s687 + $0x390] sm:$0xf]
        %v2422 = vld [vmem:[%s687 + $0x394] sm:$0xf]
        %v2423 = vld [vmem:[%s687 + $0x398] sm:$0xf]
        %v2424 = vld [vmem:[%s687 + $0x39c] sm:$0xf]
        %v2425 = vld [vmem:[%s687 + $0x3a0] sm:$0xf]
        %v2426 = vld [vmem:[%s687 + $0x3a4] sm:$0xf]
        %v2427 = vld [vmem:[%s687 + $0x3a8] sm:$0xf]
        %v2428 = vld [vmem:[%s687 + $0x3ac] sm:$0xf]
        %v2429 = vld [vmem:[%s687 + $0x3b0] sm:$0xf]
        %v2430 = vld [vmem:[%s687 + $0x3b4] sm:$0xf]
        %v2431 = vld [vmem:[%s687 + $0x3b8] sm:$0xf]
        %v2432 = vld [vmem:[%s687 + $0x3bc] sm:$0xf]
        %v2433 = vld [vmem:[%s687 + $0x3c0] sm:$0xf]
        %v2434 = vld [vmem:[%s687 + $0x3c4] sm:$0xf]
        %v2435 = vld [vmem:[%s687 + $0x3c8] sm:$0xf]
        %v2436 = vld [vmem:[%s687 + $0x3cc] sm:$0xf]
        %v2437 = vld [vmem:[%s687 + $0x3d0] sm:$0xf]
        %v2438 = vld [vmem:[%s687 + $0x3d4] sm:$0xf]
        %v2439 = vld [vmem:[%s687 + $0x3d8] sm:$0xf]
        %v2440 = vld [vmem:[%s687 + $0x3dc] sm:$0xf]
        %v2441 = vld [vmem:[%s687 + $0x3e0] sm:$0xf]
        %v2442 = vld [vmem:[%s687 + $0x3e4] sm:$0xf]
        %v2443 = vld [vmem:[%s687 + $0x3e8] sm:$0xf]
        %v2444 = vld [vmem:[%s687 + $0x3ec] sm:$0xf]
        %v2445 = vld [vmem:[%s687 + $0x3f0] sm:$0xf]
        %v2446 = vld [vmem:[%s687 + $0x3f4] sm:$0xf]
        %v2447 = vld [vmem:[%s687 + $0x3f8] sm:$0xf]
        %v2448 = vld [vmem:[%s687 + $0x3fc] sm:$0xf]
        %v2449 = vld [vmem:[%s690] sm:$0x1]
        %v2451 = vlaneseq
        %v2452 = vshrl.u32 %v2451, 7
        %v2453 = vsub.s32 0, %v2452
        %v2454 = vrot.slane %v2449, %v2453
        %v2712 = vunpack.c.l.b16 %v2193
        %v2713 = vunpack.c.l.b16 %v2194
        %v2714 = vunpack.c.l.b16 %v2195
        %v2715 = vunpack.c.l.b16 %v2196
        %v2716 = vunpack.c.l.b16 %v2197
        %v2717 = vunpack.c.l.b16 %v2198
        %v2718 = vunpack.c.l.b16 %v2199
        %v2719 = vunpack.c.l.b16 %v2200
        %v2720 = vunpack.c.l.b16 %v2201
        %v2721 = vunpack.c.l.b16 %v2202
        %v2722 = vunpack.c.l.b16 %v2203
        %v2723 = vunpack.c.l.b16 %v2204
        %v2724 = vunpack.c.l.b16 %v2205
        %v2725 = vunpack.c.l.b16 %v2206
        %v2726 = vunpack.c.l.b16 %v2207
        %v2727 = vunpack.c.l.b16 %v2208
        %v2728 = vunpack.c.l.b16 %v2209
        %v2729 = vunpack.c.l.b16 %v2210
        %v2730 = vunpack.c.l.b16 %v2211
        %v2731 = vunpack.c.l.b16 %v2212
        %v2732 = vunpack.c.l.b16 %v2213
        %v2733 = vunpack.c.l.b16 %v2214
        %v2734 = vunpack.c.l.b16 %v2215
        %v2735 = vunpack.c.l.b16 %v2216
        %v2736 = vunpack.c.l.b16 %v2217
        %v2737 = vunpack.c.l.b16 %v2218
        %v2738 = vunpack.c.l.b16 %v2219
        %v2739 = vunpack.c.l.b16 %v2220
        %v2740 = vunpack.c.l.b16 %v2221
        %v2741 = vunpack.c.l.b16 %v2222
        %v2742 = vunpack.c.l.b16 %v2223
        %v2743 = vunpack.c.l.b16 %v2224
        %v2744 = vunpack.c.l.b16 %v2225
        %v2745 = vunpack.c.l.b16 %v2226
        %v2746 = vunpack.c.l.b16 %v2227
        %v2747 = vunpack.c.l.b16 %v2228
        %v2748 = vunpack.c.l.b16 %v2229
        %v2749 = vunpack.c.l.b16 %v2230
        %v2750 = vunpack.c.l.b16 %v2231
        %v2751 = vunpack.c.l.b16 %v2232
        %v2752 = vunpack.c.l.b16 %v2233
        %v2753 = vunpack.c.l.b16 %v2234
        %v2754 = vunpack.c.l.b16 %v2235
        %v2755 = vunpack.c.l.b16 %v2236
        %v2756 = vunpack.c.l.b16 %v2237
        %v2757 = vunpack.c.l.b16 %v2238
        %v2758 = vunpack.c.l.b16 %v2239
        %v2759 = vunpack.c.l.b16 %v2240
        %v2760 = vunpack.c.l.b16 %v2241
        %v2761 = vunpack.c.l.b16 %v2242
        %v2762 = vunpack.c.l.b16 %v2243
        %v2763 = vunpack.c.l.b16 %v2244
        %v2764 = vunpack.c.l.b16 %v2245
        %v2765 = vunpack.c.l.b16 %v2246
        %v2766 = vunpack.c.l.b16 %v2247
        %v2767 = vunpack.c.l.b16 %v2248
        %v2768 = vunpack.c.l.b16 %v2249
        %v2769 = vunpack.c.l.b16 %v2250
        %v2770 = vunpack.c.l.b16 %v2251
        %v2771 = vunpack.c.l.b16 %v2252
        %v2772 = vunpack.c.l.b16 %v2253
        %v2773 = vunpack.c.l.b16 %v2254
        %v2774 = vunpack.c.l.b16 %v2255
        %v2775 = vunpack.c.l.b16 %v2256
        %v2776 = vunpack.c.l.b16 %v2257
        %v2777 = vunpack.c.l.b16 %v2258
        %v2778 = vunpack.c.l.b16 %v2259
        %v2779 = vunpack.c.l.b16 %v2260
        %v2780 = vunpack.c.l.b16 %v2261
        %v2781 = vunpack.c.l.b16 %v2262
        %v2782 = vunpack.c.l.b16 %v2263
        %v2783 = vunpack.c.l.b16 %v2264
        %v2784 = vunpack.c.l.b16 %v2265
        %v2785 = vunpack.c.l.b16 %v2266
        %v2786 = vunpack.c.l.b16 %v2267
        %v2787 = vunpack.c.l.b16 %v2268
        %v2788 = vunpack.c.l.b16 %v2269
        %v2789 = vunpack.c.l.b16 %v2270
        %v2790 = vunpack.c.l.b16 %v2271
        %v2791 = vunpack.c.l.b16 %v2272
        %v2792 = vunpack.c.l.b16 %v2273
        %v2793 = vunpack.c.l.b16 %v2274
        %v2794 = vunpack.c.l.b16 %v2275
        %v2795 = vunpack.c.l.b16 %v2276
        %v2796 = vunpack.c.l.b16 %v2277
        %v2797 = vunpack.c.l.b16 %v2278
        %v2798 = vunpack.c.l.b16 %v2279
        %v2799 = vunpack.c.l.b16 %v2280
        %v2800 = vunpack.c.l.b16 %v2281
        %v2801 = vunpack.c.l.b16 %v2282
        %v2802 = vunpack.c.l.b16 %v2283
        %v2803 = vunpack.c.l.b16 %v2284
        %v2804 = vunpack.c.l.b16 %v2285
        %v2805 = vunpack.c.l.b16 %v2286
        %v2806 = vunpack.c.l.b16 %v2287
        %v2807 = vunpack.c.l.b16 %v2288
        %v2808 = vunpack.c.l.b16 %v2289
        %v2809 = vunpack.c.l.b16 %v2290
        %v2810 = vunpack.c.l.b16 %v2291
        %v2811 = vunpack.c.l.b16 %v2292
        %v2812 = vunpack.c.l.b16 %v2293
        %v2813 = vunpack.c.l.b16 %v2294
        %v2814 = vunpack.c.l.b16 %v2295
        %v2815 = vunpack.c.l.b16 %v2296
        %v2816 = vunpack.c.l.b16 %v2297
        %v2817 = vunpack.c.l.b16 %v2298
        %v2818 = vunpack.c.l.b16 %v2299
        %v2819 = vunpack.c.l.b16 %v2300
        %v2820 = vunpack.c.l.b16 %v2301
        %v2821 = vunpack.c.l.b16 %v2302
        %v2822 = vunpack.c.l.b16 %v2303
        %v2823 = vunpack.c.l.b16 %v2304
        %v2824 = vunpack.c.l.b16 %v2305
        %v2825 = vunpack.c.l.b16 %v2306
        %v2826 = vunpack.c.l.b16 %v2307
        %v2827 = vunpack.c.l.b16 %v2308
        %v2828 = vunpack.c.l.b16 %v2309
        %v2829 = vunpack.c.l.b16 %v2310
        %v2830 = vunpack.c.l.b16 %v2311
        %v2831 = vunpack.c.l.b16 %v2312
        %v2832 = vunpack.c.l.b16 %v2313
        %v2833 = vunpack.c.l.b16 %v2314
        %v2834 = vunpack.c.l.b16 %v2315
        %v2835 = vunpack.c.l.b16 %v2316
        %v2836 = vunpack.c.l.b16 %v2317
        %v2837 = vunpack.c.l.b16 %v2318
        %v2838 = vunpack.c.l.b16 %v2319
        %v2839 = vunpack.c.l.b16 %v2320
        %v2840 = vunpack.c.l.b16 %v2321
        %v2841 = vunpack.c.l.b16 %v2322
        %v2842 = vunpack.c.l.b16 %v2323
        %v2843 = vunpack.c.l.b16 %v2324
        %v2844 = vunpack.c.l.b16 %v2325
        %v2845 = vunpack.c.l.b16 %v2326
        %v2846 = vunpack.c.l.b16 %v2327
        %v2847 = vunpack.c.l.b16 %v2328
        %v2848 = vunpack.c.l.b16 %v2329
        %v2849 = vunpack.c.l.b16 %v2330
        %v2850 = vunpack.c.l.b16 %v2331
        %v2851 = vunpack.c.l.b16 %v2332
        %v2852 = vunpack.c.l.b16 %v2333
        %v2853 = vunpack.c.l.b16 %v2334
        %v2854 = vunpack.c.l.b16 %v2335
        %v2855 = vunpack.c.l.b16 %v2336
        %v2856 = vunpack.c.l.b16 %v2337
        %v2857 = vunpack.c.l.b16 %v2338
        %v2858 = vunpack.c.l.b16 %v2339
        %v2859 = vunpack.c.l.b16 %v2340
        %v2860 = vunpack.c.l.b16 %v2341
        %v2861 = vunpack.c.l.b16 %v2342
        %v2862 = vunpack.c.l.b16 %v2343
        %v2863 = vunpack.c.l.b16 %v2344
        %v2864 = vunpack.c.l.b16 %v2345
        %v2865 = vunpack.c.l.b16 %v2346
        %v2866 = vunpack.c.l.b16 %v2347
        %v2867 = vunpack.c.l.b16 %v2348
        %v2868 = vunpack.c.l.b16 %v2349
        %v2869 = vunpack.c.l.b16 %v2350
        %v2870 = vunpack.c.l.b16 %v2351
        %v2871 = vunpack.c.l.b16 %v2352
        %v2872 = vunpack.c.l.b16 %v2353
        %v2873 = vunpack.c.l.b16 %v2354
        %v2874 = vunpack.c.l.b16 %v2355
        %v2875 = vunpack.c.l.b16 %v2356
        %v2876 = vunpack.c.l.b16 %v2357
        %v2877 = vunpack.c.l.b16 %v2358
        %v2878 = vunpack.c.l.b16 %v2359
        %v2879 = vunpack.c.l.b16 %v2360
        %v2880 = vunpack.c.l.b16 %v2361
        %v2881 = vunpack.c.l.b16 %v2362
        %v2882 = vunpack.c.l.b16 %v2363
        %v2883 = vunpack.c.l.b16 %v2364
        %v2884 = vunpack.c.l.b16 %v2365
        %v2885 = vunpack.c.l.b16 %v2366
        %v2886 = vunpack.c.l.b16 %v2367
        %v2887 = vunpack.c.l.b16 %v2368
        %v2888 = vunpack.c.l.b16 %v2369
        %v2889 = vunpack.c.l.b16 %v2370
        %v2890 = vunpack.c.l.b16 %v2371
        %v2891 = vunpack.c.l.b16 %v2372
        %v2892 = vunpack.c.l.b16 %v2373
        %v2893 = vunpack.c.l.b16 %v2374
        %v2894 = vunpack.c.l.b16 %v2375
        %v2895 = vunpack.c.l.b16 %v2376
        %v2896 = vunpack.c.l.b16 %v2377
        %v2897 = vunpack.c.l.b16 %v2378
        %v2898 = vunpack.c.l.b16 %v2379
        %v2899 = vunpack.c.l.b16 %v2380
        %v2900 = vunpack.c.l.b16 %v2381
        %v2901 = vunpack.c.l.b16 %v2382
        %v2902 = vunpack.c.l.b16 %v2383
        %v2903 = vunpack.c.l.b16 %v2384
        %v2904 = vunpack.c.l.b16 %v2385
        %v2905 = vunpack.c.l.b16 %v2386
        %v2906 = vunpack.c.l.b16 %v2387
        %v2907 = vunpack.c.l.b16 %v2388
        %v2908 = vunpack.c.l.b16 %v2389
        %v2909 = vunpack.c.l.b16 %v2390
        %v2910 = vunpack.c.l.b16 %v2391
        %v2911 = vunpack.c.l.b16 %v2392
        %v2912 = vunpack.c.l.b16 %v2393
        %v2913 = vunpack.c.l.b16 %v2394
        %v2914 = vunpack.c.l.b16 %v2395
        %v2915 = vunpack.c.l.b16 %v2396
        %v2916 = vunpack.c.l.b16 %v2397
        %v2917 = vunpack.c.l.b16 %v2398
        %v2918 = vunpack.c.l.b16 %v2399
        %v2919 = vunpack.c.l.b16 %v2400
        %v2920 = vunpack.c.l.b16 %v2401
        %v2921 = vunpack.c.l.b16 %v2402
        %v2922 = vunpack.c.l.b16 %v2403
        %v2923 = vunpack.c.l.b16 %v2404
        %v2924 = vunpack.c.l.b16 %v2405
        %v2925 = vunpack.c.l.b16 %v2406
        %v2926 = vunpack.c.l.b16 %v2407
        %v2927 = vunpack.c.l.b16 %v2408
        %v2928 = vunpack.c.l.b16 %v2409
        %v2929 = vunpack.c.l.b16 %v2410
        %v2930 = vunpack.c.l.b16 %v2411
        %v2931 = vunpack.c.l.b16 %v2412
        %v2932 = vunpack.c.l.b16 %v2413
        %v2933 = vunpack.c.l.b16 %v2414
        %v2934 = vunpack.c.l.b16 %v2415
        %v2935 = vunpack.c.l.b16 %v2416
        %v2936 = vunpack.c.l.b16 %v2417
        %v2937 = vunpack.c.l.b16 %v2418
        %v2938 = vunpack.c.l.b16 %v2419
        %v2939 = vunpack.c.l.b16 %v2420
        %v2940 = vunpack.c.l.b16 %v2421
        %v2941 = vunpack.c.l.b16 %v2422
        %v2942 = vunpack.c.l.b16 %v2423
        %v2943 = vunpack.c.l.b16 %v2424
        %v2944 = vunpack.c.l.b16 %v2425
        %v2945 = vunpack.c.l.b16 %v2426
        %v2946 = vunpack.c.l.b16 %v2427
        %v2947 = vunpack.c.l.b16 %v2428
        %v2948 = vunpack.c.l.b16 %v2429
        %v2949 = vunpack.c.l.b16 %v2430
        %v2950 = vunpack.c.l.b16 %v2431
        %v2951 = vunpack.c.l.b16 %v2432
        %v2952 = vunpack.c.l.b16 %v2433
        %v2953 = vunpack.c.l.b16 %v2434
        %v2954 = vunpack.c.l.b16 %v2435
        %v2955 = vunpack.c.l.b16 %v2436
        %v2956 = vunpack.c.l.b16 %v2437
        %v2957 = vunpack.c.l.b16 %v2438
        %v2958 = vunpack.c.l.b16 %v2439
        %v2959 = vunpack.c.l.b16 %v2440
        %v2960 = vunpack.c.l.b16 %v2441
        %v2961 = vunpack.c.l.b16 %v2442
        %v2962 = vunpack.c.l.b16 %v2443
        %v2963 = vunpack.c.l.b16 %v2444
        %v2964 = vunpack.c.l.b16 %v2445
        %v2965 = vunpack.c.l.b16 %v2446
        %v2966 = vunpack.c.l.b16 %v2447
        %v2967 = vunpack.c.l.b16 %v2448
        %v2968 = vpack.c.b16 %v2713, %v2712
        %v2969 = vpack.c.b16 %v2715, %v2714
        %v2970 = vpack.c.b16 %v2717, %v2716
        %v2971 = vpack.c.b16 %v2719, %v2718
        %v2972 = vpack.c.b16 %v2721, %v2720
        %v2973 = vpack.c.b16 %v2723, %v2722
        %v2974 = vpack.c.b16 %v2725, %v2724
        %v2975 = vpack.c.b16 %v2727, %v2726
        %v2976 = vpack.c.b16 %v2729, %v2728
        %v2977 = vpack.c.b16 %v2731, %v2730
        %v2978 = vpack.c.b16 %v2733, %v2732
        %v2979 = vpack.c.b16 %v2735, %v2734
        %v2980 = vpack.c.b16 %v2737, %v2736
        %v2981 = vpack.c.b16 %v2739, %v2738
        %v2982 = vpack.c.b16 %v2741, %v2740
        %v2983 = vpack.c.b16 %v2743, %v2742
        %v2984 = vpack.c.b16 %v2745, %v2744
        %v2985 = vpack.c.b16 %v2747, %v2746
        %v2986 = vpack.c.b16 %v2749, %v2748
        %v2987 = vpack.c.b16 %v2751, %v2750
        %v2988 = vpack.c.b16 %v2753, %v2752
        %v2989 = vpack.c.b16 %v2755, %v2754
        %v2990 = vpack.c.b16 %v2757, %v2756
        %v2991 = vpack.c.b16 %v2759, %v2758
        %v2992 = vpack.c.b16 %v2761, %v2760
        %v2993 = vpack.c.b16 %v2763, %v2762
        %v2994 = vpack.c.b16 %v2765, %v2764
        %v2995 = vpack.c.b16 %v2767, %v2766
        %v2996 = vpack.c.b16 %v2769, %v2768
        %v2997 = vpack.c.b16 %v2771, %v2770
        %v2998 = vpack.c.b16 %v2773, %v2772
        %v2999 = vpack.c.b16 %v2775, %v2774
        %v3000 = vpack.c.b16 %v2777, %v2776
        %v3001 = vpack.c.b16 %v2779, %v2778
        %v3002 = vpack.c.b16 %v2781, %v2780
        %v3003 = vpack.c.b16 %v2783, %v2782
        %v3004 = vpack.c.b16 %v2785, %v2784
        %v3005 = vpack.c.b16 %v2787, %v2786
        %v3006 = vpack.c.b16 %v2789, %v2788
        %v3007 = vpack.c.b16 %v2791, %v2790
        %v3008 = vpack.c.b16 %v2793, %v2792
        %v3009 = vpack.c.b16 %v2795, %v2794
        %v3010 = vpack.c.b16 %v2797, %v2796
        %v3011 = vpack.c.b16 %v2799, %v2798
        %v3012 = vpack.c.b16 %v2801, %v2800
        %v3013 = vpack.c.b16 %v2803, %v2802
        %v3014 = vpack.c.b16 %v2805, %v2804
        %v3015 = vpack.c.b16 %v2807, %v2806
        %v3016 = vpack.c.b16 %v2809, %v2808
        %v3017 = vpack.c.b16 %v2811, %v2810
        %v3018 = vpack.c.b16 %v2813, %v2812
        %v3019 = vpack.c.b16 %v2815, %v2814
        %v3020 = vpack.c.b16 %v2817, %v2816
        %v3021 = vpack.c.b16 %v2819, %v2818
        %v3022 = vpack.c.b16 %v2821, %v2820
        %v3023 = vpack.c.b16 %v2823, %v2822
        %v3024 = vpack.c.b16 %v2825, %v2824
        %v3025 = vpack.c.b16 %v2827, %v2826
        %v3026 = vpack.c.b16 %v2829, %v2828
        %v3027 = vpack.c.b16 %v2831, %v2830
        %v3028 = vpack.c.b16 %v2833, %v2832
        %v3029 = vpack.c.b16 %v2835, %v2834
        %v3030 = vpack.c.b16 %v2837, %v2836
        %v3031 = vpack.c.b16 %v2839, %v2838
        %v3032 = vpack.c.b16 %v2841, %v2840
        %v3033 = vpack.c.b16 %v2843, %v2842
        %v3034 = vpack.c.b16 %v2845, %v2844
        %v3035 = vpack.c.b16 %v2847, %v2846
        %v3036 = vpack.c.b16 %v2849, %v2848
        %v3037 = vpack.c.b16 %v2851, %v2850
        %v3038 = vpack.c.b16 %v2853, %v2852
        %v3039 = vpack.c.b16 %v2855, %v2854
        %v3040 = vpack.c.b16 %v2857, %v2856
        %v3041 = vpack.c.b16 %v2859, %v2858
        %v3042 = vpack.c.b16 %v2861, %v2860
        %v3043 = vpack.c.b16 %v2863, %v2862
        %v3044 = vpack.c.b16 %v2865, %v2864
        %v3045 = vpack.c.b16 %v2867, %v2866
        %v3046 = vpack.c.b16 %v2869, %v2868
        %v3047 = vpack.c.b16 %v2871, %v2870
        %v3048 = vpack.c.b16 %v2873, %v2872
        %v3049 = vpack.c.b16 %v2875, %v2874
        %v3050 = vpack.c.b16 %v2877, %v2876
        %v3051 = vpack.c.b16 %v2879, %v2878
        %v3052 = vpack.c.b16 %v2881, %v2880
        %v3053 = vpack.c.b16 %v2883, %v2882
        %v3054 = vpack.c.b16 %v2885, %v2884
        %v3055 = vpack.c.b16 %v2887, %v2886
        %v3056 = vpack.c.b16 %v2889, %v2888
        %v3057 = vpack.c.b16 %v2891, %v2890
        %v3058 = vpack.c.b16 %v2893, %v2892
        %v3059 = vpack.c.b16 %v2895, %v2894
        %v3060 = vpack.c.b16 %v2897, %v2896
        %v3061 = vpack.c.b16 %v2899, %v2898
        %v3062 = vpack.c.b16 %v2901, %v2900
        %v3063 = vpack.c.b16 %v2903, %v2902
        %v3064 = vpack.c.b16 %v2905, %v2904
        %v3065 = vpack.c.b16 %v2907, %v2906
        %v3066 = vpack.c.b16 %v2909, %v2908
        %v3067 = vpack.c.b16 %v2911, %v2910
        %v3068 = vpack.c.b16 %v2913, %v2912
        %v3069 = vpack.c.b16 %v2915, %v2914
        %v3070 = vpack.c.b16 %v2917, %v2916
        %v3071 = vpack.c.b16 %v2919, %v2918
        %v3072 = vpack.c.b16 %v2921, %v2920
        %v3073 = vpack.c.b16 %v2923, %v2922
        %v3074 = vpack.c.b16 %v2925, %v2924
        %v3075 = vpack.c.b16 %v2927, %v2926
        %v3076 = vpack.c.b16 %v2929, %v2928
        %v3077 = vpack.c.b16 %v2931, %v2930
        %v3078 = vpack.c.b16 %v2933, %v2932
        %v3079 = vpack.c.b16 %v2935, %v2934
        %v3080 = vpack.c.b16 %v2937, %v2936
        %v3081 = vpack.c.b16 %v2939, %v2938
        %v3082 = vpack.c.b16 %v2941, %v2940
        %v3083 = vpack.c.b16 %v2943, %v2942
        %v3084 = vpack.c.b16 %v2945, %v2944
        %v3085 = vpack.c.b16 %v2947, %v2946
        %v3086 = vpack.c.b16 %v2949, %v2948
        %v3087 = vpack.c.b16 %v2951, %v2950
        %v3088 = vpack.c.b16 %v2953, %v2952
        %v3089 = vpack.c.b16 %v2955, %v2954
        %v3090 = vpack.c.b16 %v2957, %v2956
        %v3091 = vpack.c.b16 %v2959, %v2958
        %v3092 = vpack.c.b16 %v2961, %v2960
        %v3093 = vpack.c.b16 %v2963, %v2962
        %v3094 = vpack.c.b16 %v2965, %v2964
        %v3095 = vpack.c.b16 %v2967, %v2966
        %3224 = vmatprep.subr.bf16.mxu0 0
        %3225 = vmatpush1.bf16.msra.mxu0 %v2975
        %3226 = vmatprep.subr.bf16.mxu0 0
        %3227 = vmatpush1.bf16.msra.mxu0 %v2974
        %3228 = vmatprep.subr.bf16.mxu0 0
        %3229 = vmatpush1.bf16.msra.mxu0 %v2973
        %3230 = vmatprep.subr.bf16.mxu0 0
        %3231 = vmatpush1.bf16.msra.mxu0 %v2972
        %3232 = vmatprep.subr.bf16.mxu0 0
        %3233 = vmatpush1.bf16.msra.mxu0 %v2971
        %3234 = vmatprep.subr.bf16.mxu0 0
        %3235 = vmatpush1.bf16.msra.mxu0 %v2970
        %3236 = vmatprep.subr.bf16.mxu0 0
        %3237 = vmatpush1.bf16.msra.mxu0 %v2969
        %3238 = vmatprep.subr.bf16.mxu0 0
        %3239 = vmatpush1.bf16.msra.mxu0 %v2968
        %3240 = vmatprep.subr.bf16.mxu0 0
        %3241 = vmatpush2.bf16.msra.mxu0 %v2983
        %3242 = vmatprep.subr.bf16.mxu0 0
        %3243 = vmatpush2.bf16.msra.mxu0 %v2982
        %3244 = vmatprep.subr.bf16.mxu0 0
        %3245 = vmatpush2.bf16.msra.mxu0 %v2981
        %3246 = vmatprep.subr.bf16.mxu0 0
        %3247 = vmatpush2.bf16.msra.mxu0 %v2980
        %3248 = vmatprep.subr.bf16.mxu0 0
        %3249 = vmatpush2.bf16.msra.mxu0 %v2979
        %3250 = vmatprep.subr.bf16.mxu0 0
        %3251 = vmatpush2.bf16.msra.mxu0 %v2978
        %3252 = vmatprep.subr.bf16.mxu0 0
        %3253 = vmatpush2.bf16.msra.mxu0 %v2977
        %3254 = vmatprep.subr.bf16.mxu0 0
        %3255 = vmatpush2.bf16.msra.mxu0 %v2976
        %3256 = vmatprep.mubr.bf16.mxu0 %v2178
        %3257 = vmatmul.mubr.bf16.gmra.mxu0 %v2177
        %v3258 = vpop.f32.mrf.mxu0
        %v3259 = vadd.f32 %v2454, %v3258
        %v3260 = vpop.f32.mrf.mxu0
        %v3261 = vpop.f32.mrf.mxu0
        %v3262 = vpop.f32.mrf.mxu0
        %3263 = vdwg.mxu0
        %3264 = vmatprep.subr.bf16.mxu0 0
        %3265 = vmatpush1.bf16.msra.mxu0 %v2991
        %3266 = vmatprep.subr.bf16.mxu0 0
        %3267 = vmatpush1.bf16.msra.mxu0 %v2990
        %3268 = vmatprep.subr.bf16.mxu0 0
        %3269 = vmatpush1.bf16.msra.mxu0 %v2989
        %3270 = vmatprep.subr.bf16.mxu0 0
        %3271 = vmatpush1.bf16.msra.mxu0 %v2988
        %3272 = vmatprep.subr.bf16.mxu0 0
        %3273 = vmatpush1.bf16.msra.mxu0 %v2987
        %3274 = vmatprep.subr.bf16.mxu0 0
        %3275 = vmatpush1.bf16.msra.mxu0 %v2986
        %3276 = vmatprep.subr.bf16.mxu0 0
        %3277 = vmatpush1.bf16.msra.mxu0 %v2985
        %3278 = vmatprep.subr.bf16.mxu0 0
        %3279 = vmatpush1.bf16.msra.mxu0 %v2984
        %3280 = vmatprep.subr.bf16.mxu0 0
        %3281 = vmatpush2.bf16.msra.mxu0 %v2999
        %3282 = vmatprep.subr.bf16.mxu0 0
        %3283 = vmatpush2.bf16.msra.mxu0 %v2998
        %3284 = vmatprep.subr.bf16.mxu0 0
        %3285 = vmatpush2.bf16.msra.mxu0 %v2997
        %3286 = vmatprep.subr.bf16.mxu0 0
        %3287 = vmatpush2.bf16.msra.mxu0 %v2996
        %3288 = vmatprep.subr.bf16.mxu0 0
        %3289 = vmatpush2.bf16.msra.mxu0 %v2995
        %3290 = vmatprep.subr.bf16.mxu0 0
        %3291 = vmatpush2.bf16.msra.mxu0 %v2994
        %3292 = vmatprep.subr.bf16.mxu0 0
        %3293 = vmatpush2.bf16.msra.mxu0 %v2993
        %3294 = vmatprep.subr.bf16.mxu0 0
        %3295 = vmatpush2.bf16.msra.mxu0 %v2992
        %3296 = vmatprep.mubr.bf16.mxu0 %v2180
        %3297 = vmatmul.mubr.bf16.gmra.mxu0 %v2179
        %v3298 = vpop.f32.mrf.mxu0
        %v3299 = vadd.f32 %v3259, %v3298
        %v3300 = vpop.f32.mrf.mxu0
        %v3301 = vpop.f32.mrf.mxu0
        %v3302 = vpop.f32.mrf.mxu0
        %3303 = vdwg.mxu0
        %3304 = vmatprep.subr.bf16.mxu0 0
        %3305 = vmatpush1.bf16.msra.mxu0 %v3007
        %3306 = vmatprep.subr.bf16.mxu0 0
        %3307 = vmatpush1.bf16.msra.mxu0 %v3006
        %3308 = vmatprep.subr.bf16.mxu0 0
        %3309 = vmatpush1.bf16.msra.mxu0 %v3005
        %3310 = vmatprep.subr.bf16.mxu0 0
        %3311 = vmatpush1.bf16.msra.mxu0 %v3004
        %3312 = vmatprep.subr.bf16.mxu0 0
        %3313 = vmatpush1.bf16.msra.mxu0 %v3003
        %3314 = vmatprep.subr.bf16.mxu0 0
        %3315 = vmatpush1.bf16.msra.mxu0 %v3002
        %3316 = vmatprep.subr.bf16.mxu0 0
        %3317 = vmatpush1.bf16.msra.mxu0 %v3001
        %3318 = vmatprep.subr.bf16.mxu0 0
        %3319 = vmatpush1.bf16.msra.mxu0 %v3000
        %3320 = vmatprep.subr.bf16.mxu0 0
        %3321 = vmatpush2.bf16.msra.mxu0 %v3015
        %3322 = vmatprep.subr.bf16.mxu0 0
        %3323 = vmatpush2.bf16.msra.mxu0 %v3014
        %3324 = vmatprep.subr.bf16.mxu0 0
        %3325 = vmatpush2.bf16.msra.mxu0 %v3013
        %3326 = vmatprep.subr.bf16.mxu0 0
        %3327 = vmatpush2.bf16.msra.mxu0 %v3012
        %3328 = vmatprep.subr.bf16.mxu0 0
        %3329 = vmatpush2.bf16.msra.mxu0 %v3011
        %3330 = vmatprep.subr.bf16.mxu0 0
        %3331 = vmatpush2.bf16.msra.mxu0 %v3010
        %3332 = vmatprep.subr.bf16.mxu0 0
        %3333 = vmatpush2.bf16.msra.mxu0 %v3009
        %3334 = vmatprep.subr.bf16.mxu0 0
        %3335 = vmatpush2.bf16.msra.mxu0 %v3008
        %3336 = vmatprep.mubr.bf16.mxu0 %v2182
        %3337 = vmatmul.mubr.bf16.gmra.mxu0 %v2181
        %v3338 = vpop.f32.mrf.mxu0
        %v3339 = vadd.f32 %v3299, %v3338
        %v3340 = vpop.f32.mrf.mxu0
        %v3341 = vpop.f32.mrf.mxu0
        %v3342 = vpop.f32.mrf.mxu0
        %3343 = vdwg.mxu0
        %3344 = vmatprep.subr.bf16.mxu0 0
        %3345 = vmatpush1.bf16.msra.mxu0 %v3023
        %3346 = vmatprep.subr.bf16.mxu0 0
        %3347 = vmatpush1.bf16.msra.mxu0 %v3022
        %3348 = vmatprep.subr.bf16.mxu0 0
        %3349 = vmatpush1.bf16.msra.mxu0 %v3021
        %3350 = vmatprep.subr.bf16.mxu0 0
        %3351 = vmatpush1.bf16.msra.mxu0 %v3020
        %3352 = vmatprep.subr.bf16.mxu0 0
        %3353 = vmatpush1.bf16.msra.mxu0 %v3019
        %3354 = vmatprep.subr.bf16.mxu0 0
        %3355 = vmatpush1.bf16.msra.mxu0 %v3018
        %3356 = vmatprep.subr.bf16.mxu0 0
        %3357 = vmatpush1.bf16.msra.mxu0 %v3017
        %3358 = vmatprep.subr.bf16.mxu0 0
        %3359 = vmatpush1.bf16.msra.mxu0 %v3016
        %3360 = vmatprep.subr.bf16.mxu0 0
        %3361 = vmatpush2.bf16.msra.mxu0 %v3031
        %3362 = vmatprep.subr.bf16.mxu0 0
        %3363 = vmatpush2.bf16.msra.mxu0 %v3030
        %3364 = vmatprep.subr.bf16.mxu0 0
        %3365 = vmatpush2.bf16.msra.mxu0 %v3029
        %3366 = vmatprep.subr.bf16.mxu0 0
        %3367 = vmatpush2.bf16.msra.mxu0 %v3028
        %3368 = vmatprep.subr.bf16.mxu0 0
        %3369 = vmatpush2.bf16.msra.mxu0 %v3027
        %3370 = vmatprep.subr.bf16.mxu0 0
        %3371 = vmatpush2.bf16.msra.mxu0 %v3026
        %3372 = vmatprep.subr.bf16.mxu0 0
        %3373 = vmatpush2.bf16.msra.mxu0 %v3025
        %3374 = vmatprep.subr.bf16.mxu0 0
        %3375 = vmatpush2.bf16.msra.mxu0 %v3024
        %3376 = vmatprep.mubr.bf16.mxu0 %v2184
        %3377 = vmatmul.mubr.bf16.gmra.mxu0 %v2183
        %v3378 = vpop.f32.mrf.mxu0
        %v3379 = vadd.f32 %v3339, %v3378
        %v3380 = vpop.f32.mrf.mxu0
        %v3381 = vpop.f32.mrf.mxu0
        %v3382 = vpop.f32.mrf.mxu0
        %3383 = vdwg.mxu0
        %3384 = vmatprep.subr.bf16.mxu0 0
        %3385 = vmatpush1.bf16.msra.mxu0 %v3039
        %3386 = vmatprep.subr.bf16.mxu0 0
        %3387 = vmatpush1.bf16.msra.mxu0 %v3038
        %3388 = vmatprep.subr.bf16.mxu0 0
        %3389 = vmatpush1.bf16.msra.mxu0 %v3037
        %3390 = vmatprep.subr.bf16.mxu0 0
        %3391 = vmatpush1.bf16.msra.mxu0 %v3036
        %3392 = vmatprep.subr.bf16.mxu0 0
        %3393 = vmatpush1.bf16.msra.mxu0 %v3035
        %3394 = vmatprep.subr.bf16.mxu0 0
        %3395 = vmatpush1.bf16.msra.mxu0 %v3034
        %3396 = vmatprep.subr.bf16.mxu0 0
        %3397 = vmatpush1.bf16.msra.mxu0 %v3033
        %3398 = vmatprep.subr.bf16.mxu0 0
        %3399 = vmatpush1.bf16.msra.mxu0 %v3032
        %3400 = vmatprep.subr.bf16.mxu0 0
        %3401 = vmatpush2.bf16.msra.mxu0 %v3047
        %3402 = vmatprep.subr.bf16.mxu0 0
        %3403 = vmatpush2.bf16.msra.mxu0 %v3046
        %3404 = vmatprep.subr.bf16.mxu0 0
        %3405 = vmatpush2.bf16.msra.mxu0 %v3045
        %3406 = vmatprep.subr.bf16.mxu0 0
        %3407 = vmatpush2.bf16.msra.mxu0 %v3044
        %3408 = vmatprep.subr.bf16.mxu0 0
        %3409 = vmatpush2.bf16.msra.mxu0 %v3043
        %3410 = vmatprep.subr.bf16.mxu0 0
        %3411 = vmatpush2.bf16.msra.mxu0 %v3042
        %3412 = vmatprep.subr.bf16.mxu0 0
        %3413 = vmatpush2.bf16.msra.mxu0 %v3041
        %3414 = vmatprep.subr.bf16.mxu0 0
        %3415 = vmatpush2.bf16.msra.mxu0 %v3040
        %3416 = vmatprep.mubr.bf16.mxu0 %v2186
        %3417 = vmatmul.mubr.bf16.gmra.mxu0 %v2185
        %v3418 = vpop.f32.mrf.mxu0
        %v3419 = vadd.f32 %v3379, %v3418
        %v3420 = vpop.f32.mrf.mxu0
        %v3421 = vpop.f32.mrf.mxu0
        %v3422 = vpop.f32.mrf.mxu0
        %3423 = vdwg.mxu0
        %3424 = vmatprep.subr.bf16.mxu0 0
        %3425 = vmatpush1.bf16.msra.mxu0 %v3055
        %3426 = vmatprep.subr.bf16.mxu0 0
        %3427 = vmatpush1.bf16.msra.mxu0 %v3054
        %3428 = vmatprep.subr.bf16.mxu0 0
        %3429 = vmatpush1.bf16.msra.mxu0 %v3053
        %3430 = vmatprep.subr.bf16.mxu0 0
        %3431 = vmatpush1.bf16.msra.mxu0 %v3052
        %3432 = vmatprep.subr.bf16.mxu0 0
        %3433 = vmatpush1.bf16.msra.mxu0 %v3051
        %3434 = vmatprep.subr.bf16.mxu0 0
        %3435 = vmatpush1.bf16.msra.mxu0 %v3050
        %3436 = vmatprep.subr.bf16.mxu0 0
        %3437 = vmatpush1.bf16.msra.mxu0 %v3049
        %3438 = vmatprep.subr.bf16.mxu0 0
        %3439 = vmatpush1.bf16.msra.mxu0 %v3048
        %3440 = vmatprep.subr.bf16.mxu0 0
        %3441 = vmatpush2.bf16.msra.mxu0 %v3063
        %3442 = vmatprep.subr.bf16.mxu0 0
        %3443 = vmatpush2.bf16.msra.mxu0 %v3062
        %3444 = vmatprep.subr.bf16.mxu0 0
        %3445 = vmatpush2.bf16.msra.mxu0 %v3061
        %3446 = vmatprep.subr.bf16.mxu0 0
        %3447 = vmatpush2.bf16.msra.mxu0 %v3060
        %3448 = vmatprep.subr.bf16.mxu0 0
        %3449 = vmatpush2.bf16.msra.mxu0 %v3059
        %3450 = vmatprep.subr.bf16.mxu0 0
        %3451 = vmatpush2.bf16.msra.mxu0 %v3058
        %3452 = vmatprep.subr.bf16.mxu0 0
        %3453 = vmatpush2.bf16.msra.mxu0 %v3057
        %3454 = vmatprep.subr.bf16.mxu0 0
        %3455 = vmatpush2.bf16.msra.mxu0 %v3056
        %3456 = vmatprep.mubr.bf16.mxu0 %v2188
        %3457 = vmatmul.mubr.bf16.gmra.mxu0 %v2187
        %v3458 = vpop.f32.mrf.mxu0
        %v3459 = vadd.f32 %v3419, %v3458
        %v3460 = vpop.f32.mrf.mxu0
        %v3461 = vpop.f32.mrf.mxu0
        %v3462 = vpop.f32.mrf.mxu0
        %3463 = vdwg.mxu0
        %3464 = vmatprep.subr.bf16.mxu0 0
        %3465 = vmatpush1.bf16.msra.mxu0 %v3071
        %3466 = vmatprep.subr.bf16.mxu0 0
        %3467 = vmatpush1.bf16.msra.mxu0 %v3070
        %3468 = vmatprep.subr.bf16.mxu0 0
        %3469 = vmatpush1.bf16.msra.mxu0 %v3069
        %3470 = vmatprep.subr.bf16.mxu0 0
        %3471 = vmatpush1.bf16.msra.mxu0 %v3068
        %3472 = vmatprep.subr.bf16.mxu0 0
        %3473 = vmatpush1.bf16.msra.mxu0 %v3067
        %3474 = vmatprep.subr.bf16.mxu0 0
        %3475 = vmatpush1.bf16.msra.mxu0 %v3066
        %3476 = vmatprep.subr.bf16.mxu0 0
        %3477 = vmatpush1.bf16.msra.mxu0 %v3065
        %3478 = vmatprep.subr.bf16.mxu0 0
        %3479 = vmatpush1.bf16.msra.mxu0 %v3064
        %3480 = vmatprep.subr.bf16.mxu0 0
        %3481 = vmatpush2.bf16.msra.mxu0 %v3079
        %3482 = vmatprep.subr.bf16.mxu0 0
        %3483 = vmatpush2.bf16.msra.mxu0 %v3078
        %3484 = vmatprep.subr.bf16.mxu0 0
        %3485 = vmatpush2.bf16.msra.mxu0 %v3077
        %3486 = vmatprep.subr.bf16.mxu0 0
        %3487 = vmatpush2.bf16.msra.mxu0 %v3076
        %3488 = vmatprep.subr.bf16.mxu0 0
        %3489 = vmatpush2.bf16.msra.mxu0 %v3075
        %3490 = vmatprep.subr.bf16.mxu0 0
        %3491 = vmatpush2.bf16.msra.mxu0 %v3074
        %3492 = vmatprep.subr.bf16.mxu0 0
        %3493 = vmatpush2.bf16.msra.mxu0 %v3073
        %3494 = vmatprep.subr.bf16.mxu0 0
        %3495 = vmatpush2.bf16.msra.mxu0 %v3072
        %3496 = vmatprep.mubr.bf16.mxu0 %v2190
        %3497 = vmatmul.mubr.bf16.gmra.mxu0 %v2189
        %v3498 = vpop.f32.mrf.mxu0
        %v3499 = vadd.f32 %v3459, %v3498
        %v3500 = vpop.f32.mrf.mxu0
        %v3501 = vpop.f32.mrf.mxu0
        %v3502 = vpop.f32.mrf.mxu0
        %3503 = vdwg.mxu0
        %3504 = vmatprep.subr.bf16.mxu0 0
        %3505 = vmatpush1.bf16.msra.mxu0 %v3087
        %3506 = vmatprep.subr.bf16.mxu0 0
        %3507 = vmatpush1.bf16.msra.mxu0 %v3086
        %3508 = vmatprep.subr.bf16.mxu0 0
        %3509 = vmatpush1.bf16.msra.mxu0 %v3085
        %3510 = vmatprep.subr.bf16.mxu0 0
        %3511 = vmatpush1.bf16.msra.mxu0 %v3084
        %3512 = vmatprep.subr.bf16.mxu0 0
        %3513 = vmatpush1.bf16.msra.mxu0 %v3083
        %3514 = vmatprep.subr.bf16.mxu0 0
        %3515 = vmatpush1.bf16.msra.mxu0 %v3082
        %3516 = vmatprep.subr.bf16.mxu0 0
        %3517 = vmatpush1.bf16.msra.mxu0 %v3081
        %3518 = vmatprep.subr.bf16.mxu0 0
        %3519 = vmatpush1.bf16.msra.mxu0 %v3080
        %3520 = vmatprep.subr.bf16.mxu0 0
        %3521 = vmatpush2.bf16.msra.mxu0 %v3095
        %3522 = vmatprep.subr.bf16.mxu0 0
        %3523 = vmatpush2.bf16.msra.mxu0 %v3094
        %3524 = vmatprep.subr.bf16.mxu0 0
        %3525 = vmatpush2.bf16.msra.mxu0 %v3093
        %3526 = vmatprep.subr.bf16.mxu0 0
        %3527 = vmatpush2.bf16.msra.mxu0 %v3092
        %3528 = vmatprep.subr.bf16.mxu0 0
        %3529 = vmatpush2.bf16.msra.mxu0 %v3091
        %3530 = vmatprep.subr.bf16.mxu0 0
        %3531 = vmatpush2.bf16.msra.mxu0 %v3090
        %3532 = vmatprep.subr.bf16.mxu0 0
        %3533 = vmatpush2.bf16.msra.mxu0 %v3089
        %3534 = vmatprep.subr.bf16.mxu0 0
        %3535 = vmatpush2.bf16.msra.mxu0 %v3088
        %3536 = vmatprep.mubr.bf16.mxu0 %v2192
        %3537 = vmatmul.mubr.bf16.gmra.mxu0 %v2191
        %v3538 = vpop.f32.mrf.mxu0
        %v3539 = vadd.f32 %v3499, %v3538
        %v3540 = vpop.f32.mrf.mxu0
        %v3541 = vpop.f32.mrf.mxu0
        %v3542 = vpop.f32.mrf.mxu0
        %3543 = vdwg.mxu0
        %v3544 = vadd.f32 %v1552, %v3539
        %v3545 = vld [vmem:[%s693] sm:$0x1]
        %v3546 = vld [vmem:[%s696] sm:$0x1]
        %v3547 = vsel %vm730, %v3544, 0.0
        %3548 = vadd.xlane.f32.xlu0 %v3547
        %v3549 = vpop.xlane.xlu0 %3548
        %v3550 = vmul.f32 %v3549, %v1528
        %v3551 = vsub.f32 %v3544, %v3550
        %v3552 = vmul.f32 %v3551, %v3551
        %v3553 = vsel %vm730, %v3552, 0.0
        %3554 = vadd.xlane.f32.xlu0 %v3553
        %v3555 = vpop.xlane.xlu0 %3554
        %v3556 = vmul.f32 %v3555, %v1528
        %v3557 = vadd.f32 %v3556, 1e-05
        %v3558 = vrsqrt.pop %v3557
        %v3559 = vmul.f32 %v3551, %v3558
        %v3561 = vlaneseq
        %v3562 = vshrl.u32 %v3561, 7
        %v3563 = vsub.s32 0, %v3562
        %v3564 = vrot.slane %v3545, %v3563
        %v3566 = vmul.f32 %v3559, %v3564
        %v3568 = vlaneseq
        %v3569 = vshrl.u32 %v3568, 7
        %v3570 = vsub.s32 0, %v3569
        %v3571 = vrot.slane %v3546, %v3570
        %v3573 = vadd.f32 %v3566, %v3571
        %3574 = vst.msk [vmem:[#allocation2] sm:$0xff] %vm730, %v3573
        %p3575 = scmp.eq.s32.totalorder %s34, 1
        // Predicated region
        $region85: #{tpu_custom_call.1} parent=79 // pred_check
          %p3576 = pneg %p3575
        $region86: #{tpu_custom_call.1} parent=79 // pred_check_branch
          %3578 = sbr.rel (%p3576) target = $region88
        $region87: #{tpu_custom_call.1} parent=79 // pred_region
          %v3579 = vld [vmem:[%s13] sm:$0x1]
          %v3580 = vld [vmem:[%s14] sm:$0x1]
          %v3581 = vsel %vm730, %v3573, 0.0
          %3582 = vadd.xlane.f32.xlu0 %v3581
          %v3583 = vpop.xlane.xlu0 %3582
          %v3584 = vmul.f32 %v3583, %v1528
          %v3585 = vsub.f32 %v3573, %v3584
          %v3586 = vmul.f32 %v3585, %v3585
          %v3587 = vsel %vm730, %v3586, 0.0
          %3588 = vadd.xlane.f32.xlu0 %v3587
          %v3589 = vpop.xlane.xlu0 %3588
          %v3590 = vmul.f32 %v3589, %v1528
          %v3591 = vadd.f32 %v3590, 1e-05
          %v3592 = vrsqrt.pop %v3591
          %v3593 = vmul.f32 %v3585, %v3592
          %v3595 = vlaneseq
          %v3596 = vshrl.u32 %v3595, 7
          %v3597 = vsub.s32 0, %v3596
          %v3598 = vrot.slane %v3579, %v3597
          %v3600 = vmul.f32 %v3593, %v3598
          %v3602 = vlaneseq
          %v3603 = vshrl.u32 %v3602, 7
          %v3604 = vsub.s32 0, %v3603
          %v3605 = vrot.slane %v3580, %v3604
          %v3607 = vadd.f32 %v3600, %v3605
          %3608 = vst.msk [vmem:[%s647] sm:$0xff] %vm730, %v3607
        $region88: #{tpu_custom_call.1} parent=79 // pred_fallthru
          _
        %s3609 = sand.u32 %s429, 1
        %s3610 = scalar_lea.sflag [#allocation4], %s3609
        %s3611 = sand.u32 %s429, 1
        %s3612 = smul.addr %s3611, 8
        %s3613 = scalar_lea.vmem [#allocation3], %s3612
        // Predicated region
        $region89: #{tpu_custom_call.1} parent=79 // pred_check
          %p3614 = pneg %p439
        $region90: #{tpu_custom_call.1} parent=79 // pred_check_branch
          %3616 = sbr.rel (%p3614) target = $region92
        $region91: #{tpu_custom_call.1} parent=79 // pred_region
          %s3618 = ssub.s32 128, 128
          %3619 = vsyncadd %s3610, %s3618
          %s3620 = smul.addr %s33, 128
          %s3621 = scalar_lea.hbm %s15, %s3620
          %s3623 = sshll.u32 %s3613, 4
          %s3624 = int_to_ptr.vmem [resolvable:$true] %s3623
          %3626 = dma.vmem_to_hbm [thread:$0]  %s3624, 128, %s3621, %s3610
        $region92: #{tpu_custom_call.1} parent=79 // pred_fallthru
          _
      $region80: #{tpu_custom_call.1} parent=5 // pred_fallthru
        _
      %p3627 = scmp.le.s32.totalorder 2, %s24
      // Predicated region
      $region93: #{tpu_custom_call.1} parent=5 // pred_check
        %p3628 = pneg %p3627
      $region94: #{tpu_custom_call.1} parent=5 // pred_check_branch
        %3630 = sbr.rel (%p3628) target = $region96
      $region95: #{tpu_custom_call.1} parent=5 // pred_region
        %s3631 = ssub.s32 %s24, 2
        // Predicated region
        $region97: #{tpu_custom_call.1} parent=95 // pred_check
          %p3632 = pneg %p445
        $region98: #{tpu_custom_call.1} parent=95 // pred_check_branch
          %3634 = sbr.rel (%p3632) target = $region100
        $region99: #{tpu_custom_call.1} parent=95 // pred_region
          %s3635 = sand.u32 %s430, 1
          %s3636 = scalar_lea.sflag [#allocation4], %s3635
          %s3637 = sand.u32 %s430, 1
          %s3638 = smul.addr %s3637, 8
          %s3639 = scalar_lea.vmem [#allocation3], %s3638
          %3640 = dma.done %s3636, 128
        $region100: #{tpu_custom_call.1} parent=95 // pred_fallthru
          _
      $region96: #{tpu_custom_call.1} parent=5 // pred_fallthru
        _
    $region6: #{tpu_custom_call.1} parent=1 // loop_footer
      %s28 = sadd.s32 1, %s24
    $region7: #{tpu_custom_call.1} parent=1 // loop_footer_branch
      %23 = sbr.rel target = $region3
    $region8: #{tpu_custom_call.1} parent=1 // loop_exit
      _
    %3641 = vsyncpa [#allocation4], 1
    %s3642 = scalar_lea.sflag [#allocation4], 1
    %3643 = vsyncpa %s3642, 1

</llo_original>
